<compile_context>
chip_gen: v5e
topology: v5e:2x2
jax: 0.10.0
libtpu: 0.0.40
codegen_flags: <defaults>
</compile_context>

<pallas_src>
import functools
import math

import jax
import jax.numpy as jnp
from jax.experimental import pallas as pl
from jax.experimental.pallas import tpu as pltpu


def _round_up(x, m):
    return (x + m - 1) // m * m


def fnn_atten_kernel(emb_ref, wqkv_ref, bqkv_ref, wo_ref, bo_ref,
                     wh_ref, bh_ref, wd_ref, bd_ref, out_ref,
                     *, seq_len, ninp, nheads, batch_tile):
    bt, s = batch_tile, seq_len
    hd = ninp // nheads
    # PyTorch module divides by sqrt(nheads); fold it into q as a multiply.
    inv_scale = jnp.float32(1.0 / math.sqrt(float(nheads)))

    # (bt, s, ninp) -> (bt*s, ninp): leading-dim merge (s == sublane tile).
    x2 = emb_ref[...].reshape(bt * s, ninp)

    # Fused QKV projection: one matmul with lane-dense (padded to 128) N.
    qkv = jnp.dot(x2, wqkv_ref[...],
                  preferred_element_type=jnp.float32) + bqkv_ref[...]
    qkv3 = qkv.reshape(bt, s, qkv.shape[-1])                     # (bt, s, 128)
    q3 = qkv3[:, :, 0:ninp] * inv_scale                          # (bt, s, ninp)
    k3 = qkv3[:, :, ninp:2 * ninp]
    v3 = qkv3[:, :, 2 * ninp:3 * ninp]

    # Multi-head attention, batched over the batch tile.  Static loop over
    # heads: each iteration is one batched energy matmul, one batched softmax
    # and one batched PV matmul (no explicit transposes, no per-row softmax).
    ctx_heads = []
    for h in range(nheads):
        lo = h * hd
        qh = q3[:, :, lo:lo + hd]                                # (bt, s, hd)
        kh = k3[:, :, lo:lo + hd]
        vh = v3[:, :, lo:lo + hd]
        e = jnp.einsum('bqd,bkd->bqk', qh, kh,
                       preferred_element_type=jnp.float32)       # (bt, s, s)
        e = e - jnp.max(e, axis=-1, keepdims=True)
        p = jnp.exp(e)
        denom = jnp.sum(p, axis=-1, keepdims=True)
        a = p * pl.reciprocal(denom, approx=True)                # softmax
        ctx_heads.append(jnp.einsum('bqk,bkd->bqd', a, vh,
                                    preferred_element_type=jnp.float32))
    ctx = jnp.concatenate(ctx_heads, axis=-1)                    # (bt, s, ninp)

    # atten_out projection on the whole tile at once.
    x = jnp.dot(ctx.reshape(bt * s, ninp), wo_ref[...],
                preferred_element_type=jnp.float32) + bo_ref[...]  # (bt*s, ninp)

    # Row-major flatten of (s, ninp) per batch row, then ONE contraction with
    # K = seq*ninp (replaces the old serial per-row accumulation).
    x3 = x.reshape(bt, s, ninp)
    flat = jnp.concatenate([x3[:, si, :] for si in range(s)], axis=-1)  # (bt, s*ninp)

    hidden = jnp.tanh(jnp.dot(flat, wh_ref[...],
                              preferred_element_type=jnp.float32) + bh_ref[...])
    # Lane/sublane-dense (batch_tile, ntoken_pad) output slab.
    out_ref[...] = jnp.dot(hidden, wd_ref[...],
                           preferred_element_type=jnp.float32) + bd_ref[...]


def init_params(key, *, seq_len, ntoken, ninp, nhid):
    initrange = 0.1
    ks = jax.random.split(key, 12)
    u = lambda k, shape, r=initrange: jax.random.uniform(
        k, shape, jnp.float32, minval=-r, maxval=r)
    params = {
        "encoder": u(ks[0], (ntoken, ninp)),
        # Linear weights stored pre-transposed (in, out) so the kernel does x @ W.
        "wq_t": u(ks[1], (ninp, ninp)), "bq": u(ks[2], (1, ninp), 0.05),
        "wk_t": u(ks[3], (ninp, ninp)), "bk": u(ks[4], (1, ninp), 0.05),
        "wv_t": u(ks[5], (ninp, ninp)), "bv": u(ks[6], (1, ninp), 0.05),
        "wo_t": u(ks[7], (ninp, ninp)), "bo": u(ks[8], (1, ninp), 0.05),
        # hidden_tanh weight, transposed to (seq*ninp, nhid) matching the
        # row-major flatten of (seq, ninp).
        "wh_flat": u(ks[9], (seq_len * ninp, nhid)),
        "bh": u(ks[10], (1, nhid), 0.05),
        "wd_t": u(ks[11], (nhid, ntoken)),
        "bd": jnp.zeros((1, ntoken), jnp.float32),
    }
    return params


def fnn_atten_forward(tokens, params, *, seq_len, ntoken, ninp, nhid, nheads,
                      batch_tile=8):
    # tokens: (seq_len, batch) int32 token ids, as the PyTorch forward expects.
    tokens_bt = tokens.T.astype(jnp.int32)                       # (batch, seq)
    batch = tokens_bt.shape[0]

    # Pad batch to a sublane-aligned tile; pad rows use token 0 and are sliced
    # away from the output.
    bp = _round_up(batch, batch_tile)
    if bp != batch:
        tokens_bt = jnp.pad(tokens_bt, ((0, bp - batch), (0, 0)))

    # Embedding gather stays in the JAX wrapper (XLA gather).
    emb = jnp.take(params["encoder"], tokens_bt, axis=0).astype(jnp.float32)

    # --- wrapper-side fusion / lane-dense zero padding (done once) ----------
    qkv_w = _round_up(3 * ninp, 128)
    nhid_p = _round_up(nhid, 128)
    ntok_p = _round_up(ntoken, 128)

    wqkv = jnp.concatenate([params["wq_t"], params["wk_t"], params["wv_t"]], axis=1)
    wqkv = jnp.pad(wqkv, ((0, 0), (0, qkv_w - 3 * ninp)))
    bqkv = jnp.concatenate([params["bq"], params["bk"], params["bv"]], axis=1)
    bqkv = jnp.pad(bqkv, ((0, 0), (0, qkv_w - 3 * ninp)))

    wh = jnp.pad(params["wh_flat"], ((0, 0), (0, nhid_p - nhid)))
    bh = jnp.pad(params["bh"], ((0, 0), (0, nhid_p - nhid)))
    wd = jnp.pad(params["wd_t"], ((0, nhid_p - nhid), (0, ntok_p - ntoken)))
    bd = jnp.pad(params["bd"], ((0, 0), (0, ntok_p - ntoken)))
    # ------------------------------------------------------------------------

    kernel = functools.partial(fnn_atten_kernel, seq_len=seq_len, ninp=ninp,
                               nheads=nheads, batch_tile=batch_tile)

    def full(shape):
        nd = len(shape)
        return pl.BlockSpec(shape, lambda b, _nd=nd: (0,) * _nd)

    in_specs = [
        pl.BlockSpec((batch_tile, seq_len, ninp), lambda b: (b, 0, 0)),  # emb tile
        full(wqkv.shape), full(bqkv.shape),                              # Wqkv, bqkv
        full(params["wo_t"].shape), full(params["bo"].shape),            # Wo, bo
        full(wh.shape), full(bh.shape),                                  # Wh, bh
        full(wd.shape), full(bd.shape),                                  # Wd, bd
    ]

    out = pl.pallas_call(
        kernel,
        out_shape=jax.ShapeDtypeStruct((bp, ntok_p), jnp.float32),
        grid_spec=pltpu.PrefetchScalarGridSpec(
            num_scalar_prefetch=0,
            grid=(bp // batch_tile,),
            in_specs=in_specs,
            out_specs=pl.BlockSpec((batch_tile, ntok_p), lambda b: (b, 0))),
        compiler_params=pltpu.CompilerParams(dimension_semantics=("parallel",)),
    )(emb, wqkv, bqkv, params["wo_t"], params["bo"], wh, bh, wd, bd)

    return out[:batch, :ntoken]                                   # (batch, ntoken)


def reference_forward(tokens, params, *, seq_len, ntoken, ninp, nhid, nheads):
    """Pure-JAX reference mirroring the PyTorch forward (eval mode)."""
    head_dim = ninp // nheads
    x = jnp.take(params["encoder"], tokens.T, axis=0)             # (B, S, ninp)
    batch = x.shape[0]
    q = x @ params["wq_t"] + params["bq"]
    k = x @ params["wk_t"] + params["bk"]
    v = x @ params["wv_t"] + params["bv"]
    rs = lambda t: t.reshape(batch, seq_len, nheads, head_dim).transpose(0, 2, 1, 3)
    q, k, v = rs(q), rs(k), rs(v)
    energy = jnp.einsum("bhqd,bhkd->bhqk", q, k) / jnp.sqrt(jnp.float32(nheads))
    attn = jax.nn.softmax(energy, axis=-1)
    o = jnp.einsum("bhqk,bhkd->bhqd", attn, v).transpose(0, 2, 1, 3)
    o = o.reshape(batch, seq_len, ninp)
    o = o @ params["wo_t"] + params["bo"]
    flat = o.reshape(batch, seq_len * ninp)
    h = jnp.tanh(flat @ params["wh_flat"] + params["bh"])
    return h @ params["wd_t"] + params["bd"]


if __name__ == "__main__":
    seq_len, batch, ntoken, ninp, nhid, nheads = 8, 2, 64, 32, 32, 8

    key = jax.random.PRNGKey(0)
    k_tok, k_par = jax.random.split(key)
    tokens = jax.random.randint(k_tok, (seq_len, batch), 0, ntoken, dtype=jnp.int32)
    params = init_params(k_par, seq_len=seq_len, ntoken=ntoken, ninp=ninp, nhid=nhid)

    out = fnn_atten_forward(tokens, params, seq_len=seq_len, ntoken=ntoken,
                            ninp=ninp, nhid=nhid, nheads=nheads)
    out = jax.block_until_ready(out)

    ref = reference_forward(tokens, params, seq_len=seq_len, ntoken=ntoken,
                            ninp=ninp, nhid=nhid, nheads=nheads)
    assert out.shape == (batch, ntoken)
    # Slightly loose tolerance: softmax denominator uses the EUP approx
    # reciprocal (pl.reciprocal(..., approx=True)).
    assert jnp.allclose(out, ref, atol=2e-3, rtol=2e-3), "mismatch vs JAX reference"

    print("KERNEL_OK")
</pallas_src>

<mosaic_0001>
module attributes {stable_mosaic.version = 11 : i64} {
  func.func @fnn_atten_kernel(%arg0: i32, %arg1: memref<8x8x32xf32, #tpu.memory_space<vmem>>, %arg2: memref<32x128xf32, #tpu.memory_space<vmem>>, %arg3: memref<1x128xf32, #tpu.memory_space<vmem>>, %arg4: memref<32x32xf32, #tpu.memory_space<vmem>>, %arg5: memref<1x32xf32, #tpu.memory_space<vmem>>, %arg6: memref<256x128xf32, #tpu.memory_space<vmem>>, %arg7: memref<1x128xf32, #tpu.memory_space<vmem>>, %arg8: memref<128x128xf32, #tpu.memory_space<vmem>>, %arg9: memref<1x128xf32, #tpu.memory_space<vmem>>, %arg10: memref<8x128xf32, #tpu.memory_space<vmem>>) attributes {dimension_semantics = [#tpu.dimension_semantics<parallel>], iteration_bounds = array<i64: 1>, scalar_prefetch = 0 : i64, scratch_operands = 0 : i64, tpu.core_type = #tpu.core_type<tc>, window_params = [{transform_indices = @transform_0, window_bounds = array<i64: 8, 8, 32>}, {pipeline_mode = #tpu.pipeline_mode<synchronous>, transform_indices = @transform_1, window_bounds = array<i64: 32, 128>}, {pipeline_mode = #tpu.pipeline_mode<synchronous>, transform_indices = @transform_2, window_bounds = array<i64: 1, 128>}, {pipeline_mode = #tpu.pipeline_mode<synchronous>, transform_indices = @transform_3, window_bounds = array<i64: 32, 32>}, {pipeline_mode = #tpu.pipeline_mode<synchronous>, transform_indices = @transform_4, window_bounds = array<i64: 1, 32>}, {pipeline_mode = #tpu.pipeline_mode<synchronous>, transform_indices = @transform_5, window_bounds = array<i64: 256, 128>}, {pipeline_mode = #tpu.pipeline_mode<synchronous>, transform_indices = @transform_6, window_bounds = array<i64: 1, 128>}, {pipeline_mode = #tpu.pipeline_mode<synchronous>, transform_indices = @transform_7, window_bounds = array<i64: 128, 128>}, {pipeline_mode = #tpu.pipeline_mode<synchronous>, transform_indices = @transform_8, window_bounds = array<i64: 1, 128>}, {transform_indices = @transform_9, window_bounds = array<i64: 8, 128>}]} {
    %c0 = arith.constant 0 : index
    %c0_0 = arith.constant 0 : index
    %c0_1 = arith.constant 0 : index
    %0 = vector.load %arg1[%c0, %c0_0, %c0_1] : memref<8x8x32xf32, #tpu.memory_space<vmem>>, vector<8x8x32xf32>
    %1 = vector.shape_cast %0 : vector<8x8x32xf32> to vector<64x32xf32>
    %c0_2 = arith.constant 0 : index
    %c0_3 = arith.constant 0 : index
    %2 = vector.load %arg2[%c0_2, %c0_3] : memref<32x128xf32, #tpu.memory_space<vmem>>, vector<32x128xf32>
    %cst = arith.constant dense<0.000000e+00> : vector<64x128xf32>
    %3 = tpu.matmul %1, %2, %cst {dimension_numbers = #tpu.dot_dimension_numbers<[1], [0], [0], [1], [0, 0, 1, 1], [], []>} : vector<64x32xf32>, vector<32x128xf32>, vector<64x128xf32> -> vector<64x128xf32>
    %c0_4 = arith.constant 0 : index
    %c0_5 = arith.constant 0 : index
    %4 = vector.load %arg3[%c0_4, %c0_5] : memref<1x128xf32, #tpu.memory_space<vmem>>, vector<1x128xf32>
    %5 = vector.broadcast %4 : vector<1x128xf32> to vector<64x128xf32>
    %6 = arith.addf %3, %5 : vector<64x128xf32>
    %7 = vector.shape_cast %6 : vector<64x128xf32> to vector<8x8x128xf32>
    %8 = vector.extract_strided_slice %7 {offsets = [0, 0, 0], sizes = [8, 8, 32], strides = [1, 1, 1]} : vector<8x8x128xf32> to vector<8x8x32xf32>
    %cst_6 = arith.constant 0.353553385 : f32
    %9 = vector.broadcast %cst_6 : f32 to vector<8x8x32xf32>
    %10 = arith.mulf %8, %9 : vector<8x8x32xf32>
    %11 = vector.extract_strided_slice %7 {offsets = [0, 0, 32], sizes = [8, 8, 32], strides = [1, 1, 1]} : vector<8x8x128xf32> to vector<8x8x32xf32>
    %12 = vector.extract_strided_slice %7 {offsets = [0, 0, 64], sizes = [8, 8, 32], strides = [1, 1, 1]} : vector<8x8x128xf32> to vector<8x8x32xf32>
    %13 = vector.extract_strided_slice %10 {offsets = [0, 0, 0], sizes = [8, 8, 4], strides = [1, 1, 1]} : vector<8x8x32xf32> to vector<8x8x4xf32>
    %14 = vector.extract_strided_slice %11 {offsets = [0, 0, 0], sizes = [8, 8, 4], strides = [1, 1, 1]} : vector<8x8x32xf32> to vector<8x8x4xf32>
    %15 = vector.extract_strided_slice %12 {offsets = [0, 0, 0], sizes = [8, 8, 4], strides = [1, 1, 1]} : vector<8x8x32xf32> to vector<8x8x4xf32>
    "tpu.trace_start"() <{level = 10 : i32, message = "bqd,bkd->bqk"}> : () -> ()
    %cst_7 = arith.constant dense<0.000000e+00> : vector<8x8x8xf32>
    %16 = tpu.matmul %13, %14, %cst_7 {dimension_numbers = #tpu.dot_dimension_numbers<[2], [2], [1], [1], [0, 0, 0, 1, 1, 1], [0], [0]>} : vector<8x8x4xf32>, vector<8x8x4xf32>, vector<8x8x8xf32> -> vector<8x8x8xf32>
    "tpu.trace_stop"() : () -> ()
    %cst_8 = arith.constant dense<0xFF800000> : vector<8x8xf32>
    %17 = vector.multi_reduction <maximumf>, %16, %cst_8 [2] : vector<8x8x8xf32> to vector<8x8xf32>
    %18 = vector.shape_cast %17 : vector<8x8xf32> to vector<8x8x1xf32>
    %19 = vector.broadcast %18 : vector<8x8x1xf32> to vector<8x8x8xf32>
    %20 = arith.subf %16, %19 : vector<8x8x8xf32>
    %21 = math.exp %20 : vector<8x8x8xf32>
    %cst_9 = arith.constant dense<0.000000e+00> : vector<8x8xf32>
    %22 = vector.multi_reduction <add>, %21, %cst_9 [2] : vector<8x8x8xf32> to vector<8x8xf32>
    %23 = vector.shape_cast %22 : vector<8x8xf32> to vector<8x8x1xf32>
    %24 = tpu.reciprocal %23 {approx = true} : vector<8x8x1xf32> -> vector<8x8x1xf32>
    %25 = vector.broadcast %24 : vector<8x8x1xf32> to vector<8x8x8xf32>
    %26 = arith.mulf %21, %25 : vector<8x8x8xf32>
    "tpu.trace_start"() <{level = 10 : i32, message = "bqk,bkd->bqd"}> : () -> ()
    %cst_10 = arith.constant dense<0.000000e+00> : vector<8x8x4xf32>
    %27 = tpu.matmul %26, %15, %cst_10 {dimension_numbers = #tpu.dot_dimension_numbers<[2], [1], [1], [2], [0, 0, 0, 1, 1, 2], [0], [0]>} : vector<8x8x8xf32>, vector<8x8x4xf32>, vector<8x8x4xf32> -> vector<8x8x4xf32>
    "tpu.trace_stop"() : () -> ()
    %28 = vector.extract_strided_slice %10 {offsets = [0, 0, 4], sizes = [8, 8, 4], strides = [1, 1, 1]} : vector<8x8x32xf32> to vector<8x8x4xf32>
    %29 = vector.extract_strided_slice %11 {offsets = [0, 0, 4], sizes = [8, 8, 4], strides = [1, 1, 1]} : vector<8x8x32xf32> to vector<8x8x4xf32>
    %30 = vector.extract_strided_slice %12 {offsets = [0, 0, 4], sizes = [8, 8, 4], strides = [1, 1, 1]} : vector<8x8x32xf32> to vector<8x8x4xf32>
    "tpu.trace_start"() <{level = 10 : i32, message = "bqd,bkd->bqk"}> : () -> ()
    %cst_11 = arith.constant dense<0.000000e+00> : vector<8x8x8xf32>
    %31 = tpu.matmul %28, %29, %cst_11 {dimension_numbers = #tpu.dot_dimension_numbers<[2], [2], [1], [1], [0, 0, 0, 1, 1, 1], [0], [0]>} : vector<8x8x4xf32>, vector<8x8x4xf32>, vector<8x8x8xf32> -> vector<8x8x8xf32>
    "tpu.trace_stop"() : () -> ()
    %cst_12 = arith.constant dense<0xFF800000> : vector<8x8xf32>
    %32 = vector.multi_reduction <maximumf>, %31, %cst_12 [2] : vector<8x8x8xf32> to vector<8x8xf32>
    %33 = vector.shape_cast %32 : vector<8x8xf32> to vector<8x8x1xf32>
    %34 = vector.broadcast %33 : vector<8x8x1xf32> to vector<8x8x8xf32>
    %35 = arith.subf %31, %34 : vector<8x8x8xf32>
    %36 = math.exp %35 : vector<8x8x8xf32>
    %cst_13 = arith.constant dense<0.000000e+00> : vector<8x8xf32>
    %37 = vector.multi_reduction <add>, %36, %cst_13 [2] : vector<8x8x8xf32> to vector<8x8xf32>
    %38 = vector.shape_cast %37 : vector<8x8xf32> to vector<8x8x1xf32>
    %39 = tpu.reciprocal %38 {approx = true} : vector<8x8x1xf32> -> vector<8x8x1xf32>
    %40 = vector.broadcast %39 : vector<8x8x1xf32> to vector<8x8x8xf32>
    %41 = arith.mulf %36, %40 : vector<8x8x8xf32>
    "tpu.trace_start"() <{level = 10 : i32, message = "bqk,bkd->bqd"}> : () -> ()
    %cst_14 = arith.constant dense<0.000000e+00> : vector<8x8x4xf32>
    %42 = tpu.matmul %41, %30, %cst_14 {dimension_numbers = #tpu.dot_dimension_numbers<[2], [1], [1], [2], [0, 0, 0, 1, 1, 2], [0], [0]>} : vector<8x8x8xf32>, vector<8x8x4xf32>, vector<8x8x4xf32> -> vector<8x8x4xf32>
    "tpu.trace_stop"() : () -> ()
    %43 = vector.extract_strided_slice %10 {offsets = [0, 0, 8], sizes = [8, 8, 4], strides = [1, 1, 1]} : vector<8x8x32xf32> to vector<8x8x4xf32>
    %44 = vector.extract_strided_slice %11 {offsets = [0, 0, 8], sizes = [8, 8, 4], strides = [1, 1, 1]} : vector<8x8x32xf32> to vector<8x8x4xf32>
    %45 = vector.extract_strided_slice %12 {offsets = [0, 0, 8], sizes = [8, 8, 4], strides = [1, 1, 1]} : vector<8x8x32xf32> to vector<8x8x4xf32>
    "tpu.trace_start"() <{level = 10 : i32, message = "bqd,bkd->bqk"}> : () -> ()
    %cst_15 = arith.constant dense<0.000000e+00> : vector<8x8x8xf32>
    %46 = tpu.matmul %43, %44, %cst_15 {dimension_numbers = #tpu.dot_dimension_numbers<[2], [2], [1], [1], [0, 0, 0, 1, 1, 1], [0], [0]>} : vector<8x8x4xf32>, vector<8x8x4xf32>, vector<8x8x8xf32> -> vector<8x8x8xf32>
    "tpu.trace_stop"() : () -> ()
    %cst_16 = arith.constant dense<0xFF800000> : vector<8x8xf32>
    %47 = vector.multi_reduction <maximumf>, %46, %cst_16 [2] : vector<8x8x8xf32> to vector<8x8xf32>
    %48 = vector.shape_cast %47 : vector<8x8xf32> to vector<8x8x1xf32>
    %49 = vector.broadcast %48 : vector<8x8x1xf32> to vector<8x8x8xf32>
    %50 = arith.subf %46, %49 : vector<8x8x8xf32>
    %51 = math.exp %50 : vector<8x8x8xf32>
    %cst_17 = arith.constant dense<0.000000e+00> : vector<8x8xf32>
    %52 = vector.multi_reduction <add>, %51, %cst_17 [2] : vector<8x8x8xf32> to vector<8x8xf32>
    %53 = vector.shape_cast %52 : vector<8x8xf32> to vector<8x8x1xf32>
    %54 = tpu.reciprocal %53 {approx = true} : vector<8x8x1xf32> -> vector<8x8x1xf32>
    %55 = vector.broadcast %54 : vector<8x8x1xf32> to vector<8x8x8xf32>
    %56 = arith.mulf %51, %55 : vector<8x8x8xf32>
    "tpu.trace_start"() <{level = 10 : i32, message = "bqk,bkd->bqd"}> : () -> ()
    %cst_18 = arith.constant dense<0.000000e+00> : vector<8x8x4xf32>
    %57 = tpu.matmul %56, %45, %cst_18 {dimension_numbers = #tpu.dot_dimension_numbers<[2], [1], [1], [2], [0, 0, 0, 1, 1, 2], [0], [0]>} : vector<8x8x8xf32>, vector<8x8x4xf32>, vector<8x8x4xf32> -> vector<8x8x4xf32>
    "tpu.trace_stop"() : () -> ()
    %58 = vector.extract_strided_slice %10 {offsets = [0, 0, 12], sizes = [8, 8, 4], strides = [1, 1, 1]} : vector<8x8x32xf32> to vector<8x8x4xf32>
    %59 = vector.extract_strided_slice %11 {offsets = [0, 0, 12], sizes = [8, 8, 4], strides = [1, 1, 1]} : vector<8x8x32xf32> to vector<8x8x4xf32>
    %60 = vector.extract_strided_slice %12 {offsets = [0, 0, 12], sizes = [8, 8, 4], strides = [1, 1, 1]} : vector<8x8x32xf32> to vector<8x8x4xf32>
    "tpu.trace_start"() <{level = 10 : i32, message = "bqd,bkd->bqk"}> : () -> ()
    %cst_19 = arith.constant dense<0.000000e+00> : vector<8x8x8xf32>
    %61 = tpu.matmul %58, %59, %cst_19 {dimension_numbers = #tpu.dot_dimension_numbers<[2], [2], [1], [1], [0, 0, 0, 1, 1, 1], [0], [0]>} : vector<8x8x4xf32>, vector<8x8x4xf32>, vector<8x8x8xf32> -> vector<8x8x8xf32>
    "tpu.trace_stop"() : () -> ()
    %cst_20 = arith.constant dense<0xFF800000> : vector<8x8xf32>
    %62 = vector.multi_reduction <maximumf>, %61, %cst_20 [2] : vector<8x8x8xf32> to vector<8x8xf32>
    %63 = vector.shape_cast %62 : vector<8x8xf32> to vector<8x8x1xf32>
    %64 = vector.broadcast %63 : vector<8x8x1xf32> to vector<8x8x8xf32>
    %65 = arith.subf %61, %64 : vector<8x8x8xf32>
    %66 = math.exp %65 : vector<8x8x8xf32>
    %cst_21 = arith.constant dense<0.000000e+00> : vector<8x8xf32>
    %67 = vector.multi_reduction <add>, %66, %cst_21 [2] : vector<8x8x8xf32> to vector<8x8xf32>
    %68 = vector.shape_cast %67 : vector<8x8xf32> to vector<8x8x1xf32>
    %69 = tpu.reciprocal %68 {approx = true} : vector<8x8x1xf32> -> vector<8x8x1xf32>
    %70 = vector.broadcast %69 : vector<8x8x1xf32> to vector<8x8x8xf32>
    %71 = arith.mulf %66, %70 : vector<8x8x8xf32>
    "tpu.trace_start"() <{level = 10 : i32, message = "bqk,bkd->bqd"}> : () -> ()
    %cst_22 = arith.constant dense<0.000000e+00> : vector<8x8x4xf32>
    %72 = tpu.matmul %71, %60, %cst_22 {dimension_numbers = #tpu.dot_dimension_numbers<[2], [1], [1], [2], [0, 0, 0, 1, 1, 2], [0], [0]>} : vector<8x8x8xf32>, vector<8x8x4xf32>, vector<8x8x4xf32> -> vector<8x8x4xf32>
    "tpu.trace_stop"() : () -> ()
    %73 = vector.extract_strided_slice %10 {offsets = [0, 0, 16], sizes = [8, 8, 4], strides = [1, 1, 1]} : vector<8x8x32xf32> to vector<8x8x4xf32>
    %74 = vector.extract_strided_slice %11 {offsets = [0, 0, 16], sizes = [8, 8, 4], strides = [1, 1, 1]} : vector<8x8x32xf32> to vector<8x8x4xf32>
    %75 = vector.extract_strided_slice %12 {offsets = [0, 0, 16], sizes = [8, 8, 4], strides = [1, 1, 1]} : vector<8x8x32xf32> to vector<8x8x4xf32>
    "tpu.trace_start"() <{level = 10 : i32, message = "bqd,bkd->bqk"}> : () -> ()
    %cst_23 = arith.constant dense<0.000000e+00> : vector<8x8x8xf32>
    %76 = tpu.matmul %73, %74, %cst_23 {dimension_numbers = #tpu.dot_dimension_numbers<[2], [2], [1], [1], [0, 0, 0, 1, 1, 1], [0], [0]>} : vector<8x8x4xf32>, vector<8x8x4xf32>, vector<8x8x8xf32> -> vector<8x8x8xf32>
    "tpu.trace_stop"() : () -> ()
    %cst_24 = arith.constant dense<0xFF800000> : vector<8x8xf32>
    %77 = vector.multi_reduction <maximumf>, %76, %cst_24 [2] : vector<8x8x8xf32> to vector<8x8xf32>
    %78 = vector.shape_cast %77 : vector<8x8xf32> to vector<8x8x1xf32>
    %79 = vector.broadcast %78 : vector<8x8x1xf32> to vector<8x8x8xf32>
    %80 = arith.subf %76, %79 : vector<8x8x8xf32>
    %81 = math.exp %80 : vector<8x8x8xf32>
    %cst_25 = arith.constant dense<0.000000e+00> : vector<8x8xf32>
    %82 = vector.multi_reduction <add>, %81, %cst_25 [2] : vector<8x8x8xf32> to vector<8x8xf32>
    %83 = vector.shape_cast %82 : vector<8x8xf32> to vector<8x8x1xf32>
    %84 = tpu.reciprocal %83 {approx = true} : vector<8x8x1xf32> -> vector<8x8x1xf32>
    %85 = vector.broadcast %84 : vector<8x8x1xf32> to vector<8x8x8xf32>
    %86 = arith.mulf %81, %85 : vector<8x8x8xf32>
    "tpu.trace_start"() <{level = 10 : i32, message = "bqk,bkd->bqd"}> : () -> ()
    %cst_26 = arith.constant dense<0.000000e+00> : vector<8x8x4xf32>
    %87 = tpu.matmul %86, %75, %cst_26 {dimension_numbers = #tpu.dot_dimension_numbers<[2], [1], [1], [2], [0, 0, 0, 1, 1, 2], [0], [0]>} : vector<8x8x8xf32>, vector<8x8x4xf32>, vector<8x8x4xf32> -> vector<8x8x4xf32>
    "tpu.trace_stop"() : () -> ()
    %88 = vector.extract_strided_slice %10 {offsets = [0, 0, 20], sizes = [8, 8, 4], strides = [1, 1, 1]} : vector<8x8x32xf32> to vector<8x8x4xf32>
    %89 = vector.extract_strided_slice %11 {offsets = [0, 0, 20], sizes = [8, 8, 4], strides = [1, 1, 1]} : vector<8x8x32xf32> to vector<8x8x4xf32>
    %90 = vector.extract_strided_slice %12 {offsets = [0, 0, 20], sizes = [8, 8, 4], strides = [1, 1, 1]} : vector<8x8x32xf32> to vector<8x8x4xf32>
    "tpu.trace_start"() <{level = 10 : i32, message = "bqd,bkd->bqk"}> : () -> ()
    %cst_27 = arith.constant dense<0.000000e+00> : vector<8x8x8xf32>
    %91 = tpu.matmul %88, %89, %cst_27 {dimension_numbers = #tpu.dot_dimension_numbers<[2], [2], [1], [1], [0, 0, 0, 1, 1, 1], [0], [0]>} : vector<8x8x4xf32>, vector<8x8x4xf32>, vector<8x8x8xf32> -> vector<8x8x8xf32>
    "tpu.trace_stop"() : () -> ()
    %cst_28 = arith.constant dense<0xFF800000> : vector<8x8xf32>
    %92 = vector.multi_reduction <maximumf>, %91, %cst_28 [2] : vector<8x8x8xf32> to vector<8x8xf32>
    %93 = vector.shape_cast %92 : vector<8x8xf32> to vector<8x8x1xf32>
    %94 = vector.broadcast %93 : vector<8x8x1xf32> to vector<8x8x8xf32>
    %95 = arith.subf %91, %94 : vector<8x8x8xf32>
    %96 = math.exp %95 : vector<8x8x8xf32>
    %cst_29 = arith.constant dense<0.000000e+00> : vector<8x8xf32>
    %97 = vector.multi_reduction <add>, %96, %cst_29 [2] : vector<8x8x8xf32> to vector<8x8xf32>
    %98 = vector.shape_cast %97 : vector<8x8xf32> to vector<8x8x1xf32>
    %99 = tpu.reciprocal %98 {approx = true} : vector<8x8x1xf32> -> vector<8x8x1xf32>
    %100 = vector.broadcast %99 : vector<8x8x1xf32> to vector<8x8x8xf32>
    %101 = arith.mulf %96, %100 : vector<8x8x8xf32>
    "tpu.trace_start"() <{level = 10 : i32, message = "bqk,bkd->bqd"}> : () -> ()
    %cst_30 = arith.constant dense<0.000000e+00> : vector<8x8x4xf32>
    %102 = tpu.matmul %101, %90, %cst_30 {dimension_numbers = #tpu.dot_dimension_numbers<[2], [1], [1], [2], [0, 0, 0, 1, 1, 2], [0], [0]>} : vector<8x8x8xf32>, vector<8x8x4xf32>, vector<8x8x4xf32> -> vector<8x8x4xf32>
    "tpu.trace_stop"() : () -> ()
    %103 = vector.extract_strided_slice %10 {offsets = [0, 0, 24], sizes = [8, 8, 4], strides = [1, 1, 1]} : vector<8x8x32xf32> to vector<8x8x4xf32>
    %104 = vector.extract_strided_slice %11 {offsets = [0, 0, 24], sizes = [8, 8, 4], strides = [1, 1, 1]} : vector<8x8x32xf32> to vector<8x8x4xf32>
    %105 = vector.extract_strided_slice %12 {offsets = [0, 0, 24], sizes = [8, 8, 4], strides = [1, 1, 1]} : vector<8x8x32xf32> to vector<8x8x4xf32>
    "tpu.trace_start"() <{level = 10 : i32, message = "bqd,bkd->bqk"}> : () -> ()
    %cst_31 = arith.constant dense<0.000000e+00> : vector<8x8x8xf32>
    %106 = tpu.matmul %103, %104, %cst_31 {dimension_numbers = #tpu.dot_dimension_numbers<[2], [2], [1], [1], [0, 0, 0, 1, 1, 1], [0], [0]>} : vector<8x8x4xf32>, vector<8x8x4xf32>, vector<8x8x8xf32> -> vector<8x8x8xf32>
    "tpu.trace_stop"() : () -> ()
    %cst_32 = arith.constant dense<0xFF800000> : vector<8x8xf32>
    %107 = vector.multi_reduction <maximumf>, %106, %cst_32 [2] : vector<8x8x8xf32> to vector<8x8xf32>
    %108 = vector.shape_cast %107 : vector<8x8xf32> to vector<8x8x1xf32>
    %109 = vector.broadcast %108 : vector<8x8x1xf32> to vector<8x8x8xf32>
    %110 = arith.subf %106, %109 : vector<8x8x8xf32>
    %111 = math.exp %110 : vector<8x8x8xf32>
    %cst_33 = arith.constant dense<0.000000e+00> : vector<8x8xf32>
    %112 = vector.multi_reduction <add>, %111, %cst_33 [2] : vector<8x8x8xf32> to vector<8x8xf32>
    %113 = vector.shape_cast %112 : vector<8x8xf32> to vector<8x8x1xf32>
    %114 = tpu.reciprocal %113 {approx = true} : vector<8x8x1xf32> -> vector<8x8x1xf32>
    %115 = vector.broadcast %114 : vector<8x8x1xf32> to vector<8x8x8xf32>
    %116 = arith.mulf %111, %115 : vector<8x8x8xf32>
    "tpu.trace_start"() <{level = 10 : i32, message = "bqk,bkd->bqd"}> : () -> ()
    %cst_34 = arith.constant dense<0.000000e+00> : vector<8x8x4xf32>
    %117 = tpu.matmul %116, %105, %cst_34 {dimension_numbers = #tpu.dot_dimension_numbers<[2], [1], [1], [2], [0, 0, 0, 1, 1, 2], [0], [0]>} : vector<8x8x8xf32>, vector<8x8x4xf32>, vector<8x8x4xf32> -> vector<8x8x4xf32>
    "tpu.trace_stop"() : () -> ()
    %118 = vector.extract_strided_slice %10 {offsets = [0, 0, 28], sizes = [8, 8, 4], strides = [1, 1, 1]} : vector<8x8x32xf32> to vector<8x8x4xf32>
    %119 = vector.extract_strided_slice %11 {offsets = [0, 0, 28], sizes = [8, 8, 4], strides = [1, 1, 1]} : vector<8x8x32xf32> to vector<8x8x4xf32>
    %120 = vector.extract_strided_slice %12 {offsets = [0, 0, 28], sizes = [8, 8, 4], strides = [1, 1, 1]} : vector<8x8x32xf32> to vector<8x8x4xf32>
    "tpu.trace_start"() <{level = 10 : i32, message = "bqd,bkd->bqk"}> : () -> ()
    %cst_35 = arith.constant dense<0.000000e+00> : vector<8x8x8xf32>
    %121 = tpu.matmul %118, %119, %cst_35 {dimension_numbers = #tpu.dot_dimension_numbers<[2], [2], [1], [1], [0, 0, 0, 1, 1, 1], [0], [0]>} : vector<8x8x4xf32>, vector<8x8x4xf32>, vector<8x8x8xf32> -> vector<8x8x8xf32>
    "tpu.trace_stop"() : () -> ()
    %cst_36 = arith.constant dense<0xFF800000> : vector<8x8xf32>
    %122 = vector.multi_reduction <maximumf>, %121, %cst_36 [2] : vector<8x8x8xf32> to vector<8x8xf32>
    %123 = vector.shape_cast %122 : vector<8x8xf32> to vector<8x8x1xf32>
    %124 = vector.broadcast %123 : vector<8x8x1xf32> to vector<8x8x8xf32>
    %125 = arith.subf %121, %124 : vector<8x8x8xf32>
    %126 = math.exp %125 : vector<8x8x8xf32>
    %cst_37 = arith.constant dense<0.000000e+00> : vector<8x8xf32>
    %127 = vector.multi_reduction <add>, %126, %cst_37 [2] : vector<8x8x8xf32> to vector<8x8xf32>
    %128 = vector.shape_cast %127 : vector<8x8xf32> to vector<8x8x1xf32>
    %129 = tpu.reciprocal %128 {approx = true} : vector<8x8x1xf32> -> vector<8x8x1xf32>
    %130 = vector.broadcast %129 : vector<8x8x1xf32> to vector<8x8x8xf32>
    %131 = arith.mulf %126, %130 : vector<8x8x8xf32>
    "tpu.trace_start"() <{level = 10 : i32, message = "bqk,bkd->bqd"}> : () -> ()
    %cst_38 = arith.constant dense<0.000000e+00> : vector<8x8x4xf32>
    %132 = tpu.matmul %131, %120, %cst_38 {dimension_numbers = #tpu.dot_dimension_numbers<[2], [1], [1], [2], [0, 0, 0, 1, 1, 2], [0], [0]>} : vector<8x8x8xf32>, vector<8x8x4xf32>, vector<8x8x4xf32> -> vector<8x8x4xf32>
    "tpu.trace_stop"() : () -> ()
    %133 = tpu.concatenate %27, %42, %57, %72, %87, %102, %117, %132 in 2 : vector<8x8x4xf32>, vector<8x8x4xf32>, vector<8x8x4xf32>, vector<8x8x4xf32>, vector<8x8x4xf32>, vector<8x8x4xf32>, vector<8x8x4xf32>, vector<8x8x4xf32> -> vector<8x8x32xf32>
    %134 = vector.shape_cast %133 : vector<8x8x32xf32> to vector<64x32xf32>
    %c0_39 = arith.constant 0 : index
    %c0_40 = arith.constant 0 : index
    %135 = vector.load %arg4[%c0_39, %c0_40] : memref<32x32xf32, #tpu.memory_space<vmem>>, vector<32x32xf32>
    %cst_41 = arith.constant dense<0.000000e+00> : vector<64x32xf32>
    %136 = tpu.matmul %134, %135, %cst_41 {dimension_numbers = #tpu.dot_dimension_numbers<[1], [0], [0], [1], [0, 0, 1, 1], [], []>} : vector<64x32xf32>, vector<32x32xf32>, vector<64x32xf32> -> vector<64x32xf32>
    %c0_42 = arith.constant 0 : index
    %c0_43 = arith.constant 0 : index
    %137 = vector.load %arg5[%c0_42, %c0_43] : memref<1x32xf32, #tpu.memory_space<vmem>>, vector<1x32xf32>
    %138 = vector.broadcast %137 : vector<1x32xf32> to vector<64x32xf32>
    %139 = arith.addf %136, %138 : vector<64x32xf32>
    %140 = vector.shape_cast %139 : vector<64x32xf32> to vector<8x8x32xf32>
    %141 = vector.extract_strided_slice %140 {offsets = [0, 0, 0], sizes = [8, 1, 32], strides = [1, 1, 1]} : vector<8x8x32xf32> to vector<8x1x32xf32>
    %142 = vector.shape_cast %141 : vector<8x1x32xf32> to vector<8x32xf32>
    %143 = vector.extract_strided_slice %140 {offsets = [0, 1, 0], sizes = [8, 1, 32], strides = [1, 1, 1]} : vector<8x8x32xf32> to vector<8x1x32xf32>
    %144 = vector.shape_cast %143 : vector<8x1x32xf32> to vector<8x32xf32>
    %145 = vector.extract_strided_slice %140 {offsets = [0, 2, 0], sizes = [8, 1, 32], strides = [1, 1, 1]} : vector<8x8x32xf32> to vector<8x1x32xf32>
    %146 = vector.shape_cast %145 : vector<8x1x32xf32> to vector<8x32xf32>
    %147 = vector.extract_strided_slice %140 {offsets = [0, 3, 0], sizes = [8, 1, 32], strides = [1, 1, 1]} : vector<8x8x32xf32> to vector<8x1x32xf32>
    %148 = vector.shape_cast %147 : vector<8x1x32xf32> to vector<8x32xf32>
    %149 = vector.extract_strided_slice %140 {offsets = [0, 4, 0], sizes = [8, 1, 32], strides = [1, 1, 1]} : vector<8x8x32xf32> to vector<8x1x32xf32>
    %150 = vector.shape_cast %149 : vector<8x1x32xf32> to vector<8x32xf32>
    %151 = vector.extract_strided_slice %140 {offsets = [0, 5, 0], sizes = [8, 1, 32], strides = [1, 1, 1]} : vector<8x8x32xf32> to vector<8x1x32xf32>
    %152 = vector.shape_cast %151 : vector<8x1x32xf32> to vector<8x32xf32>
    %153 = vector.extract_strided_slice %140 {offsets = [0, 6, 0], sizes = [8, 1, 32], strides = [1, 1, 1]} : vector<8x8x32xf32> to vector<8x1x32xf32>
    %154 = vector.shape_cast %153 : vector<8x1x32xf32> to vector<8x32xf32>
    %155 = vector.extract_strided_slice %140 {offsets = [0, 7, 0], sizes = [8, 1, 32], strides = [1, 1, 1]} : vector<8x8x32xf32> to vector<8x1x32xf32>
    %156 = vector.shape_cast %155 : vector<8x1x32xf32> to vector<8x32xf32>
    %157 = tpu.concatenate %142, %144, %146, %148, %150, %152, %154, %156 in 1 : vector<8x32xf32>, vector<8x32xf32>, vector<8x32xf32>, vector<8x32xf32>, vector<8x32xf32>, vector<8x32xf32>, vector<8x32xf32>, vector<8x32xf32> -> vector<8x256xf32>
    %c0_44 = arith.constant 0 : index
    %c0_45 = arith.constant 0 : index
    %158 = vector.load %arg6[%c0_44, %c0_45] : memref<256x128xf32, #tpu.memory_space<vmem>>, vector<256x128xf32>
    %cst_46 = arith.constant dense<0.000000e+00> : vector<8x128xf32>
    %159 = tpu.matmul %157, %158, %cst_46 {dimension_numbers = #tpu.dot_dimension_numbers<[1], [0], [0], [1], [0, 0, 1, 1], [], []>} : vector<8x256xf32>, vector<256x128xf32>, vector<8x128xf32> -> vector<8x128xf32>
    %c0_47 = arith.constant 0 : index
    %c0_48 = arith.constant 0 : index
    %160 = vector.load %arg7[%c0_47, %c0_48] : memref<1x128xf32, #tpu.memory_space<vmem>>, vector<1x128xf32>
    %161 = vector.broadcast %160 : vector<1x128xf32> to vector<8x128xf32>
    %162 = arith.addf %159, %161 : vector<8x128xf32>
    %163 = math.tanh %162 : vector<8x128xf32>
    %c0_49 = arith.constant 0 : index
    %c0_50 = arith.constant 0 : index
    %164 = vector.load %arg8[%c0_49, %c0_50] : memref<128x128xf32, #tpu.memory_space<vmem>>, vector<128x128xf32>
    %cst_51 = arith.constant dense<0.000000e+00> : vector<8x128xf32>
    %165 = tpu.matmul %163, %164, %cst_51 {dimension_numbers = #tpu.dot_dimension_numbers<[1], [0], [0], [1], [0, 0, 1, 1], [], []>} : vector<8x128xf32>, vector<128x128xf32>, vector<8x128xf32> -> vector<8x128xf32>
    %c0_52 = arith.constant 0 : index
    %c0_53 = arith.constant 0 : index
    %166 = vector.load %arg9[%c0_52, %c0_53] : memref<1x128xf32, #tpu.memory_space<vmem>>, vector<1x128xf32>
    %167 = vector.broadcast %166 : vector<1x128xf32> to vector<8x128xf32>
    %168 = arith.addf %165, %167 : vector<8x128xf32>
    %c0_54 = arith.constant 0 : index
    %c0_55 = arith.constant 0 : index
    %169 = vector.load %arg10[%c0_54, %c0_55] : memref<8x128xf32, #tpu.memory_space<vmem>>, vector<8x128xf32>
    tpu.vector_store %arg10[%c0_54, %c0_55], %168 {strides = array<i32>} : memref<8x128xf32, #tpu.memory_space<vmem>>, vector<8x128xf32>,
    return
  }
  func.func @transform_0(%arg0: i32) -> (i32, i32, i32) {
    %c0_i32 = arith.constant 0 : i32
    %c0_i32_0 = arith.constant 0 : i32
    %c0_i32_1 = arith.constant 0 : i32
    return %arg0, %c0_i32, %c0_i32_0 : i32, i32, i32
  }
  func.func @transform_1(%arg0: i32) -> (i32, i32) {
    %c0_i32 = arith.constant 0 : i32
    %c0_i32_0 = arith.constant 0 : i32
    %c0_i32_1 = arith.constant 0 : i32
    return %c0_i32, %c0_i32_0 : i32, i32
  }
  func.func @transform_2(%arg0: i32) -> (i32, i32) {
    %c0_i32 = arith.constant 0 : i32
    %c0_i32_0 = arith.constant 0 : i32
    %c0_i32_1 = arith.constant 0 : i32
    return %c0_i32, %c0_i32_0 : i32, i32
  }
  func.func @transform_3(%arg0: i32) -> (i32, i32) {
    %c0_i32 = arith.constant 0 : i32
    %c0_i32_0 = arith.constant 0 : i32
    %c0_i32_1 = arith.constant 0 : i32
    return %c0_i32, %c0_i32_0 : i32, i32
  }
  func.func @transform_4(%arg0: i32) -> (i32, i32) {
    %c0_i32 = arith.constant 0 : i32
    %c0_i32_0 = arith.constant 0 : i32
    %c0_i32_1 = arith.constant 0 : i32
    return %c0_i32, %c0_i32_0 : i32, i32
  }
  func.func @transform_5(%arg0: i32) -> (i32, i32) {
    %c0_i32 = arith.constant 0 : i32
    %c0_i32_0 = arith.constant 0 : i32
    %c0_i32_1 = arith.constant 0 : i32
    return %c0_i32, %c0_i32_0 : i32, i32
  }
  func.func @transform_6(%arg0: i32) -> (i32, i32) {
    %c0_i32 = arith.constant 0 : i32
    %c0_i32_0 = arith.constant 0 : i32
    %c0_i32_1 = arith.constant 0 : i32
    return %c0_i32, %c0_i32_0 : i32, i32
  }
  func.func @transform_7(%arg0: i32) -> (i32, i32) {
    %c0_i32 = arith.constant 0 : i32
    %c0_i32_0 = arith.constant 0 : i32
    %c0_i32_1 = arith.constant 0 : i32
    return %c0_i32, %c0_i32_0 : i32, i32
  }
  func.func @transform_8(%arg0: i32) -> (i32, i32) {
    %c0_i32 = arith.constant 0 : i32
    %c0_i32_0 = arith.constant 0 : i32
    %c0_i32_1 = arith.constant 0 : i32
    return %c0_i32, %c0_i32_0 : i32, i32
  }
  func.func @transform_9(%arg0: i32) -> (i32, i32) {
    %c0_i32 = arith.constant 0 : i32
    %c0_i32_0 = arith.constant 0 : i32
    return %arg0, %c0_i32 : i32, i32
  }
}

</mosaic_0001>

<llo_original>
// kernel: tpu_custom_call.1
$region0: #{tpu_custom_call.1}
  #allocation0 [shape = 'u32[]', space=smem, size = 0x4, offset = 0x4, fixed_abs, tag = 'smem constant byte address 0x4 - core index']
  #allocation1 [shape = 'u32[72,128]{1,0:T(1,128)}', space=vmem, size = 0x9000, scoped, tag = 'internal scratch']
  %s0 = inlined_call_operand.hbm [shape: f32[8,8,32], index: 0, kind: input, shape index: {}]
  %s1 = inlined_call_operand.hbm [shape: f32[32,128], index: 1, kind: input, shape index: {}]
  %s2 = inlined_call_operand.vmem [shape: f32[1,128], index: 2, kind: input, shape index: {}]
  %s3 = inlined_call_operand.hbm [shape: f32[32,32], index: 3, kind: input, shape index: {}]
  %s4 = inlined_call_operand.vmem [shape: f32[1,32], index: 4, kind: input, shape index: {}]
  %s5 = inlined_call_operand.hbm [shape: f32[256,128], index: 5, kind: input, shape index: {}]
  %s6 = inlined_call_operand.vmem [shape: f32[1,128], index: 6, kind: input, shape index: {}]
  %s7 = inlined_call_operand.hbm [shape: f32[128,128], index: 7, kind: input, shape index: {}]
  %s8 = inlined_call_operand.vmem [shape: f32[1,128], index: 8, kind: input, shape index: {}]
  %s9 = inlined_call_operand.hbm [shape: f32[8,128], index: 9, kind: output, shape index: {}]
  %s10 = sld [smem:[#allocation0]]
  $region66: #{tpu_custom_call.1} parent=0
    _
  %s12 = ssub.s32 1, %s10
  %s13 = scalar_select 0, %s12, %s10
  $region1: #{tpu_custom_call.1} parent=0
    #allocation2 [shape = 'u8[32768]{0}', space=vmem, size = 0x8000, scoped, tag = 'input window, operand 0, single buffered']
    #allocation3 [shape = 's32[1]{0}', space=sflag, size = 0x4, scoped, tag = 'scoped memory for tpu_custom_call.1']
    #allocation4 [shape = 's32[1]{0}', space=sflag, size = 0x4, scoped, tag = 'scoped memory for tpu_custom_call.1']
    #allocation5 [shape = 'u8[16384]{0}', space=vmem, size = 0x4000, scoped, tag = 'input window, operand 1, single buffered']
    #allocation6 [shape = 's32[1]{0}', space=sflag, size = 0x4, scoped, tag = 'scoped memory for tpu_custom_call.1']
    #allocation7 [shape = 'u8[16384]{0}', space=vmem, size = 0x4000, scoped, tag = 'input window, operand 3, single buffered']
    #allocation8 [shape = 'u8[131072]{0}', space=vmem, size = 0x20000, scoped, tag = 'input window, operand 5, single buffered']
    #allocation9 [shape = 's32[1]{0}', space=sflag, size = 0x4, scoped, tag = 'scoped memory for tpu_custom_call.1']
    #allocation10 [shape = 'u8[65536]{0}', space=vmem, size = 0x10000, scoped, tag = 'input window, operand 7, single buffered']
    #allocation11 [shape = 'u8[4096]{0}', space=vmem, size = 0x1000, scoped, tag = 'output window, operand 0, single buffered']
    %14 = vsyncpa [#allocation3], 0
    %15 = vsyncpa [#allocation6], 0
    %16 = vsyncpa [#allocation9], 0
    %17 = vsyncpa [#allocation4], 0
    // Predicated region
    $region2: #{tpu_custom_call.1} parent=1 // pred_check
      _
    $region3: #{tpu_custom_call.1} parent=1 // pred_check_branch
      %19 = sbr.rel (0) target = $region5
    $region4: #{tpu_custom_call.1} parent=1 // pred_region
      %21 = vsyncadd [#allocation3], 0
      %s22 = sshll.u32 %s0, 4
      %s23 = int_to_ptr.hbm [resolvable:$true] %s22
      %s24 = sshll.u32 [#allocation2], 4
      %s25 = int_to_ptr.vmem [resolvable:$true] %s24
      %30 = dma.hbm_to_vmem [thread:$0]  %s23, 1024, %s25, [#allocation3], 128, 128, 8
    $region5: #{tpu_custom_call.1} parent=1 // pred_fallthru
      _
    // Predicated region
    $region6: #{tpu_custom_call.1} parent=1 // pred_check
      _
    $region7: #{tpu_custom_call.1} parent=1 // pred_check_branch
      %32 = sbr.rel (0) target = $region9
    $region8: #{tpu_custom_call.1} parent=1 // pred_region
      %34 = vsyncadd [#allocation6], 0
      %s35 = sshll.u32 %s1, 4
      %s36 = int_to_ptr.hbm [resolvable:$true] %s35
      %s37 = sshll.u32 [#allocation5], 4
      %s38 = int_to_ptr.vmem [resolvable:$true] %s37
      %43 = dma.hbm_to_vmem [thread:$0]  %s36, 512, %s38, [#allocation6], 128, 128, 8
    $region9: #{tpu_custom_call.1} parent=1 // pred_fallthru
      _
    // Predicated region
    $region10: #{tpu_custom_call.1} parent=1 // pred_check
      _
    $region11: #{tpu_custom_call.1} parent=1 // pred_check_branch
      %45 = sbr.rel (0) target = $region13
    $region12: #{tpu_custom_call.1} parent=1 // pred_region
      _
    $region13: #{tpu_custom_call.1} parent=1 // pred_fallthru
      _
    // Predicated region
    $region14: #{tpu_custom_call.1} parent=1 // pred_check
      _
    $region15: #{tpu_custom_call.1} parent=1 // pred_check_branch
      %47 = sbr.rel (0) target = $region17
    $region16: #{tpu_custom_call.1} parent=1 // pred_region
      %49 = vsyncadd [#allocation6], 0
      %s50 = sshll.u32 %s3, 4
      %s51 = int_to_ptr.hbm [resolvable:$true] %s50
      %s52 = sshll.u32 [#allocation7], 4
      %s53 = int_to_ptr.vmem [resolvable:$true] %s52
      %58 = dma.hbm_to_vmem [thread:$0]  %s51, 512, %s53, [#allocation6], 128, 128, 8
    $region17: #{tpu_custom_call.1} parent=1 // pred_fallthru
      _
    // Predicated region
    $region18: #{tpu_custom_call.1} parent=1 // pred_check
      _
    $region19: #{tpu_custom_call.1} parent=1 // pred_check_branch
      %60 = sbr.rel (0) target = $region21
    $region20: #{tpu_custom_call.1} parent=1 // pred_region
      _
    $region21: #{tpu_custom_call.1} parent=1 // pred_fallthru
      _
    // Predicated region
    $region22: #{tpu_custom_call.1} parent=1 // pred_check
      _
    $region23: #{tpu_custom_call.1} parent=1 // pred_check_branch
      %62 = sbr.rel (0) target = $region25
    $region24: #{tpu_custom_call.1} parent=1 // pred_region
      %64 = vsyncadd [#allocation9], 0
      %s65 = sshll.u32 %s5, 4
      %s66 = int_to_ptr.hbm [resolvable:$true] %s65
      %s67 = sshll.u32 [#allocation8], 4
      %s68 = int_to_ptr.vmem [resolvable:$true] %s67
      %73 = dma.hbm_to_vmem [thread:$0]  %s66, 4096, %s68, [#allocation9], 128, 128, 8
    $region25: #{tpu_custom_call.1} parent=1 // pred_fallthru
      _
    // Predicated region
    $region26: #{tpu_custom_call.1} parent=1 // pred_check
      _
    $region27: #{tpu_custom_call.1} parent=1 // pred_check_branch
      %75 = sbr.rel (0) target = $region29
    $region28: #{tpu_custom_call.1} parent=1 // pred_region
      _
    $region29: #{tpu_custom_call.1} parent=1 // pred_fallthru
      _
    // Predicated region
    $region30: #{tpu_custom_call.1} parent=1 // pred_check
      _
    $region31: #{tpu_custom_call.1} parent=1 // pred_check_branch
      %77 = sbr.rel (0) target = $region33
    $region32: #{tpu_custom_call.1} parent=1 // pred_region
      %79 = vsyncadd [#allocation9], 0
      %s80 = sshll.u32 %s7, 4
      %s81 = int_to_ptr.hbm [resolvable:$true] %s80
      %s82 = sshll.u32 [#allocation10], 4
      %s83 = int_to_ptr.vmem [resolvable:$true] %s82
      %88 = dma.hbm_to_vmem [thread:$0]  %s81, 2048, %s83, [#allocation9], 128, 128, 8
    $region33: #{tpu_custom_call.1} parent=1 // pred_fallthru
      _
    // Predicated region
    $region34: #{tpu_custom_call.1} parent=1 // pred_check
      _
    $region35: #{tpu_custom_call.1} parent=1 // pred_check_branch
      %90 = sbr.rel (0) target = $region37
    $region36: #{tpu_custom_call.1} parent=1 // pred_region
      _
    $region37: #{tpu_custom_call.1} parent=1 // pred_fallthru
      _
    // Predicated region
    $region38: #{tpu_custom_call.1} parent=1 // pred_check
      _
    $region39: #{tpu_custom_call.1} parent=1 // pred_check_branch
      %92 = sbr.rel (0) target = $region41
    $region40: #{tpu_custom_call.1} parent=1 // pred_region
      %94 = dma.done [#allocation3], 1024
    $region41: #{tpu_custom_call.1} parent=1 // pred_fallthru
      _
    // Predicated region
    $region42: #{tpu_custom_call.1} parent=1 // pred_check
      _
    $region43: #{tpu_custom_call.1} parent=1 // pred_check_branch
      %96 = sbr.rel (0) target = $region45
    $region44: #{tpu_custom_call.1} parent=1 // pred_region
      %98 = dma.done [#allocation6], 512
    $region45: #{tpu_custom_call.1} parent=1 // pred_fallthru
      _
    // Predicated region
    $region46: #{tpu_custom_call.1} parent=1 // pred_check
      _
    $region47: #{tpu_custom_call.1} parent=1 // pred_check_branch
      %100 = sbr.rel (0) target = $region49
    $region48: #{tpu_custom_call.1} parent=1 // pred_region
      %102 = dma.done [#allocation6], 512
    $region49: #{tpu_custom_call.1} parent=1 // pred_fallthru
      _
    // Predicated region
    $region50: #{tpu_custom_call.1} parent=1 // pred_check
      _
    $region51: #{tpu_custom_call.1} parent=1 // pred_check_branch
      %104 = sbr.rel (0) target = $region53
    $region52: #{tpu_custom_call.1} parent=1 // pred_region
      %106 = dma.done [#allocation9], 4096
    $region53: #{tpu_custom_call.1} parent=1 // pred_fallthru
      _
    // Predicated region
    $region54: #{tpu_custom_call.1} parent=1 // pred_check
      _
    $region55: #{tpu_custom_call.1} parent=1 // pred_check_branch
      %108 = sbr.rel (0) target = $region57
    $region56: #{tpu_custom_call.1} parent=1 // pred_region
      %110 = dma.done [#allocation9], 2048
    $region57: #{tpu_custom_call.1} parent=1 // pred_fallthru
      _
    %v111 = vld [vmem:[#allocation2] sm:$0xff]
    %v112 = vld [vmem:[#allocation2 + $0x8] sm:$0xff]
    %v113 = vld [vmem:[#allocation2 + $0x10] sm:$0xff]
    %v114 = vld [vmem:[#allocation2 + $0x18] sm:$0xff]
    %v115 = vld [vmem:[#allocation2 + $0x20] sm:$0xff]
    %v116 = vld [vmem:[#allocation2 + $0x28] sm:$0xff]
    %v117 = vld [vmem:[#allocation2 + $0x30] sm:$0xff]
    %v118 = vld [vmem:[#allocation2 + $0x38] sm:$0xff]
    %v119 = vld [vmem:[#allocation5] sm:$0xff]
    %v120 = vld [vmem:[#allocation5 + $0x8] sm:$0xff]
    %v121 = vld [vmem:[#allocation5 + $0x10] sm:$0xff]
    %v122 = vld [vmem:[#allocation5 + $0x18] sm:$0xff]
    %v123 = vld [vmem:[%s2] sm:$0x1]
    %v125 = vperm.slane %v123, 0
    %vm127 = vcmask 261120
    %v129 = vsel %vm127, %v111, 0
    %v132 = vsel %vm127, %v112, 0
    %v135 = vsel %vm127, %v113, 0
    %v138 = vsel %vm127, %v114, 0
    %v141 = vsel %vm127, %v115, 0
    %v144 = vsel %vm127, %v116, 0
    %v147 = vsel %vm127, %v117, 0
    %v150 = vsel %vm127, %v118, 0
    %152 = vmatpush.msra.mxu0 0.0
    %153 = vmatpush.msra.mxu0 0.0
    %154 = vmatpush.msra.mxu0 0.0
    %155 = vmatpush.msra.mxu0 0.0
    %156 = vmatpush.msra.mxu0 0.0
    %157 = vmatpush.msra.mxu0 0.0
    %158 = vmatpush.msra.mxu0 0.0
    %159 = vmatpush.msra.mxu0 0.0
    %160 = vmatpush.msra.mxu0 0.0
    %161 = vmatpush.msra.mxu0 0.0
    %162 = vmatpush.msra.mxu0 0.0
    %163 = vmatpush.msra.mxu0 0.0
    %164 = vmatpush.msra.mxu0 %v122
    %165 = vmatpush.msra.mxu0 %v121
    %166 = vmatpush.msra.mxu0 %v120
    %167 = vmatpush.msra.mxu0 %v119
    %168 = vmatmul.f32.gmra.mxu0 %v129
    %v169 = vpop.f32.mrf.mxu0
    %v170 = vadd.f32 %v125, %v169
    %171 = vmatmul.f32.gmra.mxu0 %v132
    %v172 = vpop.f32.mrf.mxu0
    %v173 = vadd.f32 %v125, %v172
    %174 = vmatmul.f32.gmra.mxu0 %v135
    %v175 = vpop.f32.mrf.mxu0
    %v176 = vadd.f32 %v125, %v175
    %177 = vmatmul.f32.gmra.mxu0 %v138
    %v178 = vpop.f32.mrf.mxu0
    %v179 = vadd.f32 %v125, %v178
    %180 = vmatmul.f32.gmra.mxu0 %v141
    %v181 = vpop.f32.mrf.mxu0
    %v182 = vadd.f32 %v125, %v181
    %183 = vmatmul.f32.gmra.mxu0 %v144
    %v184 = vpop.f32.mrf.mxu0
    %v185 = vadd.f32 %v125, %v184
    %186 = vmatmul.f32.gmra.mxu0 %v147
    %v187 = vpop.f32.mrf.mxu0
    %v188 = vadd.f32 %v125, %v187
    %189 = vmatmul.f32.gmra.mxu0 %v150
    %v190 = vpop.f32.mrf.mxu0
    %v191 = vadd.f32 %v125, %v190
    %192 = vdwg.mxu0
    %v193 = vmul.f32 %v170, 0.35355338
    %v194 = vmul.f32 %v173, 0.35355338
    %v195 = vmul.f32 %v176, 0.35355338
    %v196 = vmul.f32 %v179, 0.35355338
    %v197 = vmul.f32 %v182, 0.35355338
    %v198 = vmul.f32 %v185, 0.35355338
    %v199 = vmul.f32 %v188, 0.35355338
    %v200 = vmul.f32 %v191, 0.35355338
    %202 = vrot.lane.b32.xlu0 %v170, 96
    %v203 = vpop.permute.xlu0 %202
    %vm204 = vcmask 31744
    %v206 = vsel %vm204, %v193, 0
    %v208 = vsel %vm204, %v203, 0
    %210 = vmatpush.xpose.msra.mxu0 0.0
    %211 = vmatpush.xpose.msra.mxu0 0.0
    %212 = vmatpush.xpose.msra.mxu0 0.0
    %213 = vmatpush.xpose.msra.mxu0 0.0
    %214 = vmatpush.xpose.msra.mxu0 0.0
    %215 = vmatpush.xpose.msra.mxu0 0.0
    %216 = vmatpush.xpose.msra.mxu0 0.0
    %217 = vmatpush.xpose.msra.mxu0 0.0
    %218 = vmatpush.xpose.msra.mxu0 0.0
    %219 = vmatpush.xpose.msra.mxu0 0.0
    %220 = vmatpush.xpose.msra.mxu0 0.0
    %221 = vmatpush.xpose.msra.mxu0 0.0
    %222 = vmatpush.xpose.msra.mxu0 0.0
    %223 = vmatpush.xpose.msra.mxu0 0.0
    %224 = vmatpush.xpose.msra.mxu0 0.0
    %225 = vmatpush.xpose.msra.mxu0 %v208
    %226 = vmatmul.f32.gmra.mxu0 %v206
    %v227 = vpop.f32.mrf.mxu0
    %v228 = vadd.f32 0.0, %v227
    %229 = vdwg.mxu0
    %231 = vrot.lane.b32.xlu0 %v173, 96
    %v232 = vpop.permute.xlu0 %231
    %v234 = vsel %vm204, %v194, 0
    %v236 = vsel %vm204, %v232, 0
    %238 = vmatpush.xpose.msra.mxu0 0.0
    %239 = vmatpush.xpose.msra.mxu0 0.0
    %240 = vmatpush.xpose.msra.mxu0 0.0
    %241 = vmatpush.xpose.msra.mxu0 0.0
    %242 = vmatpush.xpose.msra.mxu0 0.0
    %243 = vmatpush.xpose.msra.mxu0 0.0
    %244 = vmatpush.xpose.msra.mxu0 0.0
    %245 = vmatpush.xpose.msra.mxu0 0.0
    %246 = vmatpush.xpose.msra.mxu0 0.0
    %247 = vmatpush.xpose.msra.mxu0 0.0
    %248 = vmatpush.xpose.msra.mxu0 0.0
    %249 = vmatpush.xpose.msra.mxu0 0.0
    %250 = vmatpush.xpose.msra.mxu0 0.0
    %251 = vmatpush.xpose.msra.mxu0 0.0
    %252 = vmatpush.xpose.msra.mxu0 0.0
    %253 = vmatpush.xpose.msra.mxu0 %v236
    %254 = vmatmul.f32.gmra.mxu0 %v234
    %v255 = vpop.f32.mrf.mxu0
    %v256 = vadd.f32 0.0, %v255
    %257 = vdwg.mxu0
    %259 = vrot.lane.b32.xlu0 %v176, 96
    %v260 = vpop.permute.xlu0 %259
    %v262 = vsel %vm204, %v195, 0
    %v264 = vsel %vm204, %v260, 0
    %266 = vmatpush.xpose.msra.mxu0 0.0
    %267 = vmatpush.xpose.msra.mxu0 0.0
    %268 = vmatpush.xpose.msra.mxu0 0.0
    %269 = vmatpush.xpose.msra.mxu0 0.0
    %270 = vmatpush.xpose.msra.mxu0 0.0
    %271 = vmatpush.xpose.msra.mxu0 0.0
    %272 = vmatpush.xpose.msra.mxu0 0.0
    %273 = vmatpush.xpose.msra.mxu0 0.0
    %274 = vmatpush.xpose.msra.mxu0 0.0
    %275 = vmatpush.xpose.msra.mxu0 0.0
    %276 = vmatpush.xpose.msra.mxu0 0.0
    %277 = vmatpush.xpose.msra.mxu0 0.0
    %278 = vmatpush.xpose.msra.mxu0 0.0
    %279 = vmatpush.xpose.msra.mxu0 0.0
    %280 = vmatpush.xpose.msra.mxu0 0.0
    %281 = vmatpush.xpose.msra.mxu0 %v264
    %282 = vmatmul.f32.gmra.mxu0 %v262
    %v283 = vpop.f32.mrf.mxu0
    %v284 = vadd.f32 0.0, %v283
    %285 = vdwg.mxu0
    %287 = vrot.lane.b32.xlu0 %v179, 96
    %v288 = vpop.permute.xlu0 %287
    %v290 = vsel %vm204, %v196, 0
    %v292 = vsel %vm204, %v288, 0
    %294 = vmatpush.xpose.msra.mxu0 0.0
    %295 = vmatpush.xpose.msra.mxu0 0.0
    %296 = vmatpush.xpose.msra.mxu0 0.0
    %297 = vmatpush.xpose.msra.mxu0 0.0
    %298 = vmatpush.xpose.msra.mxu0 0.0
    %299 = vmatpush.xpose.msra.mxu0 0.0
    %300 = vmatpush.xpose.msra.mxu0 0.0
    %301 = vmatpush.xpose.msra.mxu0 0.0
    %302 = vmatpush.xpose.msra.mxu0 0.0
    %303 = vmatpush.xpose.msra.mxu0 0.0
    %304 = vmatpush.xpose.msra.mxu0 0.0
    %305 = vmatpush.xpose.msra.mxu0 0.0
    %306 = vmatpush.xpose.msra.mxu0 0.0
    %307 = vmatpush.xpose.msra.mxu0 0.0
    %308 = vmatpush.xpose.msra.mxu0 0.0
    %309 = vmatpush.xpose.msra.mxu0 %v292
    %310 = vmatmul.f32.gmra.mxu0 %v290
    %v311 = vpop.f32.mrf.mxu0
    %v312 = vadd.f32 0.0, %v311
    %313 = vdwg.mxu0
    %315 = vrot.lane.b32.xlu0 %v182, 96
    %v316 = vpop.permute.xlu0 %315
    %v318 = vsel %vm204, %v197, 0
    %v320 = vsel %vm204, %v316, 0
    %322 = vmatpush.xpose.msra.mxu0 0.0
    %323 = vmatpush.xpose.msra.mxu0 0.0
    %324 = vmatpush.xpose.msra.mxu0 0.0
    %325 = vmatpush.xpose.msra.mxu0 0.0
    %326 = vmatpush.xpose.msra.mxu0 0.0
    %327 = vmatpush.xpose.msra.mxu0 0.0
    %328 = vmatpush.xpose.msra.mxu0 0.0
    %329 = vmatpush.xpose.msra.mxu0 0.0
    %330 = vmatpush.xpose.msra.mxu0 0.0
    %331 = vmatpush.xpose.msra.mxu0 0.0
    %332 = vmatpush.xpose.msra.mxu0 0.0
    %333 = vmatpush.xpose.msra.mxu0 0.0
    %334 = vmatpush.xpose.msra.mxu0 0.0
    %335 = vmatpush.xpose.msra.mxu0 0.0
    %336 = vmatpush.xpose.msra.mxu0 0.0
    %337 = vmatpush.xpose.msra.mxu0 %v320
    %338 = vmatmul.f32.gmra.mxu0 %v318
    %v339 = vpop.f32.mrf.mxu0
    %v340 = vadd.f32 0.0, %v339
    %341 = vdwg.mxu0
    %343 = vrot.lane.b32.xlu0 %v185, 96
    %v344 = vpop.permute.xlu0 %343
    %v346 = vsel %vm204, %v198, 0
    %v348 = vsel %vm204, %v344, 0
    %350 = vmatpush.xpose.msra.mxu0 0.0
    %351 = vmatpush.xpose.msra.mxu0 0.0
    %352 = vmatpush.xpose.msra.mxu0 0.0
    %353 = vmatpush.xpose.msra.mxu0 0.0
    %354 = vmatpush.xpose.msra.mxu0 0.0
    %355 = vmatpush.xpose.msra.mxu0 0.0
    %356 = vmatpush.xpose.msra.mxu0 0.0
    %357 = vmatpush.xpose.msra.mxu0 0.0
    %358 = vmatpush.xpose.msra.mxu0 0.0
    %359 = vmatpush.xpose.msra.mxu0 0.0
    %360 = vmatpush.xpose.msra.mxu0 0.0
    %361 = vmatpush.xpose.msra.mxu0 0.0
    %362 = vmatpush.xpose.msra.mxu0 0.0
    %363 = vmatpush.xpose.msra.mxu0 0.0
    %364 = vmatpush.xpose.msra.mxu0 0.0
    %365 = vmatpush.xpose.msra.mxu0 %v348
    %366 = vmatmul.f32.gmra.mxu0 %v346
    %v367 = vpop.f32.mrf.mxu0
    %v368 = vadd.f32 0.0, %v367
    %369 = vdwg.mxu0
    %371 = vrot.lane.b32.xlu0 %v188, 96
    %v372 = vpop.permute.xlu0 %371
    %v374 = vsel %vm204, %v199, 0
    %v376 = vsel %vm204, %v372, 0
    %378 = vmatpush.xpose.msra.mxu0 0.0
    %379 = vmatpush.xpose.msra.mxu0 0.0
    %380 = vmatpush.xpose.msra.mxu0 0.0
    %381 = vmatpush.xpose.msra.mxu0 0.0
    %382 = vmatpush.xpose.msra.mxu0 0.0
    %383 = vmatpush.xpose.msra.mxu0 0.0
    %384 = vmatpush.xpose.msra.mxu0 0.0
    %385 = vmatpush.xpose.msra.mxu0 0.0
    %386 = vmatpush.xpose.msra.mxu0 0.0
    %387 = vmatpush.xpose.msra.mxu0 0.0
    %388 = vmatpush.xpose.msra.mxu0 0.0
    %389 = vmatpush.xpose.msra.mxu0 0.0
    %390 = vmatpush.xpose.msra.mxu0 0.0
    %391 = vmatpush.xpose.msra.mxu0 0.0
    %392 = vmatpush.xpose.msra.mxu0 0.0
    %393 = vmatpush.xpose.msra.mxu0 %v376
    %394 = vmatmul.f32.gmra.mxu0 %v374
    %v395 = vpop.f32.mrf.mxu0
    %v396 = vadd.f32 0.0, %v395
    %397 = vdwg.mxu0
    %399 = vrot.lane.b32.xlu0 %v191, 96
    %v400 = vpop.permute.xlu0 %399
    %v402 = vsel %vm204, %v200, 0
    %v404 = vsel %vm204, %v400, 0
    %406 = vmatpush.xpose.msra.mxu0 0.0
    %407 = vmatpush.xpose.msra.mxu0 0.0
    %408 = vmatpush.xpose.msra.mxu0 0.0
    %409 = vmatpush.xpose.msra.mxu0 0.0
    %410 = vmatpush.xpose.msra.mxu0 0.0
    %411 = vmatpush.xpose.msra.mxu0 0.0
    %412 = vmatpush.xpose.msra.mxu0 0.0
    %413 = vmatpush.xpose.msra.mxu0 0.0
    %414 = vmatpush.xpose.msra.mxu0 0.0
    %415 = vmatpush.xpose.msra.mxu0 0.0
    %416 = vmatpush.xpose.msra.mxu0 0.0
    %417 = vmatpush.xpose.msra.mxu0 0.0
    %418 = vmatpush.xpose.msra.mxu0 0.0
    %419 = vmatpush.xpose.msra.mxu0 0.0
    %420 = vmatpush.xpose.msra.mxu0 0.0
    %421 = vmatpush.xpose.msra.mxu0 %v404
    %422 = vmatmul.f32.gmra.mxu0 %v402
    %v423 = vpop.f32.mrf.mxu0
    %v424 = vadd.f32 0.0, %v423
    %425 = vdwg.mxu0
    %vm426 = vcmask 64512
    %v427 = vsel %vm426, %v228, -inf
    %428 = vmax.xlane.f32.xlu0 %v427
    %v429 = vpop.xlane.xlu0 %428
    %v430 = vsel %vm426, %v256, -inf
    %431 = vmax.xlane.f32.xlu0 %v430
    %v432 = vpop.xlane.xlu0 %431
    %v433 = vsel %vm426, %v284, -inf
    %434 = vmax.xlane.f32.xlu0 %v433
    %v435 = vpop.xlane.xlu0 %434
    %v436 = vsel %vm426, %v312, -inf
    %437 = vmax.xlane.f32.xlu0 %v436
    %v438 = vpop.xlane.xlu0 %437
    %v439 = vsel %vm426, %v340, -inf
    %440 = vmax.xlane.f32.xlu0 %v439
    %v441 = vpop.xlane.xlu0 %440
    %v442 = vsel %vm426, %v368, -inf
    %443 = vmax.xlane.f32.xlu0 %v442
    %v444 = vpop.xlane.xlu0 %443
    %v445 = vsel %vm426, %v396, -inf
    %446 = vmax.xlane.f32.xlu0 %v445
    %v447 = vpop.xlane.xlu0 %446
    %v448 = vsel %vm426, %v424, -inf
    %449 = vmax.xlane.f32.xlu0 %v448
    %v450 = vpop.xlane.xlu0 %449
    %v451 = vsub.f32 %v228, %v429
    %v452 = vsub.f32 %v256, %v432
    %v453 = vsub.f32 %v284, %v435
    %v454 = vsub.f32 %v312, %v438
    %v455 = vsub.f32 %v340, %v441
    %v456 = vsub.f32 %v368, %v444
    %v457 = vsub.f32 %v396, %v447
    %v458 = vsub.f32 %v424, %v450
    %v459 = vmul.f32 %v451, 1.442695
    %v460 = vpow.pop %v459
    %v461 = vmul.f32 %v452, 1.442695
    %v462 = vpow.pop %v461
    %v463 = vmul.f32 %v453, 1.442695
    %v464 = vpow.pop %v463
    %v465 = vmul.f32 %v454, 1.442695
    %v466 = vpow.pop %v465
    %v467 = vmul.f32 %v455, 1.442695
    %v468 = vpow.pop %v467
    %v469 = vmul.f32 %v456, 1.442695
    %v470 = vpow.pop %v469
    %v471 = vmul.f32 %v457, 1.442695
    %v472 = vpow.pop %v471
    %v473 = vmul.f32 %v458, 1.442695
    %v474 = vpow.pop %v473
    %v475 = vsel %vm426, %v460, 0.0
    %476 = vadd.xlane.f32.xlu0 %v475
    %v477 = vpop.xlane.xlu0 %476
    %v478 = vsel %vm426, %v462, 0.0
    %479 = vadd.xlane.f32.xlu0 %v478
    %v480 = vpop.xlane.xlu0 %479
    %v481 = vsel %vm426, %v464, 0.0
    %482 = vadd.xlane.f32.xlu0 %v481
    %v483 = vpop.xlane.xlu0 %482
    %v484 = vsel %vm426, %v466, 0.0
    %485 = vadd.xlane.f32.xlu0 %v484
    %v486 = vpop.xlane.xlu0 %485
    %v487 = vsel %vm426, %v468, 0.0
    %488 = vadd.xlane.f32.xlu0 %v487
    %v489 = vpop.xlane.xlu0 %488
    %v490 = vsel %vm426, %v470, 0.0
    %491 = vadd.xlane.f32.xlu0 %v490
    %v492 = vpop.xlane.xlu0 %491
    %v493 = vsel %vm426, %v472, 0.0
    %494 = vadd.xlane.f32.xlu0 %v493
    %v495 = vpop.xlane.xlu0 %494
    %v496 = vsel %vm426, %v474, 0.0
    %497 = vadd.xlane.f32.xlu0 %v496
    %v498 = vpop.xlane.xlu0 %497
    %v499 = vrcp.pop %v477
    %v500 = vrcp.pop %v480
    %v501 = vrcp.pop %v483
    %v502 = vrcp.pop %v486
    %v503 = vrcp.pop %v489
    %v504 = vrcp.pop %v492
    %v505 = vrcp.pop %v495
    %v506 = vrcp.pop %v498
    %v507 = vmul.f32 %v460, %v499
    %v508 = vmul.f32 %v462, %v500
    %v509 = vmul.f32 %v464, %v501
    %v510 = vmul.f32 %v466, %v502
    %v511 = vmul.f32 %v468, %v503
    %v512 = vmul.f32 %v470, %v504
    %v513 = vmul.f32 %v472, %v505
    %v514 = vmul.f32 %v474, %v506
    %515 = vrot.lane.b32.xlu0 %v170, 64
    %v516 = vpop.permute.xlu0 %515
    %v519 = vsel %vm426, %v507, 0
    %521 = vmatpush.msra.mxu0 0.0
    %522 = vmatpush.msra.mxu0 0.0
    %523 = vmatpush.msra.mxu0 0.0
    %524 = vmatpush.msra.mxu0 0.0
    %525 = vmatpush.msra.mxu0 0.0
    %526 = vmatpush.msra.mxu0 0.0
    %527 = vmatpush.msra.mxu0 0.0
    %528 = vmatpush.msra.mxu0 0.0
    %529 = vmatpush.msra.mxu0 0.0
    %530 = vmatpush.msra.mxu0 0.0
    %531 = vmatpush.msra.mxu0 0.0
    %532 = vmatpush.msra.mxu0 0.0
    %533 = vmatpush.msra.mxu0 0.0
    %534 = vmatpush.msra.mxu0 0.0
    %535 = vmatpush.msra.mxu0 0.0
    %536 = vmatpush.msra.mxu0 %v516
    %537 = vmatmul.f32.gmra.mxu0 %v519
    %v538 = vpop.f32.mrf.mxu0
    %v539 = vadd.f32 0.0, %v538
    %540 = vdwg.mxu0
    %541 = vrot.lane.b32.xlu0 %v173, 64
    %v542 = vpop.permute.xlu0 %541
    %v545 = vsel %vm426, %v508, 0
    %547 = vmatpush.msra.mxu0 0.0
    %548 = vmatpush.msra.mxu0 0.0
    %549 = vmatpush.msra.mxu0 0.0
    %550 = vmatpush.msra.mxu0 0.0
    %551 = vmatpush.msra.mxu0 0.0
    %552 = vmatpush.msra.mxu0 0.0
    %553 = vmatpush.msra.mxu0 0.0
    %554 = vmatpush.msra.mxu0 0.0
    %555 = vmatpush.msra.mxu0 0.0
    %556 = vmatpush.msra.mxu0 0.0
    %557 = vmatpush.msra.mxu0 0.0
    %558 = vmatpush.msra.mxu0 0.0
    %559 = vmatpush.msra.mxu0 0.0
    %560 = vmatpush.msra.mxu0 0.0
    %561 = vmatpush.msra.mxu0 0.0
    %562 = vmatpush.msra.mxu0 %v542
    %563 = vmatmul.f32.gmra.mxu0 %v545
    %v564 = vpop.f32.mrf.mxu0
    %v565 = vadd.f32 0.0, %v564
    %566 = vdwg.mxu0
    %567 = vrot.lane.b32.xlu0 %v176, 64
    %v568 = vpop.permute.xlu0 %567
    %v571 = vsel %vm426, %v509, 0
    %573 = vmatpush.msra.mxu0 0.0
    %574 = vmatpush.msra.mxu0 0.0
    %575 = vmatpush.msra.mxu0 0.0
    %576 = vmatpush.msra.mxu0 0.0
    %577 = vmatpush.msra.mxu0 0.0
    %578 = vmatpush.msra.mxu0 0.0
    %579 = vmatpush.msra.mxu0 0.0
    %580 = vmatpush.msra.mxu0 0.0
    %581 = vmatpush.msra.mxu0 0.0
    %582 = vmatpush.msra.mxu0 0.0
    %583 = vmatpush.msra.mxu0 0.0
    %584 = vmatpush.msra.mxu0 0.0
    %585 = vmatpush.msra.mxu0 0.0
    %586 = vmatpush.msra.mxu0 0.0
    %587 = vmatpush.msra.mxu0 0.0
    %588 = vmatpush.msra.mxu0 %v568
    %589 = vmatmul.f32.gmra.mxu0 %v571
    %v590 = vpop.f32.mrf.mxu0
    %v591 = vadd.f32 0.0, %v590
    %592 = vdwg.mxu0
    %593 = vrot.lane.b32.xlu0 %v179, 64
    %v594 = vpop.permute.xlu0 %593
    %v597 = vsel %vm426, %v510, 0
    %599 = vmatpush.msra.mxu0 0.0
    %600 = vmatpush.msra.mxu0 0.0
    %601 = vmatpush.msra.mxu0 0.0
    %602 = vmatpush.msra.mxu0 0.0
    %603 = vmatpush.msra.mxu0 0.0
    %604 = vmatpush.msra.mxu0 0.0
    %605 = vmatpush.msra.mxu0 0.0
    %606 = vmatpush.msra.mxu0 0.0
    %607 = vmatpush.msra.mxu0 0.0
    %608 = vmatpush.msra.mxu0 0.0
    %609 = vmatpush.msra.mxu0 0.0
    %610 = vmatpush.msra.mxu0 0.0
    %611 = vmatpush.msra.mxu0 0.0
    %612 = vmatpush.msra.mxu0 0.0
    %613 = vmatpush.msra.mxu0 0.0
    %614 = vmatpush.msra.mxu0 %v594
    %615 = vmatmul.f32.gmra.mxu0 %v597
    %v616 = vpop.f32.mrf.mxu0
    %v617 = vadd.f32 0.0, %v616
    %618 = vdwg.mxu0
    %619 = vrot.lane.b32.xlu0 %v182, 64
    %v620 = vpop.permute.xlu0 %619
    %v623 = vsel %vm426, %v511, 0
    %625 = vmatpush.msra.mxu0 0.0
    %626 = vmatpush.msra.mxu0 0.0
    %627 = vmatpush.msra.mxu0 0.0
    %628 = vmatpush.msra.mxu0 0.0
    %629 = vmatpush.msra.mxu0 0.0
    %630 = vmatpush.msra.mxu0 0.0
    %631 = vmatpush.msra.mxu0 0.0
    %632 = vmatpush.msra.mxu0 0.0
    %633 = vmatpush.msra.mxu0 0.0
    %634 = vmatpush.msra.mxu0 0.0
    %635 = vmatpush.msra.mxu0 0.0
    %636 = vmatpush.msra.mxu0 0.0
    %637 = vmatpush.msra.mxu0 0.0
    %638 = vmatpush.msra.mxu0 0.0
    %639 = vmatpush.msra.mxu0 0.0
    %640 = vmatpush.msra.mxu0 %v620
    %641 = vmatmul.f32.gmra.mxu0 %v623
    %v642 = vpop.f32.mrf.mxu0
    %v643 = vadd.f32 0.0, %v642
    %644 = vdwg.mxu0
    %645 = vrot.lane.b32.xlu0 %v185, 64
    %v646 = vpop.permute.xlu0 %645
    %v649 = vsel %vm426, %v512, 0
    %651 = vmatpush.msra.mxu0 0.0
    %652 = vmatpush.msra.mxu0 0.0
    %653 = vmatpush.msra.mxu0 0.0
    %654 = vmatpush.msra.mxu0 0.0
    %655 = vmatpush.msra.mxu0 0.0
    %656 = vmatpush.msra.mxu0 0.0
    %657 = vmatpush.msra.mxu0 0.0
    %658 = vmatpush.msra.mxu0 0.0
    %659 = vmatpush.msra.mxu0 0.0
    %660 = vmatpush.msra.mxu0 0.0
    %661 = vmatpush.msra.mxu0 0.0
    %662 = vmatpush.msra.mxu0 0.0
    %663 = vmatpush.msra.mxu0 0.0
    %664 = vmatpush.msra.mxu0 0.0
    %665 = vmatpush.msra.mxu0 0.0
    %666 = vmatpush.msra.mxu0 %v646
    %667 = vmatmul.f32.gmra.mxu0 %v649
    %v668 = vpop.f32.mrf.mxu0
    %v669 = vadd.f32 0.0, %v668
    %670 = vdwg.mxu0
    %671 = vrot.lane.b32.xlu0 %v188, 64
    %v672 = vpop.permute.xlu0 %671
    %v675 = vsel %vm426, %v513, 0
    %677 = vmatpush.msra.mxu0 0.0
    %678 = vmatpush.msra.mxu0 0.0
    %679 = vmatpush.msra.mxu0 0.0
    %680 = vmatpush.msra.mxu0 0.0
    %681 = vmatpush.msra.mxu0 0.0
    %682 = vmatpush.msra.mxu0 0.0
    %683 = vmatpush.msra.mxu0 0.0
    %684 = vmatpush.msra.mxu0 0.0
    %685 = vmatpush.msra.mxu0 0.0
    %686 = vmatpush.msra.mxu0 0.0
    %687 = vmatpush.msra.mxu0 0.0
    %688 = vmatpush.msra.mxu0 0.0
    %689 = vmatpush.msra.mxu0 0.0
    %690 = vmatpush.msra.mxu0 0.0
    %691 = vmatpush.msra.mxu0 0.0
    %692 = vmatpush.msra.mxu0 %v672
    %693 = vmatmul.f32.gmra.mxu0 %v675
    %v694 = vpop.f32.mrf.mxu0
    %v695 = vadd.f32 0.0, %v694
    %696 = vdwg.mxu0
    %697 = vrot.lane.b32.xlu0 %v191, 64
    %v698 = vpop.permute.xlu0 %697
    %v701 = vsel %vm426, %v514, 0
    %703 = vmatpush.msra.mxu0 0.0
    %704 = vmatpush.msra.mxu0 0.0
    %705 = vmatpush.msra.mxu0 0.0
    %706 = vmatpush.msra.mxu0 0.0
    %707 = vmatpush.msra.mxu0 0.0
    %708 = vmatpush.msra.mxu0 0.0
    %709 = vmatpush.msra.mxu0 0.0
    %710 = vmatpush.msra.mxu0 0.0
    %711 = vmatpush.msra.mxu0 0.0
    %712 = vmatpush.msra.mxu0 0.0
    %713 = vmatpush.msra.mxu0 0.0
    %714 = vmatpush.msra.mxu0 0.0
    %715 = vmatpush.msra.mxu0 0.0
    %716 = vmatpush.msra.mxu0 0.0
    %717 = vmatpush.msra.mxu0 0.0
    %718 = vmatpush.msra.mxu0 %v698
    %719 = vmatmul.f32.gmra.mxu0 %v701
    %v720 = vpop.f32.mrf.mxu0
    %v721 = vadd.f32 0.0, %v720
    %722 = vdwg.mxu0
    %723 = vrot.lane.b32.xlu0 %v193, 124
    %v724 = vpop.permute.xlu0 %723
    %725 = vrot.lane.b32.xlu0 %v170, 92
    %v726 = vpop.permute.xlu0 %725
    %v727 = vsel %vm204, %v724, 0
    %v729 = vsel %vm204, %v726, 0
    %731 = vmatpush.xpose.msra.mxu0 0.0
    %732 = vmatpush.xpose.msra.mxu0 0.0
    %733 = vmatpush.xpose.msra.mxu0 0.0
    %734 = vmatpush.xpose.msra.mxu0 0.0
    %735 = vmatpush.xpose.msra.mxu0 0.0
    %736 = vmatpush.xpose.msra.mxu0 0.0
    %737 = vmatpush.xpose.msra.mxu0 0.0
    %738 = vmatpush.xpose.msra.mxu0 0.0
    %739 = vmatpush.xpose.msra.mxu0 0.0
    %740 = vmatpush.xpose.msra.mxu0 0.0
    %741 = vmatpush.xpose.msra.mxu0 0.0
    %742 = vmatpush.xpose.msra.mxu0 0.0
    %743 = vmatpush.xpose.msra.mxu0 0.0
    %744 = vmatpush.xpose.msra.mxu0 0.0
    %745 = vmatpush.xpose.msra.mxu0 0.0
    %746 = vmatpush.xpose.msra.mxu0 %v729
    %747 = vmatmul.f32.gmra.mxu0 %v727
    %v748 = vpop.f32.mrf.mxu0
    %v749 = vadd.f32 0.0, %v748
    %750 = vdwg.mxu0
    %751 = vrot.lane.b32.xlu0 %v194, 124
    %v752 = vpop.permute.xlu0 %751
    %753 = vrot.lane.b32.xlu0 %v173, 92
    %v754 = vpop.permute.xlu0 %753
    %v755 = vsel %vm204, %v752, 0
    %v757 = vsel %vm204, %v754, 0
    %759 = vmatpush.xpose.msra.mxu0 0.0
    %760 = vmatpush.xpose.msra.mxu0 0.0
    %761 = vmatpush.xpose.msra.mxu0 0.0
    %762 = vmatpush.xpose.msra.mxu0 0.0
    %763 = vmatpush.xpose.msra.mxu0 0.0
    %764 = vmatpush.xpose.msra.mxu0 0.0
    %765 = vmatpush.xpose.msra.mxu0 0.0
    %766 = vmatpush.xpose.msra.mxu0 0.0
    %767 = vmatpush.xpose.msra.mxu0 0.0
    %768 = vmatpush.xpose.msra.mxu0 0.0
    %769 = vmatpush.xpose.msra.mxu0 0.0
    %770 = vmatpush.xpose.msra.mxu0 0.0
    %771 = vmatpush.xpose.msra.mxu0 0.0
    %772 = vmatpush.xpose.msra.mxu0 0.0
    %773 = vmatpush.xpose.msra.mxu0 0.0
    %774 = vmatpush.xpose.msra.mxu0 %v757
    %775 = vmatmul.f32.gmra.mxu0 %v755
    %v776 = vpop.f32.mrf.mxu0
    %v777 = vadd.f32 0.0, %v776
    %778 = vdwg.mxu0
    %779 = vrot.lane.b32.xlu0 %v195, 124
    %v780 = vpop.permute.xlu0 %779
    %781 = vrot.lane.b32.xlu0 %v176, 92
    %v782 = vpop.permute.xlu0 %781
    %v783 = vsel %vm204, %v780, 0
    %v785 = vsel %vm204, %v782, 0
    %787 = vmatpush.xpose.msra.mxu0 0.0
    %788 = vmatpush.xpose.msra.mxu0 0.0
    %789 = vmatpush.xpose.msra.mxu0 0.0
    %790 = vmatpush.xpose.msra.mxu0 0.0
    %791 = vmatpush.xpose.msra.mxu0 0.0
    %792 = vmatpush.xpose.msra.mxu0 0.0
    %793 = vmatpush.xpose.msra.mxu0 0.0
    %794 = vmatpush.xpose.msra.mxu0 0.0
    %795 = vmatpush.xpose.msra.mxu0 0.0
    %796 = vmatpush.xpose.msra.mxu0 0.0
    %797 = vmatpush.xpose.msra.mxu0 0.0
    %798 = vmatpush.xpose.msra.mxu0 0.0
    %799 = vmatpush.xpose.msra.mxu0 0.0
    %800 = vmatpush.xpose.msra.mxu0 0.0
    %801 = vmatpush.xpose.msra.mxu0 0.0
    %802 = vmatpush.xpose.msra.mxu0 %v785
    %803 = vmatmul.f32.gmra.mxu0 %v783
    %v804 = vpop.f32.mrf.mxu0
    %v805 = vadd.f32 0.0, %v804
    %806 = vdwg.mxu0
    %807 = vrot.lane.b32.xlu0 %v196, 124
    %v808 = vpop.permute.xlu0 %807
    %809 = vrot.lane.b32.xlu0 %v179, 92
    %v810 = vpop.permute.xlu0 %809
    %v811 = vsel %vm204, %v808, 0
    %v813 = vsel %vm204, %v810, 0
    %815 = vmatpush.xpose.msra.mxu0 0.0
    %816 = vmatpush.xpose.msra.mxu0 0.0
    %817 = vmatpush.xpose.msra.mxu0 0.0
    %818 = vmatpush.xpose.msra.mxu0 0.0
    %819 = vmatpush.xpose.msra.mxu0 0.0
    %820 = vmatpush.xpose.msra.mxu0 0.0
    %821 = vmatpush.xpose.msra.mxu0 0.0
    %822 = vmatpush.xpose.msra.mxu0 0.0
    %823 = vmatpush.xpose.msra.mxu0 0.0
    %824 = vmatpush.xpose.msra.mxu0 0.0
    %825 = vmatpush.xpose.msra.mxu0 0.0
    %826 = vmatpush.xpose.msra.mxu0 0.0
    %827 = vmatpush.xpose.msra.mxu0 0.0
    %828 = vmatpush.xpose.msra.mxu0 0.0
    %829 = vmatpush.xpose.msra.mxu0 0.0
    %830 = vmatpush.xpose.msra.mxu0 %v813
    %831 = vmatmul.f32.gmra.mxu0 %v811
    %v832 = vpop.f32.mrf.mxu0
    %v833 = vadd.f32 0.0, %v832
    %834 = vdwg.mxu0
    %835 = vrot.lane.b32.xlu0 %v197, 124
    %v836 = vpop.permute.xlu0 %835
    %837 = vrot.lane.b32.xlu0 %v182, 92
    %v838 = vpop.permute.xlu0 %837
    %v839 = vsel %vm204, %v836, 0
    %v841 = vsel %vm204, %v838, 0
    %843 = vmatpush.xpose.msra.mxu0 0.0
    %844 = vmatpush.xpose.msra.mxu0 0.0
    %845 = vmatpush.xpose.msra.mxu0 0.0
    %846 = vmatpush.xpose.msra.mxu0 0.0
    %847 = vmatpush.xpose.msra.mxu0 0.0
    %848 = vmatpush.xpose.msra.mxu0 0.0
    %849 = vmatpush.xpose.msra.mxu0 0.0
    %850 = vmatpush.xpose.msra.mxu0 0.0
    %851 = vmatpush.xpose.msra.mxu0 0.0
    %852 = vmatpush.xpose.msra.mxu0 0.0
    %853 = vmatpush.xpose.msra.mxu0 0.0
    %854 = vmatpush.xpose.msra.mxu0 0.0
    %855 = vmatpush.xpose.msra.mxu0 0.0
    %856 = vmatpush.xpose.msra.mxu0 0.0
    %857 = vmatpush.xpose.msra.mxu0 0.0
    %858 = vmatpush.xpose.msra.mxu0 %v841
    %859 = vmatmul.f32.gmra.mxu0 %v839
    %v860 = vpop.f32.mrf.mxu0
    %v861 = vadd.f32 0.0, %v860
    %862 = vdwg.mxu0
    %863 = vrot.lane.b32.xlu0 %v198, 124
    %v864 = vpop.permute.xlu0 %863
    %865 = vrot.lane.b32.xlu0 %v185, 92
    %v866 = vpop.permute.xlu0 %865
    %v867 = vsel %vm204, %v864, 0
    %v869 = vsel %vm204, %v866, 0
    %871 = vmatpush.xpose.msra.mxu0 0.0
    %872 = vmatpush.xpose.msra.mxu0 0.0
    %873 = vmatpush.xpose.msra.mxu0 0.0
    %874 = vmatpush.xpose.msra.mxu0 0.0
    %875 = vmatpush.xpose.msra.mxu0 0.0
    %876 = vmatpush.xpose.msra.mxu0 0.0
    %877 = vmatpush.xpose.msra.mxu0 0.0
    %878 = vmatpush.xpose.msra.mxu0 0.0
    %879 = vmatpush.xpose.msra.mxu0 0.0
    %880 = vmatpush.xpose.msra.mxu0 0.0
    %881 = vmatpush.xpose.msra.mxu0 0.0
    %882 = vmatpush.xpose.msra.mxu0 0.0
    %883 = vmatpush.xpose.msra.mxu0 0.0
    %884 = vmatpush.xpose.msra.mxu0 0.0
    %885 = vmatpush.xpose.msra.mxu0 0.0
    %886 = vmatpush.xpose.msra.mxu0 %v869
    %887 = vmatmul.f32.gmra.mxu0 %v867
    %v888 = vpop.f32.mrf.mxu0
    %v889 = vadd.f32 0.0, %v888
    %890 = vdwg.mxu0
    %891 = vrot.lane.b32.xlu0 %v199, 124
    %v892 = vpop.permute.xlu0 %891
    %893 = vrot.lane.b32.xlu0 %v188, 92
    %v894 = vpop.permute.xlu0 %893
    %v895 = vsel %vm204, %v892, 0
    %v897 = vsel %vm204, %v894, 0
    %899 = vmatpush.xpose.msra.mxu0 0.0
    %900 = vmatpush.xpose.msra.mxu0 0.0
    %901 = vmatpush.xpose.msra.mxu0 0.0
    %902 = vmatpush.xpose.msra.mxu0 0.0
    %903 = vmatpush.xpose.msra.mxu0 0.0
    %904 = vmatpush.xpose.msra.mxu0 0.0
    %905 = vmatpush.xpose.msra.mxu0 0.0
    %906 = vmatpush.xpose.msra.mxu0 0.0
    %907 = vmatpush.xpose.msra.mxu0 0.0
    %908 = vmatpush.xpose.msra.mxu0 0.0
    %909 = vmatpush.xpose.msra.mxu0 0.0
    %910 = vmatpush.xpose.msra.mxu0 0.0
    %911 = vmatpush.xpose.msra.mxu0 0.0
    %912 = vmatpush.xpose.msra.mxu0 0.0
    %913 = vmatpush.xpose.msra.mxu0 0.0
    %914 = vmatpush.xpose.msra.mxu0 %v897
    %915 = vmatmul.f32.gmra.mxu0 %v895
    %v916 = vpop.f32.mrf.mxu0
    %v917 = vadd.f32 0.0, %v916
    %918 = vdwg.mxu0
    %919 = vrot.lane.b32.xlu0 %v200, 124
    %v920 = vpop.permute.xlu0 %919
    %921 = vrot.lane.b32.xlu0 %v191, 92
    %v922 = vpop.permute.xlu0 %921
    %v923 = vsel %vm204, %v920, 0
    %v925 = vsel %vm204, %v922, 0
    %927 = vmatpush.xpose.msra.mxu0 0.0
    %928 = vmatpush.xpose.msra.mxu0 0.0
    %929 = vmatpush.xpose.msra.mxu0 0.0
    %930 = vmatpush.xpose.msra.mxu0 0.0
    %931 = vmatpush.xpose.msra.mxu0 0.0
    %932 = vmatpush.xpose.msra.mxu0 0.0
    %933 = vmatpush.xpose.msra.mxu0 0.0
    %934 = vmatpush.xpose.msra.mxu0 0.0
    %935 = vmatpush.xpose.msra.mxu0 0.0
    %936 = vmatpush.xpose.msra.mxu0 0.0
    %937 = vmatpush.xpose.msra.mxu0 0.0
    %938 = vmatpush.xpose.msra.mxu0 0.0
    %939 = vmatpush.xpose.msra.mxu0 0.0
    %940 = vmatpush.xpose.msra.mxu0 0.0
    %941 = vmatpush.xpose.msra.mxu0 0.0
    %942 = vmatpush.xpose.msra.mxu0 %v925
    %943 = vmatmul.f32.gmra.mxu0 %v923
    %v944 = vpop.f32.mrf.mxu0
    %v945 = vadd.f32 0.0, %v944
    %946 = vdwg.mxu0
    %v947 = vsel %vm426, %v749, -inf
    %948 = vmax.xlane.f32.xlu0 %v947
    %v949 = vpop.xlane.xlu0 %948
    %v950 = vsel %vm426, %v777, -inf
    %951 = vmax.xlane.f32.xlu0 %v950
    %v952 = vpop.xlane.xlu0 %951
    %v953 = vsel %vm426, %v805, -inf
    %954 = vmax.xlane.f32.xlu0 %v953
    %v955 = vpop.xlane.xlu0 %954
    %v956 = vsel %vm426, %v833, -inf
    %957 = vmax.xlane.f32.xlu0 %v956
    %v958 = vpop.xlane.xlu0 %957
    %v959 = vsel %vm426, %v861, -inf
    %960 = vmax.xlane.f32.xlu0 %v959
    %v961 = vpop.xlane.xlu0 %960
    %v962 = vsel %vm426, %v889, -inf
    %963 = vmax.xlane.f32.xlu0 %v962
    %v964 = vpop.xlane.xlu0 %963
    %v965 = vsel %vm426, %v917, -inf
    %966 = vmax.xlane.f32.xlu0 %v965
    %v967 = vpop.xlane.xlu0 %966
    %v968 = vsel %vm426, %v945, -inf
    %969 = vmax.xlane.f32.xlu0 %v968
    %v970 = vpop.xlane.xlu0 %969
    %v971 = vsub.f32 %v749, %v949
    %v972 = vsub.f32 %v777, %v952
    %v973 = vsub.f32 %v805, %v955
    %v974 = vsub.f32 %v833, %v958
    %v975 = vsub.f32 %v861, %v961
    %v976 = vsub.f32 %v889, %v964
    %v977 = vsub.f32 %v917, %v967
    %v978 = vsub.f32 %v945, %v970
    %v979 = vmul.f32 %v971, 1.442695
    %v980 = vpow.pop %v979
    %v981 = vmul.f32 %v972, 1.442695
    %v982 = vpow.pop %v981
    %v983 = vmul.f32 %v973, 1.442695
    %v984 = vpow.pop %v983
    %v985 = vmul.f32 %v974, 1.442695
    %v986 = vpow.pop %v985
    %v987 = vmul.f32 %v975, 1.442695
    %v988 = vpow.pop %v987
    %v989 = vmul.f32 %v976, 1.442695
    %v990 = vpow.pop %v989
    %v991 = vmul.f32 %v977, 1.442695
    %v992 = vpow.pop %v991
    %v993 = vmul.f32 %v978, 1.442695
    %v994 = vpow.pop %v993
    %v995 = vsel %vm426, %v980, 0.0
    %996 = vadd.xlane.f32.xlu0 %v995
    %v997 = vpop.xlane.xlu0 %996
    %v998 = vsel %vm426, %v982, 0.0
    %999 = vadd.xlane.f32.xlu0 %v998
    %v1000 = vpop.xlane.xlu0 %999
    %v1001 = vsel %vm426, %v984, 0.0
    %1002 = vadd.xlane.f32.xlu0 %v1001
    %v1003 = vpop.xlane.xlu0 %1002
    %v1004 = vsel %vm426, %v986, 0.0
    %1005 = vadd.xlane.f32.xlu0 %v1004
    %v1006 = vpop.xlane.xlu0 %1005
    %v1007 = vsel %vm426, %v988, 0.0
    %1008 = vadd.xlane.f32.xlu0 %v1007
    %v1009 = vpop.xlane.xlu0 %1008
    %v1010 = vsel %vm426, %v990, 0.0
    %1011 = vadd.xlane.f32.xlu0 %v1010
    %v1012 = vpop.xlane.xlu0 %1011
    %v1013 = vsel %vm426, %v992, 0.0
    %1014 = vadd.xlane.f32.xlu0 %v1013
    %v1015 = vpop.xlane.xlu0 %1014
    %v1016 = vsel %vm426, %v994, 0.0
    %1017 = vadd.xlane.f32.xlu0 %v1016
    %v1018 = vpop.xlane.xlu0 %1017
    %v1019 = vrcp.pop %v997
    %v1020 = vrcp.pop %v1000
    %v1021 = vrcp.pop %v1003
    %v1022 = vrcp.pop %v1006
    %v1023 = vrcp.pop %v1009
    %v1024 = vrcp.pop %v1012
    %v1025 = vrcp.pop %v1015
    %v1026 = vrcp.pop %v1018
    %v1027 = vmul.f32 %v980, %v1019
    %v1028 = vmul.f32 %v982, %v1020
    %v1029 = vmul.f32 %v984, %v1021
    %v1030 = vmul.f32 %v986, %v1022
    %v1031 = vmul.f32 %v988, %v1023
    %v1032 = vmul.f32 %v990, %v1024
    %v1033 = vmul.f32 %v992, %v1025
    %v1034 = vmul.f32 %v994, %v1026
    %1035 = vrot.lane.b32.xlu0 %v170, 60
    %v1036 = vpop.permute.xlu0 %1035
    %v1039 = vsel %vm426, %v1027, 0
    %1041 = vmatpush.msra.mxu0 0.0
    %1042 = vmatpush.msra.mxu0 0.0
    %1043 = vmatpush.msra.mxu0 0.0
    %1044 = vmatpush.msra.mxu0 0.0
    %1045 = vmatpush.msra.mxu0 0.0
    %1046 = vmatpush.msra.mxu0 0.0
    %1047 = vmatpush.msra.mxu0 0.0
    %1048 = vmatpush.msra.mxu0 0.0
    %1049 = vmatpush.msra.mxu0 0.0
    %1050 = vmatpush.msra.mxu0 0.0
    %1051 = vmatpush.msra.mxu0 0.0
    %1052 = vmatpush.msra.mxu0 0.0
    %1053 = vmatpush.msra.mxu0 0.0
    %1054 = vmatpush.msra.mxu0 0.0
    %1055 = vmatpush.msra.mxu0 0.0
    %1056 = vmatpush.msra.mxu0 %v1036
    %1057 = vmatmul.f32.gmra.mxu0 %v1039
    %v1058 = vpop.f32.mrf.mxu0
    %v1059 = vadd.f32 0.0, %v1058
    %1060 = vdwg.mxu0
    %1061 = vrot.lane.b32.xlu0 %v173, 60
    %v1062 = vpop.permute.xlu0 %1061
    %v1065 = vsel %vm426, %v1028, 0
    %1067 = vmatpush.msra.mxu0 0.0
    %1068 = vmatpush.msra.mxu0 0.0
    %1069 = vmatpush.msra.mxu0 0.0
    %1070 = vmatpush.msra.mxu0 0.0
    %1071 = vmatpush.msra.mxu0 0.0
    %1072 = vmatpush.msra.mxu0 0.0
    %1073 = vmatpush.msra.mxu0 0.0
    %1074 = vmatpush.msra.mxu0 0.0
    %1075 = vmatpush.msra.mxu0 0.0
    %1076 = vmatpush.msra.mxu0 0.0
    %1077 = vmatpush.msra.mxu0 0.0
    %1078 = vmatpush.msra.mxu0 0.0
    %1079 = vmatpush.msra.mxu0 0.0
    %1080 = vmatpush.msra.mxu0 0.0
    %1081 = vmatpush.msra.mxu0 0.0
    %1082 = vmatpush.msra.mxu0 %v1062
    %1083 = vmatmul.f32.gmra.mxu0 %v1065
    %v1084 = vpop.f32.mrf.mxu0
    %v1085 = vadd.f32 0.0, %v1084
    %1086 = vdwg.mxu0
    %1087 = vrot.lane.b32.xlu0 %v176, 60
    %v1088 = vpop.permute.xlu0 %1087
    %v1091 = vsel %vm426, %v1029, 0
    %1093 = vmatpush.msra.mxu0 0.0
    %1094 = vmatpush.msra.mxu0 0.0
    %1095 = vmatpush.msra.mxu0 0.0
    %1096 = vmatpush.msra.mxu0 0.0
    %1097 = vmatpush.msra.mxu0 0.0
    %1098 = vmatpush.msra.mxu0 0.0
    %1099 = vmatpush.msra.mxu0 0.0
    %1100 = vmatpush.msra.mxu0 0.0
    %1101 = vmatpush.msra.mxu0 0.0
    %1102 = vmatpush.msra.mxu0 0.0
    %1103 = vmatpush.msra.mxu0 0.0
    %1104 = vmatpush.msra.mxu0 0.0
    %1105 = vmatpush.msra.mxu0 0.0
    %1106 = vmatpush.msra.mxu0 0.0
    %1107 = vmatpush.msra.mxu0 0.0
    %1108 = vmatpush.msra.mxu0 %v1088
    %1109 = vmatmul.f32.gmra.mxu0 %v1091
    %v1110 = vpop.f32.mrf.mxu0
    %v1111 = vadd.f32 0.0, %v1110
    %1112 = vdwg.mxu0
    %1113 = vrot.lane.b32.xlu0 %v179, 60
    %v1114 = vpop.permute.xlu0 %1113
    %v1117 = vsel %vm426, %v1030, 0
    %1119 = vmatpush.msra.mxu0 0.0
    %1120 = vmatpush.msra.mxu0 0.0
    %1121 = vmatpush.msra.mxu0 0.0
    %1122 = vmatpush.msra.mxu0 0.0
    %1123 = vmatpush.msra.mxu0 0.0
    %1124 = vmatpush.msra.mxu0 0.0
    %1125 = vmatpush.msra.mxu0 0.0
    %1126 = vmatpush.msra.mxu0 0.0
    %1127 = vmatpush.msra.mxu0 0.0
    %1128 = vmatpush.msra.mxu0 0.0
    %1129 = vmatpush.msra.mxu0 0.0
    %1130 = vmatpush.msra.mxu0 0.0
    %1131 = vmatpush.msra.mxu0 0.0
    %1132 = vmatpush.msra.mxu0 0.0
    %1133 = vmatpush.msra.mxu0 0.0
    %1134 = vmatpush.msra.mxu0 %v1114
    %1135 = vmatmul.f32.gmra.mxu0 %v1117
    %v1136 = vpop.f32.mrf.mxu0
    %v1137 = vadd.f32 0.0, %v1136
    %1138 = vdwg.mxu0
    %1139 = vrot.lane.b32.xlu0 %v182, 60
    %v1140 = vpop.permute.xlu0 %1139
    %v1143 = vsel %vm426, %v1031, 0
    %1145 = vmatpush.msra.mxu0 0.0
    %1146 = vmatpush.msra.mxu0 0.0
    %1147 = vmatpush.msra.mxu0 0.0
    %1148 = vmatpush.msra.mxu0 0.0
    %1149 = vmatpush.msra.mxu0 0.0
    %1150 = vmatpush.msra.mxu0 0.0
    %1151 = vmatpush.msra.mxu0 0.0
    %1152 = vmatpush.msra.mxu0 0.0
    %1153 = vmatpush.msra.mxu0 0.0
    %1154 = vmatpush.msra.mxu0 0.0
    %1155 = vmatpush.msra.mxu0 0.0
    %1156 = vmatpush.msra.mxu0 0.0
    %1157 = vmatpush.msra.mxu0 0.0
    %1158 = vmatpush.msra.mxu0 0.0
    %1159 = vmatpush.msra.mxu0 0.0
    %1160 = vmatpush.msra.mxu0 %v1140
    %1161 = vmatmul.f32.gmra.mxu0 %v1143
    %v1162 = vpop.f32.mrf.mxu0
    %v1163 = vadd.f32 0.0, %v1162
    %1164 = vdwg.mxu0
    %1165 = vrot.lane.b32.xlu0 %v185, 60
    %v1166 = vpop.permute.xlu0 %1165
    %v1169 = vsel %vm426, %v1032, 0
    %1171 = vmatpush.msra.mxu0 0.0
    %1172 = vmatpush.msra.mxu0 0.0
    %1173 = vmatpush.msra.mxu0 0.0
    %1174 = vmatpush.msra.mxu0 0.0
    %1175 = vmatpush.msra.mxu0 0.0
    %1176 = vmatpush.msra.mxu0 0.0
    %1177 = vmatpush.msra.mxu0 0.0
    %1178 = vmatpush.msra.mxu0 0.0
    %1179 = vmatpush.msra.mxu0 0.0
    %1180 = vmatpush.msra.mxu0 0.0
    %1181 = vmatpush.msra.mxu0 0.0
    %1182 = vmatpush.msra.mxu0 0.0
    %1183 = vmatpush.msra.mxu0 0.0
    %1184 = vmatpush.msra.mxu0 0.0
    %1185 = vmatpush.msra.mxu0 0.0
    %1186 = vmatpush.msra.mxu0 %v1166
    %1187 = vmatmul.f32.gmra.mxu0 %v1169
    %v1188 = vpop.f32.mrf.mxu0
    %v1189 = vadd.f32 0.0, %v1188
    %1190 = vdwg.mxu0
    %1191 = vrot.lane.b32.xlu0 %v188, 60
    %v1192 = vpop.permute.xlu0 %1191
    %v1195 = vsel %vm426, %v1033, 0
    %1197 = vmatpush.msra.mxu0 0.0
    %1198 = vmatpush.msra.mxu0 0.0
    %1199 = vmatpush.msra.mxu0 0.0
    %1200 = vmatpush.msra.mxu0 0.0
    %1201 = vmatpush.msra.mxu0 0.0
    %1202 = vmatpush.msra.mxu0 0.0
    %1203 = vmatpush.msra.mxu0 0.0
    %1204 = vmatpush.msra.mxu0 0.0
    %1205 = vmatpush.msra.mxu0 0.0
    %1206 = vmatpush.msra.mxu0 0.0
    %1207 = vmatpush.msra.mxu0 0.0
    %1208 = vmatpush.msra.mxu0 0.0
    %1209 = vmatpush.msra.mxu0 0.0
    %1210 = vmatpush.msra.mxu0 0.0
    %1211 = vmatpush.msra.mxu0 0.0
    %1212 = vmatpush.msra.mxu0 %v1192
    %1213 = vmatmul.f32.gmra.mxu0 %v1195
    %v1214 = vpop.f32.mrf.mxu0
    %v1215 = vadd.f32 0.0, %v1214
    %1216 = vdwg.mxu0
    %1217 = vrot.lane.b32.xlu0 %v191, 60
    %v1218 = vpop.permute.xlu0 %1217
    %v1221 = vsel %vm426, %v1034, 0
    %1223 = vmatpush.msra.mxu0 0.0
    %1224 = vmatpush.msra.mxu0 0.0
    %1225 = vmatpush.msra.mxu0 0.0
    %1226 = vmatpush.msra.mxu0 0.0
    %1227 = vmatpush.msra.mxu0 0.0
    %1228 = vmatpush.msra.mxu0 0.0
    %1229 = vmatpush.msra.mxu0 0.0
    %1230 = vmatpush.msra.mxu0 0.0
    %1231 = vmatpush.msra.mxu0 0.0
    %1232 = vmatpush.msra.mxu0 0.0
    %1233 = vmatpush.msra.mxu0 0.0
    %1234 = vmatpush.msra.mxu0 0.0
    %1235 = vmatpush.msra.mxu0 0.0
    %1236 = vmatpush.msra.mxu0 0.0
    %1237 = vmatpush.msra.mxu0 0.0
    %1238 = vmatpush.msra.mxu0 %v1218
    %1239 = vmatmul.f32.gmra.mxu0 %v1221
    %v1240 = vpop.f32.mrf.mxu0
    %v1241 = vadd.f32 0.0, %v1240
    %1242 = vdwg.mxu0
    %1243 = vrot.lane.b32.xlu0 %v193, 120
    %v1244 = vpop.permute.xlu0 %1243
    %1245 = vrot.lane.b32.xlu0 %v170, 88
    %v1246 = vpop.permute.xlu0 %1245
    %v1247 = vsel %vm204, %v1244, 0
    %v1249 = vsel %vm204, %v1246, 0
    %1251 = vmatpush.xpose.msra.mxu0 0.0
    %1252 = vmatpush.xpose.msra.mxu0 0.0
    %1253 = vmatpush.xpose.msra.mxu0 0.0
    %1254 = vmatpush.xpose.msra.mxu0 0.0
    %1255 = vmatpush.xpose.msra.mxu0 0.0
    %1256 = vmatpush.xpose.msra.mxu0 0.0
    %1257 = vmatpush.xpose.msra.mxu0 0.0
    %1258 = vmatpush.xpose.msra.mxu0 0.0
    %1259 = vmatpush.xpose.msra.mxu0 0.0
    %1260 = vmatpush.xpose.msra.mxu0 0.0
    %1261 = vmatpush.xpose.msra.mxu0 0.0
    %1262 = vmatpush.xpose.msra.mxu0 0.0
    %1263 = vmatpush.xpose.msra.mxu0 0.0
    %1264 = vmatpush.xpose.msra.mxu0 0.0
    %1265 = vmatpush.xpose.msra.mxu0 0.0
    %1266 = vmatpush.xpose.msra.mxu0 %v1249
    %1267 = vmatmul.f32.gmra.mxu0 %v1247
    %v1268 = vpop.f32.mrf.mxu0
    %v1269 = vadd.f32 0.0, %v1268
    %1270 = vdwg.mxu0
    %1271 = vrot.lane.b32.xlu0 %v194, 120
    %v1272 = vpop.permute.xlu0 %1271
    %1273 = vrot.lane.b32.xlu0 %v173, 88
    %v1274 = vpop.permute.xlu0 %1273
    %v1275 = vsel %vm204, %v1272, 0
    %v1277 = vsel %vm204, %v1274, 0
    %1279 = vmatpush.xpose.msra.mxu0 0.0
    %1280 = vmatpush.xpose.msra.mxu0 0.0
    %1281 = vmatpush.xpose.msra.mxu0 0.0
    %1282 = vmatpush.xpose.msra.mxu0 0.0
    %1283 = vmatpush.xpose.msra.mxu0 0.0
    %1284 = vmatpush.xpose.msra.mxu0 0.0
    %1285 = vmatpush.xpose.msra.mxu0 0.0
    %1286 = vmatpush.xpose.msra.mxu0 0.0
    %1287 = vmatpush.xpose.msra.mxu0 0.0
    %1288 = vmatpush.xpose.msra.mxu0 0.0
    %1289 = vmatpush.xpose.msra.mxu0 0.0
    %1290 = vmatpush.xpose.msra.mxu0 0.0
    %1291 = vmatpush.xpose.msra.mxu0 0.0
    %1292 = vmatpush.xpose.msra.mxu0 0.0
    %1293 = vmatpush.xpose.msra.mxu0 0.0
    %1294 = vmatpush.xpose.msra.mxu0 %v1277
    %1295 = vmatmul.f32.gmra.mxu0 %v1275
    %v1296 = vpop.f32.mrf.mxu0
    %v1297 = vadd.f32 0.0, %v1296
    %1298 = vdwg.mxu0
    %1299 = vrot.lane.b32.xlu0 %v195, 120
    %v1300 = vpop.permute.xlu0 %1299
    %1301 = vrot.lane.b32.xlu0 %v176, 88
    %v1302 = vpop.permute.xlu0 %1301
    %v1303 = vsel %vm204, %v1300, 0
    %v1305 = vsel %vm204, %v1302, 0
    %1307 = vmatpush.xpose.msra.mxu0 0.0
    %1308 = vmatpush.xpose.msra.mxu0 0.0
    %1309 = vmatpush.xpose.msra.mxu0 0.0
    %1310 = vmatpush.xpose.msra.mxu0 0.0
    %1311 = vmatpush.xpose.msra.mxu0 0.0
    %1312 = vmatpush.xpose.msra.mxu0 0.0
    %1313 = vmatpush.xpose.msra.mxu0 0.0
    %1314 = vmatpush.xpose.msra.mxu0 0.0
    %1315 = vmatpush.xpose.msra.mxu0 0.0
    %1316 = vmatpush.xpose.msra.mxu0 0.0
    %1317 = vmatpush.xpose.msra.mxu0 0.0
    %1318 = vmatpush.xpose.msra.mxu0 0.0
    %1319 = vmatpush.xpose.msra.mxu0 0.0
    %1320 = vmatpush.xpose.msra.mxu0 0.0
    %1321 = vmatpush.xpose.msra.mxu0 0.0
    %1322 = vmatpush.xpose.msra.mxu0 %v1305
    %1323 = vmatmul.f32.gmra.mxu0 %v1303
    %v1324 = vpop.f32.mrf.mxu0
    %v1325 = vadd.f32 0.0, %v1324
    %1326 = vdwg.mxu0
    %1327 = vrot.lane.b32.xlu0 %v196, 120
    %v1328 = vpop.permute.xlu0 %1327
    %1329 = vrot.lane.b32.xlu0 %v179, 88
    %v1330 = vpop.permute.xlu0 %1329
    %v1331 = vsel %vm204, %v1328, 0
    %v1333 = vsel %vm204, %v1330, 0
    %1335 = vmatpush.xpose.msra.mxu0 0.0
    %1336 = vmatpush.xpose.msra.mxu0 0.0
    %1337 = vmatpush.xpose.msra.mxu0 0.0
    %1338 = vmatpush.xpose.msra.mxu0 0.0
    %1339 = vmatpush.xpose.msra.mxu0 0.0
    %1340 = vmatpush.xpose.msra.mxu0 0.0
    %1341 = vmatpush.xpose.msra.mxu0 0.0
    %1342 = vmatpush.xpose.msra.mxu0 0.0
    %1343 = vmatpush.xpose.msra.mxu0 0.0
    %1344 = vmatpush.xpose.msra.mxu0 0.0
    %1345 = vmatpush.xpose.msra.mxu0 0.0
    %1346 = vmatpush.xpose.msra.mxu0 0.0
    %1347 = vmatpush.xpose.msra.mxu0 0.0
    %1348 = vmatpush.xpose.msra.mxu0 0.0
    %1349 = vmatpush.xpose.msra.mxu0 0.0
    %1350 = vmatpush.xpose.msra.mxu0 %v1333
    %1351 = vmatmul.f32.gmra.mxu0 %v1331
    %v1352 = vpop.f32.mrf.mxu0
    %v1353 = vadd.f32 0.0, %v1352
    %1354 = vdwg.mxu0
    %1355 = vrot.lane.b32.xlu0 %v197, 120
    %v1356 = vpop.permute.xlu0 %1355
    %1357 = vrot.lane.b32.xlu0 %v182, 88
    %v1358 = vpop.permute.xlu0 %1357
    %v1359 = vsel %vm204, %v1356, 0
    %v1361 = vsel %vm204, %v1358, 0
    %1363 = vmatpush.xpose.msra.mxu0 0.0
    %1364 = vmatpush.xpose.msra.mxu0 0.0
    %1365 = vmatpush.xpose.msra.mxu0 0.0
    %1366 = vmatpush.xpose.msra.mxu0 0.0
    %1367 = vmatpush.xpose.msra.mxu0 0.0
    %1368 = vmatpush.xpose.msra.mxu0 0.0
    %1369 = vmatpush.xpose.msra.mxu0 0.0
    %1370 = vmatpush.xpose.msra.mxu0 0.0
    %1371 = vmatpush.xpose.msra.mxu0 0.0
    %1372 = vmatpush.xpose.msra.mxu0 0.0
    %1373 = vmatpush.xpose.msra.mxu0 0.0
    %1374 = vmatpush.xpose.msra.mxu0 0.0
    %1375 = vmatpush.xpose.msra.mxu0 0.0
    %1376 = vmatpush.xpose.msra.mxu0 0.0
    %1377 = vmatpush.xpose.msra.mxu0 0.0
    %1378 = vmatpush.xpose.msra.mxu0 %v1361
    %1379 = vmatmul.f32.gmra.mxu0 %v1359
    %v1380 = vpop.f32.mrf.mxu0
    %v1381 = vadd.f32 0.0, %v1380
    %1382 = vdwg.mxu0
    %1383 = vrot.lane.b32.xlu0 %v198, 120
    %v1384 = vpop.permute.xlu0 %1383
    %1385 = vrot.lane.b32.xlu0 %v185, 88
    %v1386 = vpop.permute.xlu0 %1385
    %v1387 = vsel %vm204, %v1384, 0
    %v1389 = vsel %vm204, %v1386, 0
    %1391 = vmatpush.xpose.msra.mxu0 0.0
    %1392 = vmatpush.xpose.msra.mxu0 0.0
    %1393 = vmatpush.xpose.msra.mxu0 0.0
    %1394 = vmatpush.xpose.msra.mxu0 0.0
    %1395 = vmatpush.xpose.msra.mxu0 0.0
    %1396 = vmatpush.xpose.msra.mxu0 0.0
    %1397 = vmatpush.xpose.msra.mxu0 0.0
    %1398 = vmatpush.xpose.msra.mxu0 0.0
    %1399 = vmatpush.xpose.msra.mxu0 0.0
    %1400 = vmatpush.xpose.msra.mxu0 0.0
    %1401 = vmatpush.xpose.msra.mxu0 0.0
    %1402 = vmatpush.xpose.msra.mxu0 0.0
    %1403 = vmatpush.xpose.msra.mxu0 0.0
    %1404 = vmatpush.xpose.msra.mxu0 0.0
    %1405 = vmatpush.xpose.msra.mxu0 0.0
    %1406 = vmatpush.xpose.msra.mxu0 %v1389
    %1407 = vmatmul.f32.gmra.mxu0 %v1387
    %v1408 = vpop.f32.mrf.mxu0
    %v1409 = vadd.f32 0.0, %v1408
    %1410 = vdwg.mxu0
    %1411 = vrot.lane.b32.xlu0 %v199, 120
    %v1412 = vpop.permute.xlu0 %1411
    %1413 = vrot.lane.b32.xlu0 %v188, 88
    %v1414 = vpop.permute.xlu0 %1413
    %v1415 = vsel %vm204, %v1412, 0
    %v1417 = vsel %vm204, %v1414, 0
    %1419 = vmatpush.xpose.msra.mxu0 0.0
    %1420 = vmatpush.xpose.msra.mxu0 0.0
    %1421 = vmatpush.xpose.msra.mxu0 0.0
    %1422 = vmatpush.xpose.msra.mxu0 0.0
    %1423 = vmatpush.xpose.msra.mxu0 0.0
    %1424 = vmatpush.xpose.msra.mxu0 0.0
    %1425 = vmatpush.xpose.msra.mxu0 0.0
    %1426 = vmatpush.xpose.msra.mxu0 0.0
    %1427 = vmatpush.xpose.msra.mxu0 0.0
    %1428 = vmatpush.xpose.msra.mxu0 0.0
    %1429 = vmatpush.xpose.msra.mxu0 0.0
    %1430 = vmatpush.xpose.msra.mxu0 0.0
    %1431 = vmatpush.xpose.msra.mxu0 0.0
    %1432 = vmatpush.xpose.msra.mxu0 0.0
    %1433 = vmatpush.xpose.msra.mxu0 0.0
    %1434 = vmatpush.xpose.msra.mxu0 %v1417
    %1435 = vmatmul.f32.gmra.mxu0 %v1415
    %v1436 = vpop.f32.mrf.mxu0
    %v1437 = vadd.f32 0.0, %v1436
    %1438 = vdwg.mxu0
    %1439 = vrot.lane.b32.xlu0 %v200, 120
    %v1440 = vpop.permute.xlu0 %1439
    %1441 = vrot.lane.b32.xlu0 %v191, 88
    %v1442 = vpop.permute.xlu0 %1441
    %v1443 = vsel %vm204, %v1440, 0
    %v1445 = vsel %vm204, %v1442, 0
    %1447 = vmatpush.xpose.msra.mxu0 0.0
    %1448 = vmatpush.xpose.msra.mxu0 0.0
    %1449 = vmatpush.xpose.msra.mxu0 0.0
    %1450 = vmatpush.xpose.msra.mxu0 0.0
    %1451 = vmatpush.xpose.msra.mxu0 0.0
    %1452 = vmatpush.xpose.msra.mxu0 0.0
    %1453 = vmatpush.xpose.msra.mxu0 0.0
    %1454 = vmatpush.xpose.msra.mxu0 0.0
    %1455 = vmatpush.xpose.msra.mxu0 0.0
    %1456 = vmatpush.xpose.msra.mxu0 0.0
    %1457 = vmatpush.xpose.msra.mxu0 0.0
    %1458 = vmatpush.xpose.msra.mxu0 0.0
    %1459 = vmatpush.xpose.msra.mxu0 0.0
    %1460 = vmatpush.xpose.msra.mxu0 0.0
    %1461 = vmatpush.xpose.msra.mxu0 0.0
    %1462 = vmatpush.xpose.msra.mxu0 %v1445
    %1463 = vmatmul.f32.gmra.mxu0 %v1443
    %v1464 = vpop.f32.mrf.mxu0
    %v1465 = vadd.f32 0.0, %v1464
    %1466 = vdwg.mxu0
    %v1467 = vsel %vm426, %v1269, -inf
    %1468 = vmax.xlane.f32.xlu0 %v1467
    %v1469 = vpop.xlane.xlu0 %1468
    %v1470 = vsel %vm426, %v1297, -inf
    %1471 = vmax.xlane.f32.xlu0 %v1470
    %v1472 = vpop.xlane.xlu0 %1471
    %v1473 = vsel %vm426, %v1325, -inf
    %1474 = vmax.xlane.f32.xlu0 %v1473
    %v1475 = vpop.xlane.xlu0 %1474
    %v1476 = vsel %vm426, %v1353, -inf
    %1477 = vmax.xlane.f32.xlu0 %v1476
    %v1478 = vpop.xlane.xlu0 %1477
    %v1479 = vsel %vm426, %v1381, -inf
    %1480 = vmax.xlane.f32.xlu0 %v1479
    %v1481 = vpop.xlane.xlu0 %1480
    %v1482 = vsel %vm426, %v1409, -inf
    %1483 = vmax.xlane.f32.xlu0 %v1482
    %v1484 = vpop.xlane.xlu0 %1483
    %v1485 = vsel %vm426, %v1437, -inf
    %1486 = vmax.xlane.f32.xlu0 %v1485
    %v1487 = vpop.xlane.xlu0 %1486
    %v1488 = vsel %vm426, %v1465, -inf
    %1489 = vmax.xlane.f32.xlu0 %v1488
    %v1490 = vpop.xlane.xlu0 %1489
    %v1491 = vsub.f32 %v1269, %v1469
    %v1492 = vsub.f32 %v1297, %v1472
    %v1493 = vsub.f32 %v1325, %v1475
    %v1494 = vsub.f32 %v1353, %v1478
    %v1495 = vsub.f32 %v1381, %v1481
    %v1496 = vsub.f32 %v1409, %v1484
    %v1497 = vsub.f32 %v1437, %v1487
    %v1498 = vsub.f32 %v1465, %v1490
    %v1499 = vmul.f32 %v1491, 1.442695
    %v1500 = vpow.pop %v1499
    %v1501 = vmul.f32 %v1492, 1.442695
    %v1502 = vpow.pop %v1501
    %v1503 = vmul.f32 %v1493, 1.442695
    %v1504 = vpow.pop %v1503
    %v1505 = vmul.f32 %v1494, 1.442695
    %v1506 = vpow.pop %v1505
    %v1507 = vmul.f32 %v1495, 1.442695
    %v1508 = vpow.pop %v1507
    %v1509 = vmul.f32 %v1496, 1.442695
    %v1510 = vpow.pop %v1509
    %v1511 = vmul.f32 %v1497, 1.442695
    %v1512 = vpow.pop %v1511
    %v1513 = vmul.f32 %v1498, 1.442695
    %v1514 = vpow.pop %v1513
    %v1515 = vsel %vm426, %v1500, 0.0
    %1516 = vadd.xlane.f32.xlu0 %v1515
    %v1517 = vpop.xlane.xlu0 %1516
    %v1518 = vsel %vm426, %v1502, 0.0
    %1519 = vadd.xlane.f32.xlu0 %v1518
    %v1520 = vpop.xlane.xlu0 %1519
    %v1521 = vsel %vm426, %v1504, 0.0
    %1522 = vadd.xlane.f32.xlu0 %v1521
    %v1523 = vpop.xlane.xlu0 %1522
    %v1524 = vsel %vm426, %v1506, 0.0
    %1525 = vadd.xlane.f32.xlu0 %v1524
    %v1526 = vpop.xlane.xlu0 %1525
    %v1527 = vsel %vm426, %v1508, 0.0
    %1528 = vadd.xlane.f32.xlu0 %v1527
    %v1529 = vpop.xlane.xlu0 %1528
    %v1530 = vsel %vm426, %v1510, 0.0
    %1531 = vadd.xlane.f32.xlu0 %v1530
    %v1532 = vpop.xlane.xlu0 %1531
    %v1533 = vsel %vm426, %v1512, 0.0
    %1534 = vadd.xlane.f32.xlu0 %v1533
    %v1535 = vpop.xlane.xlu0 %1534
    %v1536 = vsel %vm426, %v1514, 0.0
    %1537 = vadd.xlane.f32.xlu0 %v1536
    %v1538 = vpop.xlane.xlu0 %1537
    %v1539 = vrcp.pop %v1517
    %v1540 = vrcp.pop %v1520
    %v1541 = vrcp.pop %v1523
    %v1542 = vrcp.pop %v1526
    %v1543 = vrcp.pop %v1529
    %v1544 = vrcp.pop %v1532
    %v1545 = vrcp.pop %v1535
    %v1546 = vrcp.pop %v1538
    %v1547 = vmul.f32 %v1500, %v1539
    %v1548 = vmul.f32 %v1502, %v1540
    %v1549 = vmul.f32 %v1504, %v1541
    %v1550 = vmul.f32 %v1506, %v1542
    %v1551 = vmul.f32 %v1508, %v1543
    %v1552 = vmul.f32 %v1510, %v1544
    %v1553 = vmul.f32 %v1512, %v1545
    %v1554 = vmul.f32 %v1514, %v1546
    %1555 = vrot.lane.b32.xlu0 %v170, 56
    %v1556 = vpop.permute.xlu0 %1555
    %v1559 = vsel %vm426, %v1547, 0
    %1561 = vmatpush.msra.mxu0 0.0
    %1562 = vmatpush.msra.mxu0 0.0
    %1563 = vmatpush.msra.mxu0 0.0
    %1564 = vmatpush.msra.mxu0 0.0
    %1565 = vmatpush.msra.mxu0 0.0
    %1566 = vmatpush.msra.mxu0 0.0
    %1567 = vmatpush.msra.mxu0 0.0
    %1568 = vmatpush.msra.mxu0 0.0
    %1569 = vmatpush.msra.mxu0 0.0
    %1570 = vmatpush.msra.mxu0 0.0
    %1571 = vmatpush.msra.mxu0 0.0
    %1572 = vmatpush.msra.mxu0 0.0
    %1573 = vmatpush.msra.mxu0 0.0
    %1574 = vmatpush.msra.mxu0 0.0
    %1575 = vmatpush.msra.mxu0 0.0
    %1576 = vmatpush.msra.mxu0 %v1556
    %1577 = vmatmul.f32.gmra.mxu0 %v1559
    %v1578 = vpop.f32.mrf.mxu0
    %v1579 = vadd.f32 0.0, %v1578
    %1580 = vdwg.mxu0
    %1581 = vrot.lane.b32.xlu0 %v173, 56
    %v1582 = vpop.permute.xlu0 %1581
    %v1585 = vsel %vm426, %v1548, 0
    %1587 = vmatpush.msra.mxu0 0.0
    %1588 = vmatpush.msra.mxu0 0.0
    %1589 = vmatpush.msra.mxu0 0.0
    %1590 = vmatpush.msra.mxu0 0.0
    %1591 = vmatpush.msra.mxu0 0.0
    %1592 = vmatpush.msra.mxu0 0.0
    %1593 = vmatpush.msra.mxu0 0.0
    %1594 = vmatpush.msra.mxu0 0.0
    %1595 = vmatpush.msra.mxu0 0.0
    %1596 = vmatpush.msra.mxu0 0.0
    %1597 = vmatpush.msra.mxu0 0.0
    %1598 = vmatpush.msra.mxu0 0.0
    %1599 = vmatpush.msra.mxu0 0.0
    %1600 = vmatpush.msra.mxu0 0.0
    %1601 = vmatpush.msra.mxu0 0.0
    %1602 = vmatpush.msra.mxu0 %v1582
    %1603 = vmatmul.f32.gmra.mxu0 %v1585
    %v1604 = vpop.f32.mrf.mxu0
    %v1605 = vadd.f32 0.0, %v1604
    %1606 = vdwg.mxu0
    %1607 = vrot.lane.b32.xlu0 %v176, 56
    %v1608 = vpop.permute.xlu0 %1607
    %v1611 = vsel %vm426, %v1549, 0
    %1613 = vmatpush.msra.mxu0 0.0
    %1614 = vmatpush.msra.mxu0 0.0
    %1615 = vmatpush.msra.mxu0 0.0
    %1616 = vmatpush.msra.mxu0 0.0
    %1617 = vmatpush.msra.mxu0 0.0
    %1618 = vmatpush.msra.mxu0 0.0
    %1619 = vmatpush.msra.mxu0 0.0
    %1620 = vmatpush.msra.mxu0 0.0
    %1621 = vmatpush.msra.mxu0 0.0
    %1622 = vmatpush.msra.mxu0 0.0
    %1623 = vmatpush.msra.mxu0 0.0
    %1624 = vmatpush.msra.mxu0 0.0
    %1625 = vmatpush.msra.mxu0 0.0
    %1626 = vmatpush.msra.mxu0 0.0
    %1627 = vmatpush.msra.mxu0 0.0
    %1628 = vmatpush.msra.mxu0 %v1608
    %1629 = vmatmul.f32.gmra.mxu0 %v1611
    %v1630 = vpop.f32.mrf.mxu0
    %v1631 = vadd.f32 0.0, %v1630
    %1632 = vdwg.mxu0
    %1633 = vrot.lane.b32.xlu0 %v179, 56
    %v1634 = vpop.permute.xlu0 %1633
    %v1637 = vsel %vm426, %v1550, 0
    %1639 = vmatpush.msra.mxu0 0.0
    %1640 = vmatpush.msra.mxu0 0.0
    %1641 = vmatpush.msra.mxu0 0.0
    %1642 = vmatpush.msra.mxu0 0.0
    %1643 = vmatpush.msra.mxu0 0.0
    %1644 = vmatpush.msra.mxu0 0.0
    %1645 = vmatpush.msra.mxu0 0.0
    %1646 = vmatpush.msra.mxu0 0.0
    %1647 = vmatpush.msra.mxu0 0.0
    %1648 = vmatpush.msra.mxu0 0.0
    %1649 = vmatpush.msra.mxu0 0.0
    %1650 = vmatpush.msra.mxu0 0.0
    %1651 = vmatpush.msra.mxu0 0.0
    %1652 = vmatpush.msra.mxu0 0.0
    %1653 = vmatpush.msra.mxu0 0.0
    %1654 = vmatpush.msra.mxu0 %v1634
    %1655 = vmatmul.f32.gmra.mxu0 %v1637
    %v1656 = vpop.f32.mrf.mxu0
    %v1657 = vadd.f32 0.0, %v1656
    %1658 = vdwg.mxu0
    %1659 = vrot.lane.b32.xlu0 %v182, 56
    %v1660 = vpop.permute.xlu0 %1659
    %v1663 = vsel %vm426, %v1551, 0
    %1665 = vmatpush.msra.mxu0 0.0
    %1666 = vmatpush.msra.mxu0 0.0
    %1667 = vmatpush.msra.mxu0 0.0
    %1668 = vmatpush.msra.mxu0 0.0
    %1669 = vmatpush.msra.mxu0 0.0
    %1670 = vmatpush.msra.mxu0 0.0
    %1671 = vmatpush.msra.mxu0 0.0
    %1672 = vmatpush.msra.mxu0 0.0
    %1673 = vmatpush.msra.mxu0 0.0
    %1674 = vmatpush.msra.mxu0 0.0
    %1675 = vmatpush.msra.mxu0 0.0
    %1676 = vmatpush.msra.mxu0 0.0
    %1677 = vmatpush.msra.mxu0 0.0
    %1678 = vmatpush.msra.mxu0 0.0
    %1679 = vmatpush.msra.mxu0 0.0
    %1680 = vmatpush.msra.mxu0 %v1660
    %1681 = vmatmul.f32.gmra.mxu0 %v1663
    %v1682 = vpop.f32.mrf.mxu0
    %v1683 = vadd.f32 0.0, %v1682
    %1684 = vdwg.mxu0
    %1685 = vrot.lane.b32.xlu0 %v185, 56
    %v1686 = vpop.permute.xlu0 %1685
    %v1689 = vsel %vm426, %v1552, 0
    %1691 = vmatpush.msra.mxu0 0.0
    %1692 = vmatpush.msra.mxu0 0.0
    %1693 = vmatpush.msra.mxu0 0.0
    %1694 = vmatpush.msra.mxu0 0.0
    %1695 = vmatpush.msra.mxu0 0.0
    %1696 = vmatpush.msra.mxu0 0.0
    %1697 = vmatpush.msra.mxu0 0.0
    %1698 = vmatpush.msra.mxu0 0.0
    %1699 = vmatpush.msra.mxu0 0.0
    %1700 = vmatpush.msra.mxu0 0.0
    %1701 = vmatpush.msra.mxu0 0.0
    %1702 = vmatpush.msra.mxu0 0.0
    %1703 = vmatpush.msra.mxu0 0.0
    %1704 = vmatpush.msra.mxu0 0.0
    %1705 = vmatpush.msra.mxu0 0.0
    %1706 = vmatpush.msra.mxu0 %v1686
    %1707 = vmatmul.f32.gmra.mxu0 %v1689
    %v1708 = vpop.f32.mrf.mxu0
    %v1709 = vadd.f32 0.0, %v1708
    %1710 = vdwg.mxu0
    %1711 = vrot.lane.b32.xlu0 %v188, 56
    %v1712 = vpop.permute.xlu0 %1711
    %v1715 = vsel %vm426, %v1553, 0
    %1717 = vmatpush.msra.mxu0 0.0
    %1718 = vmatpush.msra.mxu0 0.0
    %1719 = vmatpush.msra.mxu0 0.0
    %1720 = vmatpush.msra.mxu0 0.0
    %1721 = vmatpush.msra.mxu0 0.0
    %1722 = vmatpush.msra.mxu0 0.0
    %1723 = vmatpush.msra.mxu0 0.0
    %1724 = vmatpush.msra.mxu0 0.0
    %1725 = vmatpush.msra.mxu0 0.0
    %1726 = vmatpush.msra.mxu0 0.0
    %1727 = vmatpush.msra.mxu0 0.0
    %1728 = vmatpush.msra.mxu0 0.0
    %1729 = vmatpush.msra.mxu0 0.0
    %1730 = vmatpush.msra.mxu0 0.0
    %1731 = vmatpush.msra.mxu0 0.0
    %1732 = vmatpush.msra.mxu0 %v1712
    %1733 = vmatmul.f32.gmra.mxu0 %v1715
    %v1734 = vpop.f32.mrf.mxu0
    %v1735 = vadd.f32 0.0, %v1734
    %1736 = vdwg.mxu0
    %1737 = vrot.lane.b32.xlu0 %v191, 56
    %v1738 = vpop.permute.xlu0 %1737
    %v1741 = vsel %vm426, %v1554, 0
    %1743 = vmatpush.msra.mxu0 0.0
    %1744 = vmatpush.msra.mxu0 0.0
    %1745 = vmatpush.msra.mxu0 0.0
    %1746 = vmatpush.msra.mxu0 0.0
    %1747 = vmatpush.msra.mxu0 0.0
    %1748 = vmatpush.msra.mxu0 0.0
    %1749 = vmatpush.msra.mxu0 0.0
    %1750 = vmatpush.msra.mxu0 0.0
    %1751 = vmatpush.msra.mxu0 0.0
    %1752 = vmatpush.msra.mxu0 0.0
    %1753 = vmatpush.msra.mxu0 0.0
    %1754 = vmatpush.msra.mxu0 0.0
    %1755 = vmatpush.msra.mxu0 0.0
    %1756 = vmatpush.msra.mxu0 0.0
    %1757 = vmatpush.msra.mxu0 0.0
    %1758 = vmatpush.msra.mxu0 %v1738
    %1759 = vmatmul.f32.gmra.mxu0 %v1741
    %v1760 = vpop.f32.mrf.mxu0
    %v1761 = vadd.f32 0.0, %v1760
    %1762 = vdwg.mxu0
    %1763 = vrot.lane.b32.xlu0 %v193, 116
    %v1764 = vpop.permute.xlu0 %1763
    %1765 = vrot.lane.b32.xlu0 %v170, 84
    %v1766 = vpop.permute.xlu0 %1765
    %v1767 = vsel %vm204, %v1764, 0
    %v1769 = vsel %vm204, %v1766, 0
    %1771 = vmatpush.xpose.msra.mxu0 0.0
    %1772 = vmatpush.xpose.msra.mxu0 0.0
    %1773 = vmatpush.xpose.msra.mxu0 0.0
    %1774 = vmatpush.xpose.msra.mxu0 0.0
    %1775 = vmatpush.xpose.msra.mxu0 0.0
    %1776 = vmatpush.xpose.msra.mxu0 0.0
    %1777 = vmatpush.xpose.msra.mxu0 0.0
    %1778 = vmatpush.xpose.msra.mxu0 0.0
    %1779 = vmatpush.xpose.msra.mxu0 0.0
    %1780 = vmatpush.xpose.msra.mxu0 0.0
    %1781 = vmatpush.xpose.msra.mxu0 0.0
    %1782 = vmatpush.xpose.msra.mxu0 0.0
    %1783 = vmatpush.xpose.msra.mxu0 0.0
    %1784 = vmatpush.xpose.msra.mxu0 0.0
    %1785 = vmatpush.xpose.msra.mxu0 0.0
    %1786 = vmatpush.xpose.msra.mxu0 %v1769
    %1787 = vmatmul.f32.gmra.mxu0 %v1767
    %v1788 = vpop.f32.mrf.mxu0
    %v1789 = vadd.f32 0.0, %v1788
    %1790 = vdwg.mxu0
    %1791 = vrot.lane.b32.xlu0 %v194, 116
    %v1792 = vpop.permute.xlu0 %1791
    %1793 = vrot.lane.b32.xlu0 %v173, 84
    %v1794 = vpop.permute.xlu0 %1793
    %v1795 = vsel %vm204, %v1792, 0
    %v1797 = vsel %vm204, %v1794, 0
    %1799 = vmatpush.xpose.msra.mxu0 0.0
    %1800 = vmatpush.xpose.msra.mxu0 0.0
    %1801 = vmatpush.xpose.msra.mxu0 0.0
    %1802 = vmatpush.xpose.msra.mxu0 0.0
    %1803 = vmatpush.xpose.msra.mxu0 0.0
    %1804 = vmatpush.xpose.msra.mxu0 0.0
    %1805 = vmatpush.xpose.msra.mxu0 0.0
    %1806 = vmatpush.xpose.msra.mxu0 0.0
    %1807 = vmatpush.xpose.msra.mxu0 0.0
    %1808 = vmatpush.xpose.msra.mxu0 0.0
    %1809 = vmatpush.xpose.msra.mxu0 0.0
    %1810 = vmatpush.xpose.msra.mxu0 0.0
    %1811 = vmatpush.xpose.msra.mxu0 0.0
    %1812 = vmatpush.xpose.msra.mxu0 0.0
    %1813 = vmatpush.xpose.msra.mxu0 0.0
    %1814 = vmatpush.xpose.msra.mxu0 %v1797
    %1815 = vmatmul.f32.gmra.mxu0 %v1795
    %v1816 = vpop.f32.mrf.mxu0
    %v1817 = vadd.f32 0.0, %v1816
    %1818 = vdwg.mxu0
    %1819 = vrot.lane.b32.xlu0 %v195, 116
    %v1820 = vpop.permute.xlu0 %1819
    %1821 = vrot.lane.b32.xlu0 %v176, 84
    %v1822 = vpop.permute.xlu0 %1821
    %v1823 = vsel %vm204, %v1820, 0
    %v1825 = vsel %vm204, %v1822, 0
    %1827 = vmatpush.xpose.msra.mxu0 0.0
    %1828 = vmatpush.xpose.msra.mxu0 0.0
    %1829 = vmatpush.xpose.msra.mxu0 0.0
    %1830 = vmatpush.xpose.msra.mxu0 0.0
    %1831 = vmatpush.xpose.msra.mxu0 0.0
    %1832 = vmatpush.xpose.msra.mxu0 0.0
    %1833 = vmatpush.xpose.msra.mxu0 0.0
    %1834 = vmatpush.xpose.msra.mxu0 0.0
    %1835 = vmatpush.xpose.msra.mxu0 0.0
    %1836 = vmatpush.xpose.msra.mxu0 0.0
    %1837 = vmatpush.xpose.msra.mxu0 0.0
    %1838 = vmatpush.xpose.msra.mxu0 0.0
    %1839 = vmatpush.xpose.msra.mxu0 0.0
    %1840 = vmatpush.xpose.msra.mxu0 0.0
    %1841 = vmatpush.xpose.msra.mxu0 0.0
    %1842 = vmatpush.xpose.msra.mxu0 %v1825
    %1843 = vmatmul.f32.gmra.mxu0 %v1823
    %v1844 = vpop.f32.mrf.mxu0
    %v1845 = vadd.f32 0.0, %v1844
    %1846 = vdwg.mxu0
    %1847 = vrot.lane.b32.xlu0 %v196, 116
    %v1848 = vpop.permute.xlu0 %1847
    %1849 = vrot.lane.b32.xlu0 %v179, 84
    %v1850 = vpop.permute.xlu0 %1849
    %v1851 = vsel %vm204, %v1848, 0
    %v1853 = vsel %vm204, %v1850, 0
    %1855 = vmatpush.xpose.msra.mxu0 0.0
    %1856 = vmatpush.xpose.msra.mxu0 0.0
    %1857 = vmatpush.xpose.msra.mxu0 0.0
    %1858 = vmatpush.xpose.msra.mxu0 0.0
    %1859 = vmatpush.xpose.msra.mxu0 0.0
    %1860 = vmatpush.xpose.msra.mxu0 0.0
    %1861 = vmatpush.xpose.msra.mxu0 0.0
    %1862 = vmatpush.xpose.msra.mxu0 0.0
    %1863 = vmatpush.xpose.msra.mxu0 0.0
    %1864 = vmatpush.xpose.msra.mxu0 0.0
    %1865 = vmatpush.xpose.msra.mxu0 0.0
    %1866 = vmatpush.xpose.msra.mxu0 0.0
    %1867 = vmatpush.xpose.msra.mxu0 0.0
    %1868 = vmatpush.xpose.msra.mxu0 0.0
    %1869 = vmatpush.xpose.msra.mxu0 0.0
    %1870 = vmatpush.xpose.msra.mxu0 %v1853
    %1871 = vmatmul.f32.gmra.mxu0 %v1851
    %v1872 = vpop.f32.mrf.mxu0
    %v1873 = vadd.f32 0.0, %v1872
    %1874 = vdwg.mxu0
    %1875 = vrot.lane.b32.xlu0 %v197, 116
    %v1876 = vpop.permute.xlu0 %1875
    %1877 = vrot.lane.b32.xlu0 %v182, 84
    %v1878 = vpop.permute.xlu0 %1877
    %v1879 = vsel %vm204, %v1876, 0
    %v1881 = vsel %vm204, %v1878, 0
    %1883 = vmatpush.xpose.msra.mxu0 0.0
    %1884 = vmatpush.xpose.msra.mxu0 0.0
    %1885 = vmatpush.xpose.msra.mxu0 0.0
    %1886 = vmatpush.xpose.msra.mxu0 0.0
    %1887 = vmatpush.xpose.msra.mxu0 0.0
    %1888 = vmatpush.xpose.msra.mxu0 0.0
    %1889 = vmatpush.xpose.msra.mxu0 0.0
    %1890 = vmatpush.xpose.msra.mxu0 0.0
    %1891 = vmatpush.xpose.msra.mxu0 0.0
    %1892 = vmatpush.xpose.msra.mxu0 0.0
    %1893 = vmatpush.xpose.msra.mxu0 0.0
    %1894 = vmatpush.xpose.msra.mxu0 0.0
    %1895 = vmatpush.xpose.msra.mxu0 0.0
    %1896 = vmatpush.xpose.msra.mxu0 0.0
    %1897 = vmatpush.xpose.msra.mxu0 0.0
    %1898 = vmatpush.xpose.msra.mxu0 %v1881
    %1899 = vmatmul.f32.gmra.mxu0 %v1879
    %v1900 = vpop.f32.mrf.mxu0
    %v1901 = vadd.f32 0.0, %v1900
    %1902 = vdwg.mxu0
    %1903 = vrot.lane.b32.xlu0 %v198, 116
    %v1904 = vpop.permute.xlu0 %1903
    %1905 = vrot.lane.b32.xlu0 %v185, 84
    %v1906 = vpop.permute.xlu0 %1905
    %v1907 = vsel %vm204, %v1904, 0
    %v1909 = vsel %vm204, %v1906, 0
    %1911 = vmatpush.xpose.msra.mxu0 0.0
    %1912 = vmatpush.xpose.msra.mxu0 0.0
    %1913 = vmatpush.xpose.msra.mxu0 0.0
    %1914 = vmatpush.xpose.msra.mxu0 0.0
    %1915 = vmatpush.xpose.msra.mxu0 0.0
    %1916 = vmatpush.xpose.msra.mxu0 0.0
    %1917 = vmatpush.xpose.msra.mxu0 0.0
    %1918 = vmatpush.xpose.msra.mxu0 0.0
    %1919 = vmatpush.xpose.msra.mxu0 0.0
    %1920 = vmatpush.xpose.msra.mxu0 0.0
    %1921 = vmatpush.xpose.msra.mxu0 0.0
    %1922 = vmatpush.xpose.msra.mxu0 0.0
    %1923 = vmatpush.xpose.msra.mxu0 0.0
    %1924 = vmatpush.xpose.msra.mxu0 0.0
    %1925 = vmatpush.xpose.msra.mxu0 0.0
    %1926 = vmatpush.xpose.msra.mxu0 %v1909
    %1927 = vmatmul.f32.gmra.mxu0 %v1907
    %v1928 = vpop.f32.mrf.mxu0
    %v1929 = vadd.f32 0.0, %v1928
    %1930 = vdwg.mxu0
    %1931 = vrot.lane.b32.xlu0 %v199, 116
    %v1932 = vpop.permute.xlu0 %1931
    %1933 = vrot.lane.b32.xlu0 %v188, 84
    %v1934 = vpop.permute.xlu0 %1933
    %v1935 = vsel %vm204, %v1932, 0
    %v1937 = vsel %vm204, %v1934, 0
    %1939 = vmatpush.xpose.msra.mxu0 0.0
    %1940 = vmatpush.xpose.msra.mxu0 0.0
    %1941 = vmatpush.xpose.msra.mxu0 0.0
    %1942 = vmatpush.xpose.msra.mxu0 0.0
    %1943 = vmatpush.xpose.msra.mxu0 0.0
    %1944 = vmatpush.xpose.msra.mxu0 0.0
    %1945 = vmatpush.xpose.msra.mxu0 0.0
    %1946 = vmatpush.xpose.msra.mxu0 0.0
    %1947 = vmatpush.xpose.msra.mxu0 0.0
    %1948 = vmatpush.xpose.msra.mxu0 0.0
    %1949 = vmatpush.xpose.msra.mxu0 0.0
    %1950 = vmatpush.xpose.msra.mxu0 0.0
    %1951 = vmatpush.xpose.msra.mxu0 0.0
    %1952 = vmatpush.xpose.msra.mxu0 0.0
    %1953 = vmatpush.xpose.msra.mxu0 0.0
    %1954 = vmatpush.xpose.msra.mxu0 %v1937
    %1955 = vmatmul.f32.gmra.mxu0 %v1935
    %v1956 = vpop.f32.mrf.mxu0
    %v1957 = vadd.f32 0.0, %v1956
    %1958 = vdwg.mxu0
    %1959 = vrot.lane.b32.xlu0 %v200, 116
    %v1960 = vpop.permute.xlu0 %1959
    %1961 = vrot.lane.b32.xlu0 %v191, 84
    %v1962 = vpop.permute.xlu0 %1961
    %v1963 = vsel %vm204, %v1960, 0
    %v1965 = vsel %vm204, %v1962, 0
    %1967 = vmatpush.xpose.msra.mxu0 0.0
    %1968 = vmatpush.xpose.msra.mxu0 0.0
    %1969 = vmatpush.xpose.msra.mxu0 0.0
    %1970 = vmatpush.xpose.msra.mxu0 0.0
    %1971 = vmatpush.xpose.msra.mxu0 0.0
    %1972 = vmatpush.xpose.msra.mxu0 0.0
    %1973 = vmatpush.xpose.msra.mxu0 0.0
    %1974 = vmatpush.xpose.msra.mxu0 0.0
    %1975 = vmatpush.xpose.msra.mxu0 0.0
    %1976 = vmatpush.xpose.msra.mxu0 0.0
    %1977 = vmatpush.xpose.msra.mxu0 0.0
    %1978 = vmatpush.xpose.msra.mxu0 0.0
    %1979 = vmatpush.xpose.msra.mxu0 0.0
    %1980 = vmatpush.xpose.msra.mxu0 0.0
    %1981 = vmatpush.xpose.msra.mxu0 0.0
    %1982 = vmatpush.xpose.msra.mxu0 %v1965
    %1983 = vmatmul.f32.gmra.mxu0 %v1963
    %v1984 = vpop.f32.mrf.mxu0
    %v1985 = vadd.f32 0.0, %v1984
    %1986 = vdwg.mxu0
    %v1987 = vsel %vm426, %v1789, -inf
    %1988 = vmax.xlane.f32.xlu0 %v1987
    %v1989 = vpop.xlane.xlu0 %1988
    %v1990 = vsel %vm426, %v1817, -inf
    %1991 = vmax.xlane.f32.xlu0 %v1990
    %v1992 = vpop.xlane.xlu0 %1991
    %v1993 = vsel %vm426, %v1845, -inf
    %1994 = vmax.xlane.f32.xlu0 %v1993
    %v1995 = vpop.xlane.xlu0 %1994
    %v1996 = vsel %vm426, %v1873, -inf
    %1997 = vmax.xlane.f32.xlu0 %v1996
    %v1998 = vpop.xlane.xlu0 %1997
    %v1999 = vsel %vm426, %v1901, -inf
    %2000 = vmax.xlane.f32.xlu0 %v1999
    %v2001 = vpop.xlane.xlu0 %2000
    %v2002 = vsel %vm426, %v1929, -inf
    %2003 = vmax.xlane.f32.xlu0 %v2002
    %v2004 = vpop.xlane.xlu0 %2003
    %v2005 = vsel %vm426, %v1957, -inf
    %2006 = vmax.xlane.f32.xlu0 %v2005
    %v2007 = vpop.xlane.xlu0 %2006
    %v2008 = vsel %vm426, %v1985, -inf
    %2009 = vmax.xlane.f32.xlu0 %v2008
    %v2010 = vpop.xlane.xlu0 %2009
    %v2011 = vsub.f32 %v1789, %v1989
    %v2012 = vsub.f32 %v1817, %v1992
    %v2013 = vsub.f32 %v1845, %v1995
    %v2014 = vsub.f32 %v1873, %v1998
    %v2015 = vsub.f32 %v1901, %v2001
    %v2016 = vsub.f32 %v1929, %v2004
    %v2017 = vsub.f32 %v1957, %v2007
    %v2018 = vsub.f32 %v1985, %v2010
    %v2019 = vmul.f32 %v2011, 1.442695
    %v2020 = vpow.pop %v2019
    %v2021 = vmul.f32 %v2012, 1.442695
    %v2022 = vpow.pop %v2021
    %v2023 = vmul.f32 %v2013, 1.442695
    %v2024 = vpow.pop %v2023
    %v2025 = vmul.f32 %v2014, 1.442695
    %v2026 = vpow.pop %v2025
    %v2027 = vmul.f32 %v2015, 1.442695
    %v2028 = vpow.pop %v2027
    %v2029 = vmul.f32 %v2016, 1.442695
    %v2030 = vpow.pop %v2029
    %v2031 = vmul.f32 %v2017, 1.442695
    %v2032 = vpow.pop %v2031
    %v2033 = vmul.f32 %v2018, 1.442695
    %v2034 = vpow.pop %v2033
    %v2035 = vsel %vm426, %v2020, 0.0
    %2036 = vadd.xlane.f32.xlu0 %v2035
    %v2037 = vpop.xlane.xlu0 %2036
    %v2038 = vsel %vm426, %v2022, 0.0
    %2039 = vadd.xlane.f32.xlu0 %v2038
    %v2040 = vpop.xlane.xlu0 %2039
    %v2041 = vsel %vm426, %v2024, 0.0
    %2042 = vadd.xlane.f32.xlu0 %v2041
    %v2043 = vpop.xlane.xlu0 %2042
    %v2044 = vsel %vm426, %v2026, 0.0
    %2045 = vadd.xlane.f32.xlu0 %v2044
    %v2046 = vpop.xlane.xlu0 %2045
    %v2047 = vsel %vm426, %v2028, 0.0
    %2048 = vadd.xlane.f32.xlu0 %v2047
    %v2049 = vpop.xlane.xlu0 %2048
    %v2050 = vsel %vm426, %v2030, 0.0
    %2051 = vadd.xlane.f32.xlu0 %v2050
    %v2052 = vpop.xlane.xlu0 %2051
    %v2053 = vsel %vm426, %v2032, 0.0
    %2054 = vadd.xlane.f32.xlu0 %v2053
    %v2055 = vpop.xlane.xlu0 %2054
    %v2056 = vsel %vm426, %v2034, 0.0
    %2057 = vadd.xlane.f32.xlu0 %v2056
    %v2058 = vpop.xlane.xlu0 %2057
    %v2059 = vrcp.pop %v2037
    %v2060 = vrcp.pop %v2040
    %v2061 = vrcp.pop %v2043
    %v2062 = vrcp.pop %v2046
    %v2063 = vrcp.pop %v2049
    %v2064 = vrcp.pop %v2052
    %v2065 = vrcp.pop %v2055
    %v2066 = vrcp.pop %v2058
    %v2067 = vmul.f32 %v2020, %v2059
    %v2068 = vmul.f32 %v2022, %v2060
    %v2069 = vmul.f32 %v2024, %v2061
    %v2070 = vmul.f32 %v2026, %v2062
    %v2071 = vmul.f32 %v2028, %v2063
    %v2072 = vmul.f32 %v2030, %v2064
    %v2073 = vmul.f32 %v2032, %v2065
    %v2074 = vmul.f32 %v2034, %v2066
    %2075 = vrot.lane.b32.xlu0 %v170, 52
    %v2076 = vpop.permute.xlu0 %2075
    %v2079 = vsel %vm426, %v2067, 0
    %2081 = vmatpush.msra.mxu0 0.0
    %2082 = vmatpush.msra.mxu0 0.0
    %2083 = vmatpush.msra.mxu0 0.0
    %2084 = vmatpush.msra.mxu0 0.0
    %2085 = vmatpush.msra.mxu0 0.0
    %2086 = vmatpush.msra.mxu0 0.0
    %2087 = vmatpush.msra.mxu0 0.0
    %2088 = vmatpush.msra.mxu0 0.0
    %2089 = vmatpush.msra.mxu0 0.0
    %2090 = vmatpush.msra.mxu0 0.0
    %2091 = vmatpush.msra.mxu0 0.0
    %2092 = vmatpush.msra.mxu0 0.0
    %2093 = vmatpush.msra.mxu0 0.0
    %2094 = vmatpush.msra.mxu0 0.0
    %2095 = vmatpush.msra.mxu0 0.0
    %2096 = vmatpush.msra.mxu0 %v2076
    %2097 = vmatmul.f32.gmra.mxu0 %v2079
    %v2098 = vpop.f32.mrf.mxu0
    %v2099 = vadd.f32 0.0, %v2098
    %2100 = vdwg.mxu0
    %2101 = vrot.lane.b32.xlu0 %v173, 52
    %v2102 = vpop.permute.xlu0 %2101
    %v2105 = vsel %vm426, %v2068, 0
    %2107 = vmatpush.msra.mxu0 0.0
    %2108 = vmatpush.msra.mxu0 0.0
    %2109 = vmatpush.msra.mxu0 0.0
    %2110 = vmatpush.msra.mxu0 0.0
    %2111 = vmatpush.msra.mxu0 0.0
    %2112 = vmatpush.msra.mxu0 0.0
    %2113 = vmatpush.msra.mxu0 0.0
    %2114 = vmatpush.msra.mxu0 0.0
    %2115 = vmatpush.msra.mxu0 0.0
    %2116 = vmatpush.msra.mxu0 0.0
    %2117 = vmatpush.msra.mxu0 0.0
    %2118 = vmatpush.msra.mxu0 0.0
    %2119 = vmatpush.msra.mxu0 0.0
    %2120 = vmatpush.msra.mxu0 0.0
    %2121 = vmatpush.msra.mxu0 0.0
    %2122 = vmatpush.msra.mxu0 %v2102
    %2123 = vmatmul.f32.gmra.mxu0 %v2105
    %v2124 = vpop.f32.mrf.mxu0
    %v2125 = vadd.f32 0.0, %v2124
    %2126 = vdwg.mxu0
    %2127 = vrot.lane.b32.xlu0 %v176, 52
    %v2128 = vpop.permute.xlu0 %2127
    %v2131 = vsel %vm426, %v2069, 0
    %2133 = vmatpush.msra.mxu0 0.0
    %2134 = vmatpush.msra.mxu0 0.0
    %2135 = vmatpush.msra.mxu0 0.0
    %2136 = vmatpush.msra.mxu0 0.0
    %2137 = vmatpush.msra.mxu0 0.0
    %2138 = vmatpush.msra.mxu0 0.0
    %2139 = vmatpush.msra.mxu0 0.0
    %2140 = vmatpush.msra.mxu0 0.0
    %2141 = vmatpush.msra.mxu0 0.0
    %2142 = vmatpush.msra.mxu0 0.0
    %2143 = vmatpush.msra.mxu0 0.0
    %2144 = vmatpush.msra.mxu0 0.0
    %2145 = vmatpush.msra.mxu0 0.0
    %2146 = vmatpush.msra.mxu0 0.0
    %2147 = vmatpush.msra.mxu0 0.0
    %2148 = vmatpush.msra.mxu0 %v2128
    %2149 = vmatmul.f32.gmra.mxu0 %v2131
    %v2150 = vpop.f32.mrf.mxu0
    %v2151 = vadd.f32 0.0, %v2150
    %2152 = vdwg.mxu0
    %2153 = vrot.lane.b32.xlu0 %v179, 52
    %v2154 = vpop.permute.xlu0 %2153
    %v2157 = vsel %vm426, %v2070, 0
    %2159 = vmatpush.msra.mxu0 0.0
    %2160 = vmatpush.msra.mxu0 0.0
    %2161 = vmatpush.msra.mxu0 0.0
    %2162 = vmatpush.msra.mxu0 0.0
    %2163 = vmatpush.msra.mxu0 0.0
    %2164 = vmatpush.msra.mxu0 0.0
    %2165 = vmatpush.msra.mxu0 0.0
    %2166 = vmatpush.msra.mxu0 0.0
    %2167 = vmatpush.msra.mxu0 0.0
    %2168 = vmatpush.msra.mxu0 0.0
    %2169 = vmatpush.msra.mxu0 0.0
    %2170 = vmatpush.msra.mxu0 0.0
    %2171 = vmatpush.msra.mxu0 0.0
    %2172 = vmatpush.msra.mxu0 0.0
    %2173 = vmatpush.msra.mxu0 0.0
    %2174 = vmatpush.msra.mxu0 %v2154
    %2175 = vmatmul.f32.gmra.mxu0 %v2157
    %v2176 = vpop.f32.mrf.mxu0
    %v2177 = vadd.f32 0.0, %v2176
    %2178 = vdwg.mxu0
    %2179 = vrot.lane.b32.xlu0 %v182, 52
    %v2180 = vpop.permute.xlu0 %2179
    %v2183 = vsel %vm426, %v2071, 0
    %2185 = vmatpush.msra.mxu0 0.0
    %2186 = vmatpush.msra.mxu0 0.0
    %2187 = vmatpush.msra.mxu0 0.0
    %2188 = vmatpush.msra.mxu0 0.0
    %2189 = vmatpush.msra.mxu0 0.0
    %2190 = vmatpush.msra.mxu0 0.0
    %2191 = vmatpush.msra.mxu0 0.0
    %2192 = vmatpush.msra.mxu0 0.0
    %2193 = vmatpush.msra.mxu0 0.0
    %2194 = vmatpush.msra.mxu0 0.0
    %2195 = vmatpush.msra.mxu0 0.0
    %2196 = vmatpush.msra.mxu0 0.0
    %2197 = vmatpush.msra.mxu0 0.0
    %2198 = vmatpush.msra.mxu0 0.0
    %2199 = vmatpush.msra.mxu0 0.0
    %2200 = vmatpush.msra.mxu0 %v2180
    %2201 = vmatmul.f32.gmra.mxu0 %v2183
    %v2202 = vpop.f32.mrf.mxu0
    %v2203 = vadd.f32 0.0, %v2202
    %2204 = vdwg.mxu0
    %2205 = vrot.lane.b32.xlu0 %v185, 52
    %v2206 = vpop.permute.xlu0 %2205
    %v2209 = vsel %vm426, %v2072, 0
    %2211 = vmatpush.msra.mxu0 0.0
    %2212 = vmatpush.msra.mxu0 0.0
    %2213 = vmatpush.msra.mxu0 0.0
    %2214 = vmatpush.msra.mxu0 0.0
    %2215 = vmatpush.msra.mxu0 0.0
    %2216 = vmatpush.msra.mxu0 0.0
    %2217 = vmatpush.msra.mxu0 0.0
    %2218 = vmatpush.msra.mxu0 0.0
    %2219 = vmatpush.msra.mxu0 0.0
    %2220 = vmatpush.msra.mxu0 0.0
    %2221 = vmatpush.msra.mxu0 0.0
    %2222 = vmatpush.msra.mxu0 0.0
    %2223 = vmatpush.msra.mxu0 0.0
    %2224 = vmatpush.msra.mxu0 0.0
    %2225 = vmatpush.msra.mxu0 0.0
    %2226 = vmatpush.msra.mxu0 %v2206
    %2227 = vmatmul.f32.gmra.mxu0 %v2209
    %v2228 = vpop.f32.mrf.mxu0
    %v2229 = vadd.f32 0.0, %v2228
    %2230 = vdwg.mxu0
    %2231 = vrot.lane.b32.xlu0 %v188, 52
    %v2232 = vpop.permute.xlu0 %2231
    %v2235 = vsel %vm426, %v2073, 0
    %2237 = vmatpush.msra.mxu0 0.0
    %2238 = vmatpush.msra.mxu0 0.0
    %2239 = vmatpush.msra.mxu0 0.0
    %2240 = vmatpush.msra.mxu0 0.0
    %2241 = vmatpush.msra.mxu0 0.0
    %2242 = vmatpush.msra.mxu0 0.0
    %2243 = vmatpush.msra.mxu0 0.0
    %2244 = vmatpush.msra.mxu0 0.0
    %2245 = vmatpush.msra.mxu0 0.0
    %2246 = vmatpush.msra.mxu0 0.0
    %2247 = vmatpush.msra.mxu0 0.0
    %2248 = vmatpush.msra.mxu0 0.0
    %2249 = vmatpush.msra.mxu0 0.0
    %2250 = vmatpush.msra.mxu0 0.0
    %2251 = vmatpush.msra.mxu0 0.0
    %2252 = vmatpush.msra.mxu0 %v2232
    %2253 = vmatmul.f32.gmra.mxu0 %v2235
    %v2254 = vpop.f32.mrf.mxu0
    %v2255 = vadd.f32 0.0, %v2254
    %2256 = vdwg.mxu0
    %2257 = vrot.lane.b32.xlu0 %v191, 52
    %v2258 = vpop.permute.xlu0 %2257
    %v2261 = vsel %vm426, %v2074, 0
    %2263 = vmatpush.msra.mxu0 0.0
    %2264 = vmatpush.msra.mxu0 0.0
    %2265 = vmatpush.msra.mxu0 0.0
    %2266 = vmatpush.msra.mxu0 0.0
    %2267 = vmatpush.msra.mxu0 0.0
    %2268 = vmatpush.msra.mxu0 0.0
    %2269 = vmatpush.msra.mxu0 0.0
    %2270 = vmatpush.msra.mxu0 0.0
    %2271 = vmatpush.msra.mxu0 0.0
    %2272 = vmatpush.msra.mxu0 0.0
    %2273 = vmatpush.msra.mxu0 0.0
    %2274 = vmatpush.msra.mxu0 0.0
    %2275 = vmatpush.msra.mxu0 0.0
    %2276 = vmatpush.msra.mxu0 0.0
    %2277 = vmatpush.msra.mxu0 0.0
    %2278 = vmatpush.msra.mxu0 %v2258
    %2279 = vmatmul.f32.gmra.mxu0 %v2261
    %v2280 = vpop.f32.mrf.mxu0
    %v2281 = vadd.f32 0.0, %v2280
    %2282 = vdwg.mxu0
    %2283 = vrot.lane.b32.xlu0 %v193, 112
    %v2284 = vpop.permute.xlu0 %2283
    %2285 = vrot.lane.b32.xlu0 %v170, 80
    %v2286 = vpop.permute.xlu0 %2285
    %v2287 = vsel %vm204, %v2284, 0
    %v2289 = vsel %vm204, %v2286, 0
    %2291 = vmatpush.xpose.msra.mxu0 0.0
    %2292 = vmatpush.xpose.msra.mxu0 0.0
    %2293 = vmatpush.xpose.msra.mxu0 0.0
    %2294 = vmatpush.xpose.msra.mxu0 0.0
    %2295 = vmatpush.xpose.msra.mxu0 0.0
    %2296 = vmatpush.xpose.msra.mxu0 0.0
    %2297 = vmatpush.xpose.msra.mxu0 0.0
    %2298 = vmatpush.xpose.msra.mxu0 0.0
    %2299 = vmatpush.xpose.msra.mxu0 0.0
    %2300 = vmatpush.xpose.msra.mxu0 0.0
    %2301 = vmatpush.xpose.msra.mxu0 0.0
    %2302 = vmatpush.xpose.msra.mxu0 0.0
    %2303 = vmatpush.xpose.msra.mxu0 0.0
    %2304 = vmatpush.xpose.msra.mxu0 0.0
    %2305 = vmatpush.xpose.msra.mxu0 0.0
    %2306 = vmatpush.xpose.msra.mxu0 %v2289
    %2307 = vmatmul.f32.gmra.mxu0 %v2287
    %v2308 = vpop.f32.mrf.mxu0
    %v2309 = vadd.f32 0.0, %v2308
    %2310 = vdwg.mxu0
    %2311 = vrot.lane.b32.xlu0 %v194, 112
    %v2312 = vpop.permute.xlu0 %2311
    %2313 = vrot.lane.b32.xlu0 %v173, 80
    %v2314 = vpop.permute.xlu0 %2313
    %v2315 = vsel %vm204, %v2312, 0
    %v2317 = vsel %vm204, %v2314, 0
    %2319 = vmatpush.xpose.msra.mxu0 0.0
    %2320 = vmatpush.xpose.msra.mxu0 0.0
    %2321 = vmatpush.xpose.msra.mxu0 0.0
    %2322 = vmatpush.xpose.msra.mxu0 0.0
    %2323 = vmatpush.xpose.msra.mxu0 0.0
    %2324 = vmatpush.xpose.msra.mxu0 0.0
    %2325 = vmatpush.xpose.msra.mxu0 0.0
    %2326 = vmatpush.xpose.msra.mxu0 0.0
    %2327 = vmatpush.xpose.msra.mxu0 0.0
    %2328 = vmatpush.xpose.msra.mxu0 0.0
    %2329 = vmatpush.xpose.msra.mxu0 0.0
    %2330 = vmatpush.xpose.msra.mxu0 0.0
    %2331 = vmatpush.xpose.msra.mxu0 0.0
    %2332 = vmatpush.xpose.msra.mxu0 0.0
    %2333 = vmatpush.xpose.msra.mxu0 0.0
    %2334 = vmatpush.xpose.msra.mxu0 %v2317
    %2335 = vmatmul.f32.gmra.mxu0 %v2315
    %v2336 = vpop.f32.mrf.mxu0
    %v2337 = vadd.f32 0.0, %v2336
    %2338 = vdwg.mxu0
    %2339 = vrot.lane.b32.xlu0 %v195, 112
    %v2340 = vpop.permute.xlu0 %2339
    %2341 = vrot.lane.b32.xlu0 %v176, 80
    %v2342 = vpop.permute.xlu0 %2341
    %v2343 = vsel %vm204, %v2340, 0
    %v2345 = vsel %vm204, %v2342, 0
    %2347 = vmatpush.xpose.msra.mxu0 0.0
    %2348 = vmatpush.xpose.msra.mxu0 0.0
    %2349 = vmatpush.xpose.msra.mxu0 0.0
    %2350 = vmatpush.xpose.msra.mxu0 0.0
    %2351 = vmatpush.xpose.msra.mxu0 0.0
    %2352 = vmatpush.xpose.msra.mxu0 0.0
    %2353 = vmatpush.xpose.msra.mxu0 0.0
    %2354 = vmatpush.xpose.msra.mxu0 0.0
    %2355 = vmatpush.xpose.msra.mxu0 0.0
    %2356 = vmatpush.xpose.msra.mxu0 0.0
    %2357 = vmatpush.xpose.msra.mxu0 0.0
    %2358 = vmatpush.xpose.msra.mxu0 0.0
    %2359 = vmatpush.xpose.msra.mxu0 0.0
    %2360 = vmatpush.xpose.msra.mxu0 0.0
    %2361 = vmatpush.xpose.msra.mxu0 0.0
    %2362 = vmatpush.xpose.msra.mxu0 %v2345
    %2363 = vmatmul.f32.gmra.mxu0 %v2343
    %v2364 = vpop.f32.mrf.mxu0
    %v2365 = vadd.f32 0.0, %v2364
    %2366 = vdwg.mxu0
    %2367 = vrot.lane.b32.xlu0 %v196, 112
    %v2368 = vpop.permute.xlu0 %2367
    %2369 = vrot.lane.b32.xlu0 %v179, 80
    %v2370 = vpop.permute.xlu0 %2369
    %v2371 = vsel %vm204, %v2368, 0
    %v2373 = vsel %vm204, %v2370, 0
    %2375 = vmatpush.xpose.msra.mxu0 0.0
    %2376 = vmatpush.xpose.msra.mxu0 0.0
    %2377 = vmatpush.xpose.msra.mxu0 0.0
    %2378 = vmatpush.xpose.msra.mxu0 0.0
    %2379 = vmatpush.xpose.msra.mxu0 0.0
    %2380 = vmatpush.xpose.msra.mxu0 0.0
    %2381 = vmatpush.xpose.msra.mxu0 0.0
    %2382 = vmatpush.xpose.msra.mxu0 0.0
    %2383 = vmatpush.xpose.msra.mxu0 0.0
    %2384 = vmatpush.xpose.msra.mxu0 0.0
    %2385 = vmatpush.xpose.msra.mxu0 0.0
    %2386 = vmatpush.xpose.msra.mxu0 0.0
    %2387 = vmatpush.xpose.msra.mxu0 0.0
    %2388 = vmatpush.xpose.msra.mxu0 0.0
    %2389 = vmatpush.xpose.msra.mxu0 0.0
    %2390 = vmatpush.xpose.msra.mxu0 %v2373
    %2391 = vmatmul.f32.gmra.mxu0 %v2371
    %v2392 = vpop.f32.mrf.mxu0
    %v2393 = vadd.f32 0.0, %v2392
    %2394 = vdwg.mxu0
    %2395 = vrot.lane.b32.xlu0 %v197, 112
    %v2396 = vpop.permute.xlu0 %2395
    %2397 = vrot.lane.b32.xlu0 %v182, 80
    %v2398 = vpop.permute.xlu0 %2397
    %v2399 = vsel %vm204, %v2396, 0
    %v2401 = vsel %vm204, %v2398, 0
    %2403 = vmatpush.xpose.msra.mxu0 0.0
    %2404 = vmatpush.xpose.msra.mxu0 0.0
    %2405 = vmatpush.xpose.msra.mxu0 0.0
    %2406 = vmatpush.xpose.msra.mxu0 0.0
    %2407 = vmatpush.xpose.msra.mxu0 0.0
    %2408 = vmatpush.xpose.msra.mxu0 0.0
    %2409 = vmatpush.xpose.msra.mxu0 0.0
    %2410 = vmatpush.xpose.msra.mxu0 0.0
    %2411 = vmatpush.xpose.msra.mxu0 0.0
    %2412 = vmatpush.xpose.msra.mxu0 0.0
    %2413 = vmatpush.xpose.msra.mxu0 0.0
    %2414 = vmatpush.xpose.msra.mxu0 0.0
    %2415 = vmatpush.xpose.msra.mxu0 0.0
    %2416 = vmatpush.xpose.msra.mxu0 0.0
    %2417 = vmatpush.xpose.msra.mxu0 0.0
    %2418 = vmatpush.xpose.msra.mxu0 %v2401
    %2419 = vmatmul.f32.gmra.mxu0 %v2399
    %v2420 = vpop.f32.mrf.mxu0
    %v2421 = vadd.f32 0.0, %v2420
    %2422 = vdwg.mxu0
    %2423 = vrot.lane.b32.xlu0 %v198, 112
    %v2424 = vpop.permute.xlu0 %2423
    %2425 = vrot.lane.b32.xlu0 %v185, 80
    %v2426 = vpop.permute.xlu0 %2425
    %v2427 = vsel %vm204, %v2424, 0
    %v2429 = vsel %vm204, %v2426, 0
    %2431 = vmatpush.xpose.msra.mxu0 0.0
    %2432 = vmatpush.xpose.msra.mxu0 0.0
    %2433 = vmatpush.xpose.msra.mxu0 0.0
    %2434 = vmatpush.xpose.msra.mxu0 0.0
    %2435 = vmatpush.xpose.msra.mxu0 0.0
    %2436 = vmatpush.xpose.msra.mxu0 0.0
    %2437 = vmatpush.xpose.msra.mxu0 0.0
    %2438 = vmatpush.xpose.msra.mxu0 0.0
    %2439 = vmatpush.xpose.msra.mxu0 0.0
    %2440 = vmatpush.xpose.msra.mxu0 0.0
    %2441 = vmatpush.xpose.msra.mxu0 0.0
    %2442 = vmatpush.xpose.msra.mxu0 0.0
    %2443 = vmatpush.xpose.msra.mxu0 0.0
    %2444 = vmatpush.xpose.msra.mxu0 0.0
    %2445 = vmatpush.xpose.msra.mxu0 0.0
    %2446 = vmatpush.xpose.msra.mxu0 %v2429
    %2447 = vmatmul.f32.gmra.mxu0 %v2427
    %v2448 = vpop.f32.mrf.mxu0
    %v2449 = vadd.f32 0.0, %v2448
    %2450 = vdwg.mxu0
    %2451 = vrot.lane.b32.xlu0 %v199, 112
    %v2452 = vpop.permute.xlu0 %2451
    %2453 = vrot.lane.b32.xlu0 %v188, 80
    %v2454 = vpop.permute.xlu0 %2453
    %v2455 = vsel %vm204, %v2452, 0
    %v2457 = vsel %vm204, %v2454, 0
    %2459 = vmatpush.xpose.msra.mxu0 0.0
    %2460 = vmatpush.xpose.msra.mxu0 0.0
    %2461 = vmatpush.xpose.msra.mxu0 0.0
    %2462 = vmatpush.xpose.msra.mxu0 0.0
    %2463 = vmatpush.xpose.msra.mxu0 0.0
    %2464 = vmatpush.xpose.msra.mxu0 0.0
    %2465 = vmatpush.xpose.msra.mxu0 0.0
    %2466 = vmatpush.xpose.msra.mxu0 0.0
    %2467 = vmatpush.xpose.msra.mxu0 0.0
    %2468 = vmatpush.xpose.msra.mxu0 0.0
    %2469 = vmatpush.xpose.msra.mxu0 0.0
    %2470 = vmatpush.xpose.msra.mxu0 0.0
    %2471 = vmatpush.xpose.msra.mxu0 0.0
    %2472 = vmatpush.xpose.msra.mxu0 0.0
    %2473 = vmatpush.xpose.msra.mxu0 0.0
    %2474 = vmatpush.xpose.msra.mxu0 %v2457
    %2475 = vmatmul.f32.gmra.mxu0 %v2455
    %v2476 = vpop.f32.mrf.mxu0
    %v2477 = vadd.f32 0.0, %v2476
    %2478 = vdwg.mxu0
    %2479 = vrot.lane.b32.xlu0 %v200, 112
    %v2480 = vpop.permute.xlu0 %2479
    %2481 = vrot.lane.b32.xlu0 %v191, 80
    %v2482 = vpop.permute.xlu0 %2481
    %v2483 = vsel %vm204, %v2480, 0
    %v2485 = vsel %vm204, %v2482, 0
    %2487 = vmatpush.xpose.msra.mxu0 0.0
    %2488 = vmatpush.xpose.msra.mxu0 0.0
    %2489 = vmatpush.xpose.msra.mxu0 0.0
    %2490 = vmatpush.xpose.msra.mxu0 0.0
    %2491 = vmatpush.xpose.msra.mxu0 0.0
    %2492 = vmatpush.xpose.msra.mxu0 0.0
    %2493 = vmatpush.xpose.msra.mxu0 0.0
    %2494 = vmatpush.xpose.msra.mxu0 0.0
    %2495 = vmatpush.xpose.msra.mxu0 0.0
    %2496 = vmatpush.xpose.msra.mxu0 0.0
    %2497 = vmatpush.xpose.msra.mxu0 0.0
    %2498 = vmatpush.xpose.msra.mxu0 0.0
    %2499 = vmatpush.xpose.msra.mxu0 0.0
    %2500 = vmatpush.xpose.msra.mxu0 0.0
    %2501 = vmatpush.xpose.msra.mxu0 0.0
    %2502 = vmatpush.xpose.msra.mxu0 %v2485
    %2503 = vmatmul.f32.gmra.mxu0 %v2483
    %v2504 = vpop.f32.mrf.mxu0
    %v2505 = vadd.f32 0.0, %v2504
    %2506 = vdwg.mxu0
    %v2507 = vsel %vm426, %v2309, -inf
    %2508 = vmax.xlane.f32.xlu0 %v2507
    %v2509 = vpop.xlane.xlu0 %2508
    %v2510 = vsel %vm426, %v2337, -inf
    %2511 = vmax.xlane.f32.xlu0 %v2510
    %v2512 = vpop.xlane.xlu0 %2511
    %v2513 = vsel %vm426, %v2365, -inf
    %2514 = vmax.xlane.f32.xlu0 %v2513
    %v2515 = vpop.xlane.xlu0 %2514
    %v2516 = vsel %vm426, %v2393, -inf
    %2517 = vmax.xlane.f32.xlu0 %v2516
    %v2518 = vpop.xlane.xlu0 %2517
    %v2519 = vsel %vm426, %v2421, -inf
    %2520 = vmax.xlane.f32.xlu0 %v2519
    %v2521 = vpop.xlane.xlu0 %2520
    %v2522 = vsel %vm426, %v2449, -inf
    %2523 = vmax.xlane.f32.xlu0 %v2522
    %v2524 = vpop.xlane.xlu0 %2523
    %v2525 = vsel %vm426, %v2477, -inf
    %2526 = vmax.xlane.f32.xlu0 %v2525
    %v2527 = vpop.xlane.xlu0 %2526
    %v2528 = vsel %vm426, %v2505, -inf
    %2529 = vmax.xlane.f32.xlu0 %v2528
    %v2530 = vpop.xlane.xlu0 %2529
    %v2531 = vsub.f32 %v2309, %v2509
    %v2532 = vsub.f32 %v2337, %v2512
    %v2533 = vsub.f32 %v2365, %v2515
    %v2534 = vsub.f32 %v2393, %v2518
    %v2535 = vsub.f32 %v2421, %v2521
    %v2536 = vsub.f32 %v2449, %v2524
    %v2537 = vsub.f32 %v2477, %v2527
    %v2538 = vsub.f32 %v2505, %v2530
    %v2539 = vmul.f32 %v2531, 1.442695
    %v2540 = vpow.pop %v2539
    %v2541 = vmul.f32 %v2532, 1.442695
    %v2542 = vpow.pop %v2541
    %v2543 = vmul.f32 %v2533, 1.442695
    %v2544 = vpow.pop %v2543
    %v2545 = vmul.f32 %v2534, 1.442695
    %v2546 = vpow.pop %v2545
    %v2547 = vmul.f32 %v2535, 1.442695
    %v2548 = vpow.pop %v2547
    %v2549 = vmul.f32 %v2536, 1.442695
    %v2550 = vpow.pop %v2549
    %v2551 = vmul.f32 %v2537, 1.442695
    %v2552 = vpow.pop %v2551
    %v2553 = vmul.f32 %v2538, 1.442695
    %v2554 = vpow.pop %v2553
    %v2555 = vsel %vm426, %v2540, 0.0
    %2556 = vadd.xlane.f32.xlu0 %v2555
    %v2557 = vpop.xlane.xlu0 %2556
    %v2558 = vsel %vm426, %v2542, 0.0
    %2559 = vadd.xlane.f32.xlu0 %v2558
    %v2560 = vpop.xlane.xlu0 %2559
    %v2561 = vsel %vm426, %v2544, 0.0
    %2562 = vadd.xlane.f32.xlu0 %v2561
    %v2563 = vpop.xlane.xlu0 %2562
    %v2564 = vsel %vm426, %v2546, 0.0
    %2565 = vadd.xlane.f32.xlu0 %v2564
    %v2566 = vpop.xlane.xlu0 %2565
    %v2567 = vsel %vm426, %v2548, 0.0
    %2568 = vadd.xlane.f32.xlu0 %v2567
    %v2569 = vpop.xlane.xlu0 %2568
    %v2570 = vsel %vm426, %v2550, 0.0
    %2571 = vadd.xlane.f32.xlu0 %v2570
    %v2572 = vpop.xlane.xlu0 %2571
    %v2573 = vsel %vm426, %v2552, 0.0
    %2574 = vadd.xlane.f32.xlu0 %v2573
    %v2575 = vpop.xlane.xlu0 %2574
    %v2576 = vsel %vm426, %v2554, 0.0
    %2577 = vadd.xlane.f32.xlu0 %v2576
    %v2578 = vpop.xlane.xlu0 %2577
    %v2579 = vrcp.pop %v2557
    %v2580 = vrcp.pop %v2560
    %v2581 = vrcp.pop %v2563
    %v2582 = vrcp.pop %v2566
    %v2583 = vrcp.pop %v2569
    %v2584 = vrcp.pop %v2572
    %v2585 = vrcp.pop %v2575
    %v2586 = vrcp.pop %v2578
    %v2587 = vmul.f32 %v2540, %v2579
    %v2588 = vmul.f32 %v2542, %v2580
    %v2589 = vmul.f32 %v2544, %v2581
    %v2590 = vmul.f32 %v2546, %v2582
    %v2591 = vmul.f32 %v2548, %v2583
    %v2592 = vmul.f32 %v2550, %v2584
    %v2593 = vmul.f32 %v2552, %v2585
    %v2594 = vmul.f32 %v2554, %v2586
    %2595 = vrot.lane.b32.xlu0 %v170, 48
    %v2596 = vpop.permute.xlu0 %2595
    %v2599 = vsel %vm426, %v2587, 0
    %2601 = vmatpush.msra.mxu0 0.0
    %2602 = vmatpush.msra.mxu0 0.0
    %2603 = vmatpush.msra.mxu0 0.0
    %2604 = vmatpush.msra.mxu0 0.0
    %2605 = vmatpush.msra.mxu0 0.0
    %2606 = vmatpush.msra.mxu0 0.0
    %2607 = vmatpush.msra.mxu0 0.0
    %2608 = vmatpush.msra.mxu0 0.0
    %2609 = vmatpush.msra.mxu0 0.0
    %2610 = vmatpush.msra.mxu0 0.0
    %2611 = vmatpush.msra.mxu0 0.0
    %2612 = vmatpush.msra.mxu0 0.0
    %2613 = vmatpush.msra.mxu0 0.0
    %2614 = vmatpush.msra.mxu0 0.0
    %2615 = vmatpush.msra.mxu0 0.0
    %2616 = vmatpush.msra.mxu0 %v2596
    %2617 = vmatmul.f32.gmra.mxu0 %v2599
    %v2618 = vpop.f32.mrf.mxu0
    %v2619 = vadd.f32 0.0, %v2618
    %2620 = vdwg.mxu0
    %2621 = vrot.lane.b32.xlu0 %v173, 48
    %v2622 = vpop.permute.xlu0 %2621
    %v2625 = vsel %vm426, %v2588, 0
    %2627 = vmatpush.msra.mxu0 0.0
    %2628 = vmatpush.msra.mxu0 0.0
    %2629 = vmatpush.msra.mxu0 0.0
    %2630 = vmatpush.msra.mxu0 0.0
    %2631 = vmatpush.msra.mxu0 0.0
    %2632 = vmatpush.msra.mxu0 0.0
    %2633 = vmatpush.msra.mxu0 0.0
    %2634 = vmatpush.msra.mxu0 0.0
    %2635 = vmatpush.msra.mxu0 0.0
    %2636 = vmatpush.msra.mxu0 0.0
    %2637 = vmatpush.msra.mxu0 0.0
    %2638 = vmatpush.msra.mxu0 0.0
    %2639 = vmatpush.msra.mxu0 0.0
    %2640 = vmatpush.msra.mxu0 0.0
    %2641 = vmatpush.msra.mxu0 0.0
    %2642 = vmatpush.msra.mxu0 %v2622
    %2643 = vmatmul.f32.gmra.mxu0 %v2625
    %v2644 = vpop.f32.mrf.mxu0
    %v2645 = vadd.f32 0.0, %v2644
    %2646 = vdwg.mxu0
    %2647 = vrot.lane.b32.xlu0 %v176, 48
    %v2648 = vpop.permute.xlu0 %2647
    %v2651 = vsel %vm426, %v2589, 0
    %2653 = vmatpush.msra.mxu0 0.0
    %2654 = vmatpush.msra.mxu0 0.0
    %2655 = vmatpush.msra.mxu0 0.0
    %2656 = vmatpush.msra.mxu0 0.0
    %2657 = vmatpush.msra.mxu0 0.0
    %2658 = vmatpush.msra.mxu0 0.0
    %2659 = vmatpush.msra.mxu0 0.0
    %2660 = vmatpush.msra.mxu0 0.0
    %2661 = vmatpush.msra.mxu0 0.0
    %2662 = vmatpush.msra.mxu0 0.0
    %2663 = vmatpush.msra.mxu0 0.0
    %2664 = vmatpush.msra.mxu0 0.0
    %2665 = vmatpush.msra.mxu0 0.0
    %2666 = vmatpush.msra.mxu0 0.0
    %2667 = vmatpush.msra.mxu0 0.0
    %2668 = vmatpush.msra.mxu0 %v2648
    %2669 = vmatmul.f32.gmra.mxu0 %v2651
    %v2670 = vpop.f32.mrf.mxu0
    %v2671 = vadd.f32 0.0, %v2670
    %2672 = vdwg.mxu0
    %2673 = vrot.lane.b32.xlu0 %v179, 48
    %v2674 = vpop.permute.xlu0 %2673
    %v2677 = vsel %vm426, %v2590, 0
    %2679 = vmatpush.msra.mxu0 0.0
    %2680 = vmatpush.msra.mxu0 0.0
    %2681 = vmatpush.msra.mxu0 0.0
    %2682 = vmatpush.msra.mxu0 0.0
    %2683 = vmatpush.msra.mxu0 0.0
    %2684 = vmatpush.msra.mxu0 0.0
    %2685 = vmatpush.msra.mxu0 0.0
    %2686 = vmatpush.msra.mxu0 0.0
    %2687 = vmatpush.msra.mxu0 0.0
    %2688 = vmatpush.msra.mxu0 0.0
    %2689 = vmatpush.msra.mxu0 0.0
    %2690 = vmatpush.msra.mxu0 0.0
    %2691 = vmatpush.msra.mxu0 0.0
    %2692 = vmatpush.msra.mxu0 0.0
    %2693 = vmatpush.msra.mxu0 0.0
    %2694 = vmatpush.msra.mxu0 %v2674
    %2695 = vmatmul.f32.gmra.mxu0 %v2677
    %v2696 = vpop.f32.mrf.mxu0
    %v2697 = vadd.f32 0.0, %v2696
    %2698 = vdwg.mxu0
    %2699 = vrot.lane.b32.xlu0 %v182, 48
    %v2700 = vpop.permute.xlu0 %2699
    %v2703 = vsel %vm426, %v2591, 0
    %2705 = vmatpush.msra.mxu0 0.0
    %2706 = vmatpush.msra.mxu0 0.0
    %2707 = vmatpush.msra.mxu0 0.0
    %2708 = vmatpush.msra.mxu0 0.0
    %2709 = vmatpush.msra.mxu0 0.0
    %2710 = vmatpush.msra.mxu0 0.0
    %2711 = vmatpush.msra.mxu0 0.0
    %2712 = vmatpush.msra.mxu0 0.0
    %2713 = vmatpush.msra.mxu0 0.0
    %2714 = vmatpush.msra.mxu0 0.0
    %2715 = vmatpush.msra.mxu0 0.0
    %2716 = vmatpush.msra.mxu0 0.0
    %2717 = vmatpush.msra.mxu0 0.0
    %2718 = vmatpush.msra.mxu0 0.0
    %2719 = vmatpush.msra.mxu0 0.0
    %2720 = vmatpush.msra.mxu0 %v2700
    %2721 = vmatmul.f32.gmra.mxu0 %v2703
    %v2722 = vpop.f32.mrf.mxu0
    %v2723 = vadd.f32 0.0, %v2722
    %2724 = vdwg.mxu0
    %2725 = vrot.lane.b32.xlu0 %v185, 48
    %v2726 = vpop.permute.xlu0 %2725
    %v2729 = vsel %vm426, %v2592, 0
    %2731 = vmatpush.msra.mxu0 0.0
    %2732 = vmatpush.msra.mxu0 0.0
    %2733 = vmatpush.msra.mxu0 0.0
    %2734 = vmatpush.msra.mxu0 0.0
    %2735 = vmatpush.msra.mxu0 0.0
    %2736 = vmatpush.msra.mxu0 0.0
    %2737 = vmatpush.msra.mxu0 0.0
    %2738 = vmatpush.msra.mxu0 0.0
    %2739 = vmatpush.msra.mxu0 0.0
    %2740 = vmatpush.msra.mxu0 0.0
    %2741 = vmatpush.msra.mxu0 0.0
    %2742 = vmatpush.msra.mxu0 0.0
    %2743 = vmatpush.msra.mxu0 0.0
    %2744 = vmatpush.msra.mxu0 0.0
    %2745 = vmatpush.msra.mxu0 0.0
    %2746 = vmatpush.msra.mxu0 %v2726
    %2747 = vmatmul.f32.gmra.mxu0 %v2729
    %v2748 = vpop.f32.mrf.mxu0
    %v2749 = vadd.f32 0.0, %v2748
    %2750 = vdwg.mxu0
    %2751 = vrot.lane.b32.xlu0 %v188, 48
    %v2752 = vpop.permute.xlu0 %2751
    %v2755 = vsel %vm426, %v2593, 0
    %2757 = vmatpush.msra.mxu0 0.0
    %2758 = vmatpush.msra.mxu0 0.0
    %2759 = vmatpush.msra.mxu0 0.0
    %2760 = vmatpush.msra.mxu0 0.0
    %2761 = vmatpush.msra.mxu0 0.0
    %2762 = vmatpush.msra.mxu0 0.0
    %2763 = vmatpush.msra.mxu0 0.0
    %2764 = vmatpush.msra.mxu0 0.0
    %2765 = vmatpush.msra.mxu0 0.0
    %2766 = vmatpush.msra.mxu0 0.0
    %2767 = vmatpush.msra.mxu0 0.0
    %2768 = vmatpush.msra.mxu0 0.0
    %2769 = vmatpush.msra.mxu0 0.0
    %2770 = vmatpush.msra.mxu0 0.0
    %2771 = vmatpush.msra.mxu0 0.0
    %2772 = vmatpush.msra.mxu0 %v2752
    %2773 = vmatmul.f32.gmra.mxu0 %v2755
    %v2774 = vpop.f32.mrf.mxu0
    %v2775 = vadd.f32 0.0, %v2774
    %2776 = vdwg.mxu0
    %2777 = vrot.lane.b32.xlu0 %v191, 48
    %v2778 = vpop.permute.xlu0 %2777
    %v2781 = vsel %vm426, %v2594, 0
    %2783 = vmatpush.msra.mxu0 0.0
    %2784 = vmatpush.msra.mxu0 0.0
    %2785 = vmatpush.msra.mxu0 0.0
    %2786 = vmatpush.msra.mxu0 0.0
    %2787 = vmatpush.msra.mxu0 0.0
    %2788 = vmatpush.msra.mxu0 0.0
    %2789 = vmatpush.msra.mxu0 0.0
    %2790 = vmatpush.msra.mxu0 0.0
    %2791 = vmatpush.msra.mxu0 0.0
    %2792 = vmatpush.msra.mxu0 0.0
    %2793 = vmatpush.msra.mxu0 0.0
    %2794 = vmatpush.msra.mxu0 0.0
    %2795 = vmatpush.msra.mxu0 0.0
    %2796 = vmatpush.msra.mxu0 0.0
    %2797 = vmatpush.msra.mxu0 0.0
    %2798 = vmatpush.msra.mxu0 %v2778
    %2799 = vmatmul.f32.gmra.mxu0 %v2781
    %v2800 = vpop.f32.mrf.mxu0
    %v2801 = vadd.f32 0.0, %v2800
    %2802 = vdwg.mxu0
    %2803 = vrot.lane.b32.xlu0 %v193, 108
    %v2804 = vpop.permute.xlu0 %2803
    %2805 = vrot.lane.b32.xlu0 %v170, 76
    %v2806 = vpop.permute.xlu0 %2805
    %v2807 = vsel %vm204, %v2804, 0
    %v2809 = vsel %vm204, %v2806, 0
    %2811 = vmatpush.xpose.msra.mxu0 0.0
    %2812 = vmatpush.xpose.msra.mxu0 0.0
    %2813 = vmatpush.xpose.msra.mxu0 0.0
    %2814 = vmatpush.xpose.msra.mxu0 0.0
    %2815 = vmatpush.xpose.msra.mxu0 0.0
    %2816 = vmatpush.xpose.msra.mxu0 0.0
    %2817 = vmatpush.xpose.msra.mxu0 0.0
    %2818 = vmatpush.xpose.msra.mxu0 0.0
    %2819 = vmatpush.xpose.msra.mxu0 0.0
    %2820 = vmatpush.xpose.msra.mxu0 0.0
    %2821 = vmatpush.xpose.msra.mxu0 0.0
    %2822 = vmatpush.xpose.msra.mxu0 0.0
    %2823 = vmatpush.xpose.msra.mxu0 0.0
    %2824 = vmatpush.xpose.msra.mxu0 0.0
    %2825 = vmatpush.xpose.msra.mxu0 0.0
    %2826 = vmatpush.xpose.msra.mxu0 %v2809
    %2827 = vmatmul.f32.gmra.mxu0 %v2807
    %v2828 = vpop.f32.mrf.mxu0
    %v2829 = vadd.f32 0.0, %v2828
    %2830 = vdwg.mxu0
    %2831 = vrot.lane.b32.xlu0 %v194, 108
    %v2832 = vpop.permute.xlu0 %2831
    %2833 = vrot.lane.b32.xlu0 %v173, 76
    %v2834 = vpop.permute.xlu0 %2833
    %v2835 = vsel %vm204, %v2832, 0
    %v2837 = vsel %vm204, %v2834, 0
    %2839 = vmatpush.xpose.msra.mxu0 0.0
    %2840 = vmatpush.xpose.msra.mxu0 0.0
    %2841 = vmatpush.xpose.msra.mxu0 0.0
    %2842 = vmatpush.xpose.msra.mxu0 0.0
    %2843 = vmatpush.xpose.msra.mxu0 0.0
    %2844 = vmatpush.xpose.msra.mxu0 0.0
    %2845 = vmatpush.xpose.msra.mxu0 0.0
    %2846 = vmatpush.xpose.msra.mxu0 0.0
    %2847 = vmatpush.xpose.msra.mxu0 0.0
    %2848 = vmatpush.xpose.msra.mxu0 0.0
    %2849 = vmatpush.xpose.msra.mxu0 0.0
    %2850 = vmatpush.xpose.msra.mxu0 0.0
    %2851 = vmatpush.xpose.msra.mxu0 0.0
    %2852 = vmatpush.xpose.msra.mxu0 0.0
    %2853 = vmatpush.xpose.msra.mxu0 0.0
    %2854 = vmatpush.xpose.msra.mxu0 %v2837
    %2855 = vmatmul.f32.gmra.mxu0 %v2835
    %v2856 = vpop.f32.mrf.mxu0
    %v2857 = vadd.f32 0.0, %v2856
    %2858 = vdwg.mxu0
    %2859 = vrot.lane.b32.xlu0 %v195, 108
    %v2860 = vpop.permute.xlu0 %2859
    %2861 = vrot.lane.b32.xlu0 %v176, 76
    %v2862 = vpop.permute.xlu0 %2861
    %v2863 = vsel %vm204, %v2860, 0
    %v2865 = vsel %vm204, %v2862, 0
    %2867 = vmatpush.xpose.msra.mxu0 0.0
    %2868 = vmatpush.xpose.msra.mxu0 0.0
    %2869 = vmatpush.xpose.msra.mxu0 0.0
    %2870 = vmatpush.xpose.msra.mxu0 0.0
    %2871 = vmatpush.xpose.msra.mxu0 0.0
    %2872 = vmatpush.xpose.msra.mxu0 0.0
    %2873 = vmatpush.xpose.msra.mxu0 0.0
    %2874 = vmatpush.xpose.msra.mxu0 0.0
    %2875 = vmatpush.xpose.msra.mxu0 0.0
    %2876 = vmatpush.xpose.msra.mxu0 0.0
    %2877 = vmatpush.xpose.msra.mxu0 0.0
    %2878 = vmatpush.xpose.msra.mxu0 0.0
    %2879 = vmatpush.xpose.msra.mxu0 0.0
    %2880 = vmatpush.xpose.msra.mxu0 0.0
    %2881 = vmatpush.xpose.msra.mxu0 0.0
    %2882 = vmatpush.xpose.msra.mxu0 %v2865
    %2883 = vmatmul.f32.gmra.mxu0 %v2863
    %v2884 = vpop.f32.mrf.mxu0
    %v2885 = vadd.f32 0.0, %v2884
    %2886 = vdwg.mxu0
    %2887 = vrot.lane.b32.xlu0 %v196, 108
    %v2888 = vpop.permute.xlu0 %2887
    %2889 = vrot.lane.b32.xlu0 %v179, 76
    %v2890 = vpop.permute.xlu0 %2889
    %v2891 = vsel %vm204, %v2888, 0
    %v2893 = vsel %vm204, %v2890, 0
    %2895 = vmatpush.xpose.msra.mxu0 0.0
    %2896 = vmatpush.xpose.msra.mxu0 0.0
    %2897 = vmatpush.xpose.msra.mxu0 0.0
    %2898 = vmatpush.xpose.msra.mxu0 0.0
    %2899 = vmatpush.xpose.msra.mxu0 0.0
    %2900 = vmatpush.xpose.msra.mxu0 0.0
    %2901 = vmatpush.xpose.msra.mxu0 0.0
    %2902 = vmatpush.xpose.msra.mxu0 0.0
    %2903 = vmatpush.xpose.msra.mxu0 0.0
    %2904 = vmatpush.xpose.msra.mxu0 0.0
    %2905 = vmatpush.xpose.msra.mxu0 0.0
    %2906 = vmatpush.xpose.msra.mxu0 0.0
    %2907 = vmatpush.xpose.msra.mxu0 0.0
    %2908 = vmatpush.xpose.msra.mxu0 0.0
    %2909 = vmatpush.xpose.msra.mxu0 0.0
    %2910 = vmatpush.xpose.msra.mxu0 %v2893
    %2911 = vmatmul.f32.gmra.mxu0 %v2891
    %v2912 = vpop.f32.mrf.mxu0
    %v2913 = vadd.f32 0.0, %v2912
    %2914 = vdwg.mxu0
    %2915 = vrot.lane.b32.xlu0 %v197, 108
    %v2916 = vpop.permute.xlu0 %2915
    %2917 = vrot.lane.b32.xlu0 %v182, 76
    %v2918 = vpop.permute.xlu0 %2917
    %v2919 = vsel %vm204, %v2916, 0
    %v2921 = vsel %vm204, %v2918, 0
    %2923 = vmatpush.xpose.msra.mxu0 0.0
    %2924 = vmatpush.xpose.msra.mxu0 0.0
    %2925 = vmatpush.xpose.msra.mxu0 0.0
    %2926 = vmatpush.xpose.msra.mxu0 0.0
    %2927 = vmatpush.xpose.msra.mxu0 0.0
    %2928 = vmatpush.xpose.msra.mxu0 0.0
    %2929 = vmatpush.xpose.msra.mxu0 0.0
    %2930 = vmatpush.xpose.msra.mxu0 0.0
    %2931 = vmatpush.xpose.msra.mxu0 0.0
    %2932 = vmatpush.xpose.msra.mxu0 0.0
    %2933 = vmatpush.xpose.msra.mxu0 0.0
    %2934 = vmatpush.xpose.msra.mxu0 0.0
    %2935 = vmatpush.xpose.msra.mxu0 0.0
    %2936 = vmatpush.xpose.msra.mxu0 0.0
    %2937 = vmatpush.xpose.msra.mxu0 0.0
    %2938 = vmatpush.xpose.msra.mxu0 %v2921
    %2939 = vmatmul.f32.gmra.mxu0 %v2919
    %v2940 = vpop.f32.mrf.mxu0
    %v2941 = vadd.f32 0.0, %v2940
    %2942 = vdwg.mxu0
    %2943 = vrot.lane.b32.xlu0 %v198, 108
    %v2944 = vpop.permute.xlu0 %2943
    %2945 = vrot.lane.b32.xlu0 %v185, 76
    %v2946 = vpop.permute.xlu0 %2945
    %v2947 = vsel %vm204, %v2944, 0
    %v2949 = vsel %vm204, %v2946, 0
    %2951 = vmatpush.xpose.msra.mxu0 0.0
    %2952 = vmatpush.xpose.msra.mxu0 0.0
    %2953 = vmatpush.xpose.msra.mxu0 0.0
    %2954 = vmatpush.xpose.msra.mxu0 0.0
    %2955 = vmatpush.xpose.msra.mxu0 0.0
    %2956 = vmatpush.xpose.msra.mxu0 0.0
    %2957 = vmatpush.xpose.msra.mxu0 0.0
    %2958 = vmatpush.xpose.msra.mxu0 0.0
    %2959 = vmatpush.xpose.msra.mxu0 0.0
    %2960 = vmatpush.xpose.msra.mxu0 0.0
    %2961 = vmatpush.xpose.msra.mxu0 0.0
    %2962 = vmatpush.xpose.msra.mxu0 0.0
    %2963 = vmatpush.xpose.msra.mxu0 0.0
    %2964 = vmatpush.xpose.msra.mxu0 0.0
    %2965 = vmatpush.xpose.msra.mxu0 0.0
    %2966 = vmatpush.xpose.msra.mxu0 %v2949
    %2967 = vmatmul.f32.gmra.mxu0 %v2947
    %v2968 = vpop.f32.mrf.mxu0
    %v2969 = vadd.f32 0.0, %v2968
    %2970 = vdwg.mxu0
    %2971 = vrot.lane.b32.xlu0 %v199, 108
    %v2972 = vpop.permute.xlu0 %2971
    %2973 = vrot.lane.b32.xlu0 %v188, 76
    %v2974 = vpop.permute.xlu0 %2973
    %v2975 = vsel %vm204, %v2972, 0
    %v2977 = vsel %vm204, %v2974, 0
    %2979 = vmatpush.xpose.msra.mxu0 0.0
    %2980 = vmatpush.xpose.msra.mxu0 0.0
    %2981 = vmatpush.xpose.msra.mxu0 0.0
    %2982 = vmatpush.xpose.msra.mxu0 0.0
    %2983 = vmatpush.xpose.msra.mxu0 0.0
    %2984 = vmatpush.xpose.msra.mxu0 0.0
    %2985 = vmatpush.xpose.msra.mxu0 0.0
    %2986 = vmatpush.xpose.msra.mxu0 0.0
    %2987 = vmatpush.xpose.msra.mxu0 0.0
    %2988 = vmatpush.xpose.msra.mxu0 0.0
    %2989 = vmatpush.xpose.msra.mxu0 0.0
    %2990 = vmatpush.xpose.msra.mxu0 0.0
    %2991 = vmatpush.xpose.msra.mxu0 0.0
    %2992 = vmatpush.xpose.msra.mxu0 0.0
    %2993 = vmatpush.xpose.msra.mxu0 0.0
    %2994 = vmatpush.xpose.msra.mxu0 %v2977
    %2995 = vmatmul.f32.gmra.mxu0 %v2975
    %v2996 = vpop.f32.mrf.mxu0
    %v2997 = vadd.f32 0.0, %v2996
    %2998 = vdwg.mxu0
    %2999 = vrot.lane.b32.xlu0 %v200, 108
    %v3000 = vpop.permute.xlu0 %2999
    %3001 = vrot.lane.b32.xlu0 %v191, 76
    %v3002 = vpop.permute.xlu0 %3001
    %v3003 = vsel %vm204, %v3000, 0
    %v3005 = vsel %vm204, %v3002, 0
    %3007 = vmatpush.xpose.msra.mxu0 0.0
    %3008 = vmatpush.xpose.msra.mxu0 0.0
    %3009 = vmatpush.xpose.msra.mxu0 0.0
    %3010 = vmatpush.xpose.msra.mxu0 0.0
    %3011 = vmatpush.xpose.msra.mxu0 0.0
    %3012 = vmatpush.xpose.msra.mxu0 0.0
    %3013 = vmatpush.xpose.msra.mxu0 0.0
    %3014 = vmatpush.xpose.msra.mxu0 0.0
    %3015 = vmatpush.xpose.msra.mxu0 0.0
    %3016 = vmatpush.xpose.msra.mxu0 0.0
    %3017 = vmatpush.xpose.msra.mxu0 0.0
    %3018 = vmatpush.xpose.msra.mxu0 0.0
    %3019 = vmatpush.xpose.msra.mxu0 0.0
    %3020 = vmatpush.xpose.msra.mxu0 0.0
    %3021 = vmatpush.xpose.msra.mxu0 0.0
    %3022 = vmatpush.xpose.msra.mxu0 %v3005
    %3023 = vmatmul.f32.gmra.mxu0 %v3003
    %v3024 = vpop.f32.mrf.mxu0
    %v3025 = vadd.f32 0.0, %v3024
    %3026 = vdwg.mxu0
    %v3027 = vsel %vm426, %v2829, -inf
    %3028 = vmax.xlane.f32.xlu0 %v3027
    %v3029 = vpop.xlane.xlu0 %3028
    %v3030 = vsel %vm426, %v2857, -inf
    %3031 = vmax.xlane.f32.xlu0 %v3030
    %v3032 = vpop.xlane.xlu0 %3031
    %v3033 = vsel %vm426, %v2885, -inf
    %3034 = vmax.xlane.f32.xlu0 %v3033
    %v3035 = vpop.xlane.xlu0 %3034
    %v3036 = vsel %vm426, %v2913, -inf
    %3037 = vmax.xlane.f32.xlu0 %v3036
    %v3038 = vpop.xlane.xlu0 %3037
    %v3039 = vsel %vm426, %v2941, -inf
    %3040 = vmax.xlane.f32.xlu0 %v3039
    %v3041 = vpop.xlane.xlu0 %3040
    %v3042 = vsel %vm426, %v2969, -inf
    %3043 = vmax.xlane.f32.xlu0 %v3042
    %v3044 = vpop.xlane.xlu0 %3043
    %v3045 = vsel %vm426, %v2997, -inf
    %3046 = vmax.xlane.f32.xlu0 %v3045
    %v3047 = vpop.xlane.xlu0 %3046
    %v3048 = vsel %vm426, %v3025, -inf
    %3049 = vmax.xlane.f32.xlu0 %v3048
    %v3050 = vpop.xlane.xlu0 %3049
    %v3051 = vsub.f32 %v2829, %v3029
    %v3052 = vsub.f32 %v2857, %v3032
    %v3053 = vsub.f32 %v2885, %v3035
    %v3054 = vsub.f32 %v2913, %v3038
    %v3055 = vsub.f32 %v2941, %v3041
    %v3056 = vsub.f32 %v2969, %v3044
    %v3057 = vsub.f32 %v2997, %v3047
    %v3058 = vsub.f32 %v3025, %v3050
    %v3059 = vmul.f32 %v3051, 1.442695
    %v3060 = vpow.pop %v3059
    %v3061 = vmul.f32 %v3052, 1.442695
    %v3062 = vpow.pop %v3061
    %v3063 = vmul.f32 %v3053, 1.442695
    %v3064 = vpow.pop %v3063
    %v3065 = vmul.f32 %v3054, 1.442695
    %v3066 = vpow.pop %v3065
    %v3067 = vmul.f32 %v3055, 1.442695
    %v3068 = vpow.pop %v3067
    %v3069 = vmul.f32 %v3056, 1.442695
    %v3070 = vpow.pop %v3069
    %v3071 = vmul.f32 %v3057, 1.442695
    %v3072 = vpow.pop %v3071
    %v3073 = vmul.f32 %v3058, 1.442695
    %v3074 = vpow.pop %v3073
    %v3075 = vsel %vm426, %v3060, 0.0
    %3076 = vadd.xlane.f32.xlu0 %v3075
    %v3077 = vpop.xlane.xlu0 %3076
    %v3078 = vsel %vm426, %v3062, 0.0
    %3079 = vadd.xlane.f32.xlu0 %v3078
    %v3080 = vpop.xlane.xlu0 %3079
    %v3081 = vsel %vm426, %v3064, 0.0
    %3082 = vadd.xlane.f32.xlu0 %v3081
    %v3083 = vpop.xlane.xlu0 %3082
    %v3084 = vsel %vm426, %v3066, 0.0
    %3085 = vadd.xlane.f32.xlu0 %v3084
    %v3086 = vpop.xlane.xlu0 %3085
    %v3087 = vsel %vm426, %v3068, 0.0
    %3088 = vadd.xlane.f32.xlu0 %v3087
    %v3089 = vpop.xlane.xlu0 %3088
    %v3090 = vsel %vm426, %v3070, 0.0
    %3091 = vadd.xlane.f32.xlu0 %v3090
    %v3092 = vpop.xlane.xlu0 %3091
    %v3093 = vsel %vm426, %v3072, 0.0
    %3094 = vadd.xlane.f32.xlu0 %v3093
    %v3095 = vpop.xlane.xlu0 %3094
    %v3096 = vsel %vm426, %v3074, 0.0
    %3097 = vadd.xlane.f32.xlu0 %v3096
    %v3098 = vpop.xlane.xlu0 %3097
    %v3099 = vrcp.pop %v3077
    %v3100 = vrcp.pop %v3080
    %v3101 = vrcp.pop %v3083
    %v3102 = vrcp.pop %v3086
    %v3103 = vrcp.pop %v3089
    %v3104 = vrcp.pop %v3092
    %v3105 = vrcp.pop %v3095
    %v3106 = vrcp.pop %v3098
    %v3107 = vmul.f32 %v3060, %v3099
    %v3108 = vmul.f32 %v3062, %v3100
    %v3109 = vmul.f32 %v3064, %v3101
    %v3110 = vmul.f32 %v3066, %v3102
    %v3111 = vmul.f32 %v3068, %v3103
    %v3112 = vmul.f32 %v3070, %v3104
    %v3113 = vmul.f32 %v3072, %v3105
    %v3114 = vmul.f32 %v3074, %v3106
    %3115 = vrot.lane.b32.xlu0 %v170, 44
    %v3116 = vpop.permute.xlu0 %3115
    %v3119 = vsel %vm426, %v3107, 0
    %3121 = vmatpush.msra.mxu0 0.0
    %3122 = vmatpush.msra.mxu0 0.0
    %3123 = vmatpush.msra.mxu0 0.0
    %3124 = vmatpush.msra.mxu0 0.0
    %3125 = vmatpush.msra.mxu0 0.0
    %3126 = vmatpush.msra.mxu0 0.0
    %3127 = vmatpush.msra.mxu0 0.0
    %3128 = vmatpush.msra.mxu0 0.0
    %3129 = vmatpush.msra.mxu0 0.0
    %3130 = vmatpush.msra.mxu0 0.0
    %3131 = vmatpush.msra.mxu0 0.0
    %3132 = vmatpush.msra.mxu0 0.0
    %3133 = vmatpush.msra.mxu0 0.0
    %3134 = vmatpush.msra.mxu0 0.0
    %3135 = vmatpush.msra.mxu0 0.0
    %3136 = vmatpush.msra.mxu0 %v3116
    %3137 = vmatmul.f32.gmra.mxu0 %v3119
    %v3138 = vpop.f32.mrf.mxu0
    %v3139 = vadd.f32 0.0, %v3138
    %3140 = vdwg.mxu0
    %3141 = vrot.lane.b32.xlu0 %v173, 44
    %v3142 = vpop.permute.xlu0 %3141
    %v3145 = vsel %vm426, %v3108, 0
    %3147 = vmatpush.msra.mxu0 0.0
    %3148 = vmatpush.msra.mxu0 0.0
    %3149 = vmatpush.msra.mxu0 0.0
    %3150 = vmatpush.msra.mxu0 0.0
    %3151 = vmatpush.msra.mxu0 0.0
    %3152 = vmatpush.msra.mxu0 0.0
    %3153 = vmatpush.msra.mxu0 0.0
    %3154 = vmatpush.msra.mxu0 0.0
    %3155 = vmatpush.msra.mxu0 0.0
    %3156 = vmatpush.msra.mxu0 0.0
    %3157 = vmatpush.msra.mxu0 0.0
    %3158 = vmatpush.msra.mxu0 0.0
    %3159 = vmatpush.msra.mxu0 0.0
    %3160 = vmatpush.msra.mxu0 0.0
    %3161 = vmatpush.msra.mxu0 0.0
    %3162 = vmatpush.msra.mxu0 %v3142
    %3163 = vmatmul.f32.gmra.mxu0 %v3145
    %v3164 = vpop.f32.mrf.mxu0
    %v3165 = vadd.f32 0.0, %v3164
    %3166 = vdwg.mxu0
    %3167 = vrot.lane.b32.xlu0 %v176, 44
    %v3168 = vpop.permute.xlu0 %3167
    %v3171 = vsel %vm426, %v3109, 0
    %3173 = vmatpush.msra.mxu0 0.0
    %3174 = vmatpush.msra.mxu0 0.0
    %3175 = vmatpush.msra.mxu0 0.0
    %3176 = vmatpush.msra.mxu0 0.0
    %3177 = vmatpush.msra.mxu0 0.0
    %3178 = vmatpush.msra.mxu0 0.0
    %3179 = vmatpush.msra.mxu0 0.0
    %3180 = vmatpush.msra.mxu0 0.0
    %3181 = vmatpush.msra.mxu0 0.0
    %3182 = vmatpush.msra.mxu0 0.0
    %3183 = vmatpush.msra.mxu0 0.0
    %3184 = vmatpush.msra.mxu0 0.0
    %3185 = vmatpush.msra.mxu0 0.0
    %3186 = vmatpush.msra.mxu0 0.0
    %3187 = vmatpush.msra.mxu0 0.0
    %3188 = vmatpush.msra.mxu0 %v3168
    %3189 = vmatmul.f32.gmra.mxu0 %v3171
    %v3190 = vpop.f32.mrf.mxu0
    %v3191 = vadd.f32 0.0, %v3190
    %3192 = vdwg.mxu0
    %3193 = vrot.lane.b32.xlu0 %v179, 44
    %v3194 = vpop.permute.xlu0 %3193
    %v3197 = vsel %vm426, %v3110, 0
    %3199 = vmatpush.msra.mxu0 0.0
    %3200 = vmatpush.msra.mxu0 0.0
    %3201 = vmatpush.msra.mxu0 0.0
    %3202 = vmatpush.msra.mxu0 0.0
    %3203 = vmatpush.msra.mxu0 0.0
    %3204 = vmatpush.msra.mxu0 0.0
    %3205 = vmatpush.msra.mxu0 0.0
    %3206 = vmatpush.msra.mxu0 0.0
    %3207 = vmatpush.msra.mxu0 0.0
    %3208 = vmatpush.msra.mxu0 0.0
    %3209 = vmatpush.msra.mxu0 0.0
    %3210 = vmatpush.msra.mxu0 0.0
    %3211 = vmatpush.msra.mxu0 0.0
    %3212 = vmatpush.msra.mxu0 0.0
    %3213 = vmatpush.msra.mxu0 0.0
    %3214 = vmatpush.msra.mxu0 %v3194
    %3215 = vmatmul.f32.gmra.mxu0 %v3197
    %v3216 = vpop.f32.mrf.mxu0
    %v3217 = vadd.f32 0.0, %v3216
    %3218 = vdwg.mxu0
    %3219 = vrot.lane.b32.xlu0 %v182, 44
    %v3220 = vpop.permute.xlu0 %3219
    %v3223 = vsel %vm426, %v3111, 0
    %3225 = vmatpush.msra.mxu0 0.0
    %3226 = vmatpush.msra.mxu0 0.0
    %3227 = vmatpush.msra.mxu0 0.0
    %3228 = vmatpush.msra.mxu0 0.0
    %3229 = vmatpush.msra.mxu0 0.0
    %3230 = vmatpush.msra.mxu0 0.0
    %3231 = vmatpush.msra.mxu0 0.0
    %3232 = vmatpush.msra.mxu0 0.0
    %3233 = vmatpush.msra.mxu0 0.0
    %3234 = vmatpush.msra.mxu0 0.0
    %3235 = vmatpush.msra.mxu0 0.0
    %3236 = vmatpush.msra.mxu0 0.0
    %3237 = vmatpush.msra.mxu0 0.0
    %3238 = vmatpush.msra.mxu0 0.0
    %3239 = vmatpush.msra.mxu0 0.0
    %3240 = vmatpush.msra.mxu0 %v3220
    %3241 = vmatmul.f32.gmra.mxu0 %v3223
    %v3242 = vpop.f32.mrf.mxu0
    %v3243 = vadd.f32 0.0, %v3242
    %3244 = vdwg.mxu0
    %3245 = vrot.lane.b32.xlu0 %v185, 44
    %v3246 = vpop.permute.xlu0 %3245
    %v3249 = vsel %vm426, %v3112, 0
    %3251 = vmatpush.msra.mxu0 0.0
    %3252 = vmatpush.msra.mxu0 0.0
    %3253 = vmatpush.msra.mxu0 0.0
    %3254 = vmatpush.msra.mxu0 0.0
    %3255 = vmatpush.msra.mxu0 0.0
    %3256 = vmatpush.msra.mxu0 0.0
    %3257 = vmatpush.msra.mxu0 0.0
    %3258 = vmatpush.msra.mxu0 0.0
    %3259 = vmatpush.msra.mxu0 0.0
    %3260 = vmatpush.msra.mxu0 0.0
    %3261 = vmatpush.msra.mxu0 0.0
    %3262 = vmatpush.msra.mxu0 0.0
    %3263 = vmatpush.msra.mxu0 0.0
    %3264 = vmatpush.msra.mxu0 0.0
    %3265 = vmatpush.msra.mxu0 0.0
    %3266 = vmatpush.msra.mxu0 %v3246
    %3267 = vmatmul.f32.gmra.mxu0 %v3249
    %v3268 = vpop.f32.mrf.mxu0
    %v3269 = vadd.f32 0.0, %v3268
    %3270 = vdwg.mxu0
    %3271 = vrot.lane.b32.xlu0 %v188, 44
    %v3272 = vpop.permute.xlu0 %3271
    %v3275 = vsel %vm426, %v3113, 0
    %3277 = vmatpush.msra.mxu0 0.0
    %3278 = vmatpush.msra.mxu0 0.0
    %3279 = vmatpush.msra.mxu0 0.0
    %3280 = vmatpush.msra.mxu0 0.0
    %3281 = vmatpush.msra.mxu0 0.0
    %3282 = vmatpush.msra.mxu0 0.0
    %3283 = vmatpush.msra.mxu0 0.0
    %3284 = vmatpush.msra.mxu0 0.0
    %3285 = vmatpush.msra.mxu0 0.0
    %3286 = vmatpush.msra.mxu0 0.0
    %3287 = vmatpush.msra.mxu0 0.0
    %3288 = vmatpush.msra.mxu0 0.0
    %3289 = vmatpush.msra.mxu0 0.0
    %3290 = vmatpush.msra.mxu0 0.0
    %3291 = vmatpush.msra.mxu0 0.0
    %3292 = vmatpush.msra.mxu0 %v3272
    %3293 = vmatmul.f32.gmra.mxu0 %v3275
    %v3294 = vpop.f32.mrf.mxu0
    %v3295 = vadd.f32 0.0, %v3294
    %3296 = vdwg.mxu0
    %3297 = vrot.lane.b32.xlu0 %v191, 44
    %v3298 = vpop.permute.xlu0 %3297
    %v3301 = vsel %vm426, %v3114, 0
    %3303 = vmatpush.msra.mxu0 0.0
    %3304 = vmatpush.msra.mxu0 0.0
    %3305 = vmatpush.msra.mxu0 0.0
    %3306 = vmatpush.msra.mxu0 0.0
    %3307 = vmatpush.msra.mxu0 0.0
    %3308 = vmatpush.msra.mxu0 0.0
    %3309 = vmatpush.msra.mxu0 0.0
    %3310 = vmatpush.msra.mxu0 0.0
    %3311 = vmatpush.msra.mxu0 0.0
    %3312 = vmatpush.msra.mxu0 0.0
    %3313 = vmatpush.msra.mxu0 0.0
    %3314 = vmatpush.msra.mxu0 0.0
    %3315 = vmatpush.msra.mxu0 0.0
    %3316 = vmatpush.msra.mxu0 0.0
    %3317 = vmatpush.msra.mxu0 0.0
    %3318 = vmatpush.msra.mxu0 %v3298
    %3319 = vmatmul.f32.gmra.mxu0 %v3301
    %v3320 = vpop.f32.mrf.mxu0
    %v3321 = vadd.f32 0.0, %v3320
    %3322 = vdwg.mxu0
    %3323 = vrot.lane.b32.xlu0 %v193, 104
    %v3324 = vpop.permute.xlu0 %3323
    %3325 = vrot.lane.b32.xlu0 %v170, 72
    %v3326 = vpop.permute.xlu0 %3325
    %v3327 = vsel %vm204, %v3324, 0
    %v3329 = vsel %vm204, %v3326, 0
    %3331 = vmatpush.xpose.msra.mxu0 0.0
    %3332 = vmatpush.xpose.msra.mxu0 0.0
    %3333 = vmatpush.xpose.msra.mxu0 0.0
    %3334 = vmatpush.xpose.msra.mxu0 0.0
    %3335 = vmatpush.xpose.msra.mxu0 0.0
    %3336 = vmatpush.xpose.msra.mxu0 0.0
    %3337 = vmatpush.xpose.msra.mxu0 0.0
    %3338 = vmatpush.xpose.msra.mxu0 0.0
    %3339 = vmatpush.xpose.msra.mxu0 0.0
    %3340 = vmatpush.xpose.msra.mxu0 0.0
    %3341 = vmatpush.xpose.msra.mxu0 0.0
    %3342 = vmatpush.xpose.msra.mxu0 0.0
    %3343 = vmatpush.xpose.msra.mxu0 0.0
    %3344 = vmatpush.xpose.msra.mxu0 0.0
    %3345 = vmatpush.xpose.msra.mxu0 0.0
    %3346 = vmatpush.xpose.msra.mxu0 %v3329
    %3347 = vmatmul.f32.gmra.mxu0 %v3327
    %v3348 = vpop.f32.mrf.mxu0
    %v3349 = vadd.f32 0.0, %v3348
    %3350 = vdwg.mxu0
    %3351 = vrot.lane.b32.xlu0 %v194, 104
    %v3352 = vpop.permute.xlu0 %3351
    %3353 = vrot.lane.b32.xlu0 %v173, 72
    %v3354 = vpop.permute.xlu0 %3353
    %v3355 = vsel %vm204, %v3352, 0
    %v3357 = vsel %vm204, %v3354, 0
    %3359 = vmatpush.xpose.msra.mxu0 0.0
    %3360 = vmatpush.xpose.msra.mxu0 0.0
    %3361 = vmatpush.xpose.msra.mxu0 0.0
    %3362 = vmatpush.xpose.msra.mxu0 0.0
    %3363 = vmatpush.xpose.msra.mxu0 0.0
    %3364 = vmatpush.xpose.msra.mxu0 0.0
    %3365 = vmatpush.xpose.msra.mxu0 0.0
    %3366 = vmatpush.xpose.msra.mxu0 0.0
    %3367 = vmatpush.xpose.msra.mxu0 0.0
    %3368 = vmatpush.xpose.msra.mxu0 0.0
    %3369 = vmatpush.xpose.msra.mxu0 0.0
    %3370 = vmatpush.xpose.msra.mxu0 0.0
    %3371 = vmatpush.xpose.msra.mxu0 0.0
    %3372 = vmatpush.xpose.msra.mxu0 0.0
    %3373 = vmatpush.xpose.msra.mxu0 0.0
    %3374 = vmatpush.xpose.msra.mxu0 %v3357
    %3375 = vmatmul.f32.gmra.mxu0 %v3355
    %v3376 = vpop.f32.mrf.mxu0
    %v3377 = vadd.f32 0.0, %v3376
    %3378 = vdwg.mxu0
    %3379 = vrot.lane.b32.xlu0 %v195, 104
    %v3380 = vpop.permute.xlu0 %3379
    %3381 = vrot.lane.b32.xlu0 %v176, 72
    %v3382 = vpop.permute.xlu0 %3381
    %v3383 = vsel %vm204, %v3380, 0
    %v3385 = vsel %vm204, %v3382, 0
    %3387 = vmatpush.xpose.msra.mxu0 0.0
    %3388 = vmatpush.xpose.msra.mxu0 0.0
    %3389 = vmatpush.xpose.msra.mxu0 0.0
    %3390 = vmatpush.xpose.msra.mxu0 0.0
    %3391 = vmatpush.xpose.msra.mxu0 0.0
    %3392 = vmatpush.xpose.msra.mxu0 0.0
    %3393 = vmatpush.xpose.msra.mxu0 0.0
    %3394 = vmatpush.xpose.msra.mxu0 0.0
    %3395 = vmatpush.xpose.msra.mxu0 0.0
    %3396 = vmatpush.xpose.msra.mxu0 0.0
    %3397 = vmatpush.xpose.msra.mxu0 0.0
    %3398 = vmatpush.xpose.msra.mxu0 0.0
    %3399 = vmatpush.xpose.msra.mxu0 0.0
    %3400 = vmatpush.xpose.msra.mxu0 0.0
    %3401 = vmatpush.xpose.msra.mxu0 0.0
    %3402 = vmatpush.xpose.msra.mxu0 %v3385
    %3403 = vmatmul.f32.gmra.mxu0 %v3383
    %v3404 = vpop.f32.mrf.mxu0
    %v3405 = vadd.f32 0.0, %v3404
    %3406 = vdwg.mxu0
    %3407 = vrot.lane.b32.xlu0 %v196, 104
    %v3408 = vpop.permute.xlu0 %3407
    %3409 = vrot.lane.b32.xlu0 %v179, 72
    %v3410 = vpop.permute.xlu0 %3409
    %v3411 = vsel %vm204, %v3408, 0
    %v3413 = vsel %vm204, %v3410, 0
    %3415 = vmatpush.xpose.msra.mxu0 0.0
    %3416 = vmatpush.xpose.msra.mxu0 0.0
    %3417 = vmatpush.xpose.msra.mxu0 0.0
    %3418 = vmatpush.xpose.msra.mxu0 0.0
    %3419 = vmatpush.xpose.msra.mxu0 0.0
    %3420 = vmatpush.xpose.msra.mxu0 0.0
    %3421 = vmatpush.xpose.msra.mxu0 0.0
    %3422 = vmatpush.xpose.msra.mxu0 0.0
    %3423 = vmatpush.xpose.msra.mxu0 0.0
    %3424 = vmatpush.xpose.msra.mxu0 0.0
    %3425 = vmatpush.xpose.msra.mxu0 0.0
    %3426 = vmatpush.xpose.msra.mxu0 0.0
    %3427 = vmatpush.xpose.msra.mxu0 0.0
    %3428 = vmatpush.xpose.msra.mxu0 0.0
    %3429 = vmatpush.xpose.msra.mxu0 0.0
    %3430 = vmatpush.xpose.msra.mxu0 %v3413
    %3431 = vmatmul.f32.gmra.mxu0 %v3411
    %v3432 = vpop.f32.mrf.mxu0
    %v3433 = vadd.f32 0.0, %v3432
    %3434 = vdwg.mxu0
    %3435 = vrot.lane.b32.xlu0 %v197, 104
    %v3436 = vpop.permute.xlu0 %3435
    %3437 = vrot.lane.b32.xlu0 %v182, 72
    %v3438 = vpop.permute.xlu0 %3437
    %v3439 = vsel %vm204, %v3436, 0
    %v3441 = vsel %vm204, %v3438, 0
    %3443 = vmatpush.xpose.msra.mxu0 0.0
    %3444 = vmatpush.xpose.msra.mxu0 0.0
    %3445 = vmatpush.xpose.msra.mxu0 0.0
    %3446 = vmatpush.xpose.msra.mxu0 0.0
    %3447 = vmatpush.xpose.msra.mxu0 0.0
    %3448 = vmatpush.xpose.msra.mxu0 0.0
    %3449 = vmatpush.xpose.msra.mxu0 0.0
    %3450 = vmatpush.xpose.msra.mxu0 0.0
    %3451 = vmatpush.xpose.msra.mxu0 0.0
    %3452 = vmatpush.xpose.msra.mxu0 0.0
    %3453 = vmatpush.xpose.msra.mxu0 0.0
    %3454 = vmatpush.xpose.msra.mxu0 0.0
    %3455 = vmatpush.xpose.msra.mxu0 0.0
    %3456 = vmatpush.xpose.msra.mxu0 0.0
    %3457 = vmatpush.xpose.msra.mxu0 0.0
    %3458 = vmatpush.xpose.msra.mxu0 %v3441
    %3459 = vmatmul.f32.gmra.mxu0 %v3439
    %v3460 = vpop.f32.mrf.mxu0
    %v3461 = vadd.f32 0.0, %v3460
    %3462 = vdwg.mxu0
    %3463 = vrot.lane.b32.xlu0 %v198, 104
    %v3464 = vpop.permute.xlu0 %3463
    %3465 = vrot.lane.b32.xlu0 %v185, 72
    %v3466 = vpop.permute.xlu0 %3465
    %v3467 = vsel %vm204, %v3464, 0
    %v3469 = vsel %vm204, %v3466, 0
    %3471 = vmatpush.xpose.msra.mxu0 0.0
    %3472 = vmatpush.xpose.msra.mxu0 0.0
    %3473 = vmatpush.xpose.msra.mxu0 0.0
    %3474 = vmatpush.xpose.msra.mxu0 0.0
    %3475 = vmatpush.xpose.msra.mxu0 0.0
    %3476 = vmatpush.xpose.msra.mxu0 0.0
    %3477 = vmatpush.xpose.msra.mxu0 0.0
    %3478 = vmatpush.xpose.msra.mxu0 0.0
    %3479 = vmatpush.xpose.msra.mxu0 0.0
    %3480 = vmatpush.xpose.msra.mxu0 0.0
    %3481 = vmatpush.xpose.msra.mxu0 0.0
    %3482 = vmatpush.xpose.msra.mxu0 0.0
    %3483 = vmatpush.xpose.msra.mxu0 0.0
    %3484 = vmatpush.xpose.msra.mxu0 0.0
    %3485 = vmatpush.xpose.msra.mxu0 0.0
    %3486 = vmatpush.xpose.msra.mxu0 %v3469
    %3487 = vmatmul.f32.gmra.mxu0 %v3467
    %v3488 = vpop.f32.mrf.mxu0
    %v3489 = vadd.f32 0.0, %v3488
    %3490 = vdwg.mxu0
    %3491 = vrot.lane.b32.xlu0 %v199, 104
    %v3492 = vpop.permute.xlu0 %3491
    %3493 = vrot.lane.b32.xlu0 %v188, 72
    %v3494 = vpop.permute.xlu0 %3493
    %v3495 = vsel %vm204, %v3492, 0
    %v3497 = vsel %vm204, %v3494, 0
    %3499 = vmatpush.xpose.msra.mxu0 0.0
    %3500 = vmatpush.xpose.msra.mxu0 0.0
    %3501 = vmatpush.xpose.msra.mxu0 0.0
    %3502 = vmatpush.xpose.msra.mxu0 0.0
    %3503 = vmatpush.xpose.msra.mxu0 0.0
    %3504 = vmatpush.xpose.msra.mxu0 0.0
    %3505 = vmatpush.xpose.msra.mxu0 0.0
    %3506 = vmatpush.xpose.msra.mxu0 0.0
    %3507 = vmatpush.xpose.msra.mxu0 0.0
    %3508 = vmatpush.xpose.msra.mxu0 0.0
    %3509 = vmatpush.xpose.msra.mxu0 0.0
    %3510 = vmatpush.xpose.msra.mxu0 0.0
    %3511 = vmatpush.xpose.msra.mxu0 0.0
    %3512 = vmatpush.xpose.msra.mxu0 0.0
    %3513 = vmatpush.xpose.msra.mxu0 0.0
    %3514 = vmatpush.xpose.msra.mxu0 %v3497
    %3515 = vmatmul.f32.gmra.mxu0 %v3495
    %v3516 = vpop.f32.mrf.mxu0
    %v3517 = vadd.f32 0.0, %v3516
    %3518 = vdwg.mxu0
    %3519 = vrot.lane.b32.xlu0 %v200, 104
    %v3520 = vpop.permute.xlu0 %3519
    %3521 = vrot.lane.b32.xlu0 %v191, 72
    %v3522 = vpop.permute.xlu0 %3521
    %v3523 = vsel %vm204, %v3520, 0
    %v3525 = vsel %vm204, %v3522, 0
    %3527 = vmatpush.xpose.msra.mxu0 0.0
    %3528 = vmatpush.xpose.msra.mxu0 0.0
    %3529 = vmatpush.xpose.msra.mxu0 0.0
    %3530 = vmatpush.xpose.msra.mxu0 0.0
    %3531 = vmatpush.xpose.msra.mxu0 0.0
    %3532 = vmatpush.xpose.msra.mxu0 0.0
    %3533 = vmatpush.xpose.msra.mxu0 0.0
    %3534 = vmatpush.xpose.msra.mxu0 0.0
    %3535 = vmatpush.xpose.msra.mxu0 0.0
    %3536 = vmatpush.xpose.msra.mxu0 0.0
    %3537 = vmatpush.xpose.msra.mxu0 0.0
    %3538 = vmatpush.xpose.msra.mxu0 0.0
    %3539 = vmatpush.xpose.msra.mxu0 0.0
    %3540 = vmatpush.xpose.msra.mxu0 0.0
    %3541 = vmatpush.xpose.msra.mxu0 0.0
    %3542 = vmatpush.xpose.msra.mxu0 %v3525
    %3543 = vmatmul.f32.gmra.mxu0 %v3523
    %v3544 = vpop.f32.mrf.mxu0
    %v3545 = vadd.f32 0.0, %v3544
    %3546 = vdwg.mxu0
    %v3547 = vsel %vm426, %v3349, -inf
    %3548 = vmax.xlane.f32.xlu0 %v3547
    %v3549 = vpop.xlane.xlu0 %3548
    %v3550 = vsel %vm426, %v3377, -inf
    %3551 = vmax.xlane.f32.xlu0 %v3550
    %v3552 = vpop.xlane.xlu0 %3551
    %v3553 = vsel %vm426, %v3405, -inf
    %3554 = vmax.xlane.f32.xlu0 %v3553
    %v3555 = vpop.xlane.xlu0 %3554
    %v3556 = vsel %vm426, %v3433, -inf
    %3557 = vmax.xlane.f32.xlu0 %v3556
    %v3558 = vpop.xlane.xlu0 %3557
    %v3559 = vsel %vm426, %v3461, -inf
    %3560 = vmax.xlane.f32.xlu0 %v3559
    %v3561 = vpop.xlane.xlu0 %3560
    %v3562 = vsel %vm426, %v3489, -inf
    %3563 = vmax.xlane.f32.xlu0 %v3562
    %v3564 = vpop.xlane.xlu0 %3563
    %v3565 = vsel %vm426, %v3517, -inf
    %3566 = vmax.xlane.f32.xlu0 %v3565
    %v3567 = vpop.xlane.xlu0 %3566
    %v3568 = vsel %vm426, %v3545, -inf
    %3569 = vmax.xlane.f32.xlu0 %v3568
    %v3570 = vpop.xlane.xlu0 %3569
    %v3571 = vsub.f32 %v3349, %v3549
    %v3572 = vsub.f32 %v3377, %v3552
    %v3573 = vsub.f32 %v3405, %v3555
    %v3574 = vsub.f32 %v3433, %v3558
    %v3575 = vsub.f32 %v3461, %v3561
    %v3576 = vsub.f32 %v3489, %v3564
    %v3577 = vsub.f32 %v3517, %v3567
    %v3578 = vsub.f32 %v3545, %v3570
    %v3579 = vmul.f32 %v3571, 1.442695
    %v3580 = vpow.pop %v3579
    %v3581 = vmul.f32 %v3572, 1.442695
    %v3582 = vpow.pop %v3581
    %v3583 = vmul.f32 %v3573, 1.442695
    %v3584 = vpow.pop %v3583
    %v3585 = vmul.f32 %v3574, 1.442695
    %v3586 = vpow.pop %v3585
    %v3587 = vmul.f32 %v3575, 1.442695
    %v3588 = vpow.pop %v3587
    %v3589 = vmul.f32 %v3576, 1.442695
    %v3590 = vpow.pop %v3589
    %v3591 = vmul.f32 %v3577, 1.442695
    %v3592 = vpow.pop %v3591
    %v3593 = vmul.f32 %v3578, 1.442695
    %v3594 = vpow.pop %v3593
    %v3595 = vsel %vm426, %v3580, 0.0
    %3596 = vadd.xlane.f32.xlu0 %v3595
    %v3597 = vpop.xlane.xlu0 %3596
    %v3598 = vsel %vm426, %v3582, 0.0
    %3599 = vadd.xlane.f32.xlu0 %v3598
    %v3600 = vpop.xlane.xlu0 %3599
    %v3601 = vsel %vm426, %v3584, 0.0
    %3602 = vadd.xlane.f32.xlu0 %v3601
    %v3603 = vpop.xlane.xlu0 %3602
    %v3604 = vsel %vm426, %v3586, 0.0
    %3605 = vadd.xlane.f32.xlu0 %v3604
    %v3606 = vpop.xlane.xlu0 %3605
    %v3607 = vsel %vm426, %v3588, 0.0
    %3608 = vadd.xlane.f32.xlu0 %v3607
    %v3609 = vpop.xlane.xlu0 %3608
    %v3610 = vsel %vm426, %v3590, 0.0
    %3611 = vadd.xlane.f32.xlu0 %v3610
    %v3612 = vpop.xlane.xlu0 %3611
    %v3613 = vsel %vm426, %v3592, 0.0
    %3614 = vadd.xlane.f32.xlu0 %v3613
    %v3615 = vpop.xlane.xlu0 %3614
    %v3616 = vsel %vm426, %v3594, 0.0
    %3617 = vadd.xlane.f32.xlu0 %v3616
    %v3618 = vpop.xlane.xlu0 %3617
    %v3619 = vrcp.pop %v3597
    %v3620 = vrcp.pop %v3600
    %v3621 = vrcp.pop %v3603
    %v3622 = vrcp.pop %v3606
    %v3623 = vrcp.pop %v3609
    %v3624 = vrcp.pop %v3612
    %v3625 = vrcp.pop %v3615
    %v3626 = vrcp.pop %v3618
    %v3627 = vmul.f32 %v3580, %v3619
    %v3628 = vmul.f32 %v3582, %v3620
    %v3629 = vmul.f32 %v3584, %v3621
    %v3630 = vmul.f32 %v3586, %v3622
    %v3631 = vmul.f32 %v3588, %v3623
    %v3632 = vmul.f32 %v3590, %v3624
    %v3633 = vmul.f32 %v3592, %v3625
    %v3634 = vmul.f32 %v3594, %v3626
    %3635 = vrot.lane.b32.xlu0 %v170, 40
    %v3636 = vpop.permute.xlu0 %3635
    %v3639 = vsel %vm426, %v3627, 0
    %3641 = vmatpush.msra.mxu0 0.0
    %3642 = vmatpush.msra.mxu0 0.0
    %3643 = vmatpush.msra.mxu0 0.0
    %3644 = vmatpush.msra.mxu0 0.0
    %3645 = vmatpush.msra.mxu0 0.0
    %3646 = vmatpush.msra.mxu0 0.0
    %3647 = vmatpush.msra.mxu0 0.0
    %3648 = vmatpush.msra.mxu0 0.0
    %3649 = vmatpush.msra.mxu0 0.0
    %3650 = vmatpush.msra.mxu0 0.0
    %3651 = vmatpush.msra.mxu0 0.0
    %3652 = vmatpush.msra.mxu0 0.0
    %3653 = vmatpush.msra.mxu0 0.0
    %3654 = vmatpush.msra.mxu0 0.0
    %3655 = vmatpush.msra.mxu0 0.0
    %3656 = vmatpush.msra.mxu0 %v3636
    %3657 = vmatmul.f32.gmra.mxu0 %v3639
    %v3658 = vpop.f32.mrf.mxu0
    %v3659 = vadd.f32 0.0, %v3658
    %3660 = vdwg.mxu0
    %3661 = vrot.lane.b32.xlu0 %v173, 40
    %v3662 = vpop.permute.xlu0 %3661
    %v3665 = vsel %vm426, %v3628, 0
    %3667 = vmatpush.msra.mxu0 0.0
    %3668 = vmatpush.msra.mxu0 0.0
    %3669 = vmatpush.msra.mxu0 0.0
    %3670 = vmatpush.msra.mxu0 0.0
    %3671 = vmatpush.msra.mxu0 0.0
    %3672 = vmatpush.msra.mxu0 0.0
    %3673 = vmatpush.msra.mxu0 0.0
    %3674 = vmatpush.msra.mxu0 0.0
    %3675 = vmatpush.msra.mxu0 0.0
    %3676 = vmatpush.msra.mxu0 0.0
    %3677 = vmatpush.msra.mxu0 0.0
    %3678 = vmatpush.msra.mxu0 0.0
    %3679 = vmatpush.msra.mxu0 0.0
    %3680 = vmatpush.msra.mxu0 0.0
    %3681 = vmatpush.msra.mxu0 0.0
    %3682 = vmatpush.msra.mxu0 %v3662
    %3683 = vmatmul.f32.gmra.mxu0 %v3665
    %v3684 = vpop.f32.mrf.mxu0
    %v3685 = vadd.f32 0.0, %v3684
    %3686 = vdwg.mxu0
    %3687 = vrot.lane.b32.xlu0 %v176, 40
    %v3688 = vpop.permute.xlu0 %3687
    %v3691 = vsel %vm426, %v3629, 0
    %3693 = vmatpush.msra.mxu0 0.0
    %3694 = vmatpush.msra.mxu0 0.0
    %3695 = vmatpush.msra.mxu0 0.0
    %3696 = vmatpush.msra.mxu0 0.0
    %3697 = vmatpush.msra.mxu0 0.0
    %3698 = vmatpush.msra.mxu0 0.0
    %3699 = vmatpush.msra.mxu0 0.0
    %3700 = vmatpush.msra.mxu0 0.0
    %3701 = vmatpush.msra.mxu0 0.0
    %3702 = vmatpush.msra.mxu0 0.0
    %3703 = vmatpush.msra.mxu0 0.0
    %3704 = vmatpush.msra.mxu0 0.0
    %3705 = vmatpush.msra.mxu0 0.0
    %3706 = vmatpush.msra.mxu0 0.0
    %3707 = vmatpush.msra.mxu0 0.0
    %3708 = vmatpush.msra.mxu0 %v3688
    %3709 = vmatmul.f32.gmra.mxu0 %v3691
    %v3710 = vpop.f32.mrf.mxu0
    %v3711 = vadd.f32 0.0, %v3710
    %3712 = vdwg.mxu0
    %3713 = vrot.lane.b32.xlu0 %v179, 40
    %v3714 = vpop.permute.xlu0 %3713
    %v3717 = vsel %vm426, %v3630, 0
    %3719 = vmatpush.msra.mxu0 0.0
    %3720 = vmatpush.msra.mxu0 0.0
    %3721 = vmatpush.msra.mxu0 0.0
    %3722 = vmatpush.msra.mxu0 0.0
    %3723 = vmatpush.msra.mxu0 0.0
    %3724 = vmatpush.msra.mxu0 0.0
    %3725 = vmatpush.msra.mxu0 0.0
    %3726 = vmatpush.msra.mxu0 0.0
    %3727 = vmatpush.msra.mxu0 0.0
    %3728 = vmatpush.msra.mxu0 0.0
    %3729 = vmatpush.msra.mxu0 0.0
    %3730 = vmatpush.msra.mxu0 0.0
    %3731 = vmatpush.msra.mxu0 0.0
    %3732 = vmatpush.msra.mxu0 0.0
    %3733 = vmatpush.msra.mxu0 0.0
    %3734 = vmatpush.msra.mxu0 %v3714
    %3735 = vmatmul.f32.gmra.mxu0 %v3717
    %v3736 = vpop.f32.mrf.mxu0
    %v3737 = vadd.f32 0.0, %v3736
    %3738 = vdwg.mxu0
    %3739 = vrot.lane.b32.xlu0 %v182, 40
    %v3740 = vpop.permute.xlu0 %3739
    %v3743 = vsel %vm426, %v3631, 0
    %3745 = vmatpush.msra.mxu0 0.0
    %3746 = vmatpush.msra.mxu0 0.0
    %3747 = vmatpush.msra.mxu0 0.0
    %3748 = vmatpush.msra.mxu0 0.0
    %3749 = vmatpush.msra.mxu0 0.0
    %3750 = vmatpush.msra.mxu0 0.0
    %3751 = vmatpush.msra.mxu0 0.0
    %3752 = vmatpush.msra.mxu0 0.0
    %3753 = vmatpush.msra.mxu0 0.0
    %3754 = vmatpush.msra.mxu0 0.0
    %3755 = vmatpush.msra.mxu0 0.0
    %3756 = vmatpush.msra.mxu0 0.0
    %3757 = vmatpush.msra.mxu0 0.0
    %3758 = vmatpush.msra.mxu0 0.0
    %3759 = vmatpush.msra.mxu0 0.0
    %3760 = vmatpush.msra.mxu0 %v3740
    %3761 = vmatmul.f32.gmra.mxu0 %v3743
    %v3762 = vpop.f32.mrf.mxu0
    %v3763 = vadd.f32 0.0, %v3762
    %3764 = vdwg.mxu0
    %3765 = vrot.lane.b32.xlu0 %v185, 40
    %v3766 = vpop.permute.xlu0 %3765
    %v3769 = vsel %vm426, %v3632, 0
    %3771 = vmatpush.msra.mxu0 0.0
    %3772 = vmatpush.msra.mxu0 0.0
    %3773 = vmatpush.msra.mxu0 0.0
    %3774 = vmatpush.msra.mxu0 0.0
    %3775 = vmatpush.msra.mxu0 0.0
    %3776 = vmatpush.msra.mxu0 0.0
    %3777 = vmatpush.msra.mxu0 0.0
    %3778 = vmatpush.msra.mxu0 0.0
    %3779 = vmatpush.msra.mxu0 0.0
    %3780 = vmatpush.msra.mxu0 0.0
    %3781 = vmatpush.msra.mxu0 0.0
    %3782 = vmatpush.msra.mxu0 0.0
    %3783 = vmatpush.msra.mxu0 0.0
    %3784 = vmatpush.msra.mxu0 0.0
    %3785 = vmatpush.msra.mxu0 0.0
    %3786 = vmatpush.msra.mxu0 %v3766
    %3787 = vmatmul.f32.gmra.mxu0 %v3769
    %v3788 = vpop.f32.mrf.mxu0
    %v3789 = vadd.f32 0.0, %v3788
    %3790 = vdwg.mxu0
    %3791 = vrot.lane.b32.xlu0 %v188, 40
    %v3792 = vpop.permute.xlu0 %3791
    %v3795 = vsel %vm426, %v3633, 0
    %3797 = vmatpush.msra.mxu0 0.0
    %3798 = vmatpush.msra.mxu0 0.0
    %3799 = vmatpush.msra.mxu0 0.0
    %3800 = vmatpush.msra.mxu0 0.0
    %3801 = vmatpush.msra.mxu0 0.0
    %3802 = vmatpush.msra.mxu0 0.0
    %3803 = vmatpush.msra.mxu0 0.0
    %3804 = vmatpush.msra.mxu0 0.0
    %3805 = vmatpush.msra.mxu0 0.0
    %3806 = vmatpush.msra.mxu0 0.0
    %3807 = vmatpush.msra.mxu0 0.0
    %3808 = vmatpush.msra.mxu0 0.0
    %3809 = vmatpush.msra.mxu0 0.0
    %3810 = vmatpush.msra.mxu0 0.0
    %3811 = vmatpush.msra.mxu0 0.0
    %3812 = vmatpush.msra.mxu0 %v3792
    %3813 = vmatmul.f32.gmra.mxu0 %v3795
    %v3814 = vpop.f32.mrf.mxu0
    %v3815 = vadd.f32 0.0, %v3814
    %3816 = vdwg.mxu0
    %3817 = vrot.lane.b32.xlu0 %v191, 40
    %v3818 = vpop.permute.xlu0 %3817
    %v3821 = vsel %vm426, %v3634, 0
    %3823 = vmatpush.msra.mxu0 0.0
    %3824 = vmatpush.msra.mxu0 0.0
    %3825 = vmatpush.msra.mxu0 0.0
    %3826 = vmatpush.msra.mxu0 0.0
    %3827 = vmatpush.msra.mxu0 0.0
    %3828 = vmatpush.msra.mxu0 0.0
    %3829 = vmatpush.msra.mxu0 0.0
    %3830 = vmatpush.msra.mxu0 0.0
    %3831 = vmatpush.msra.mxu0 0.0
    %3832 = vmatpush.msra.mxu0 0.0
    %3833 = vmatpush.msra.mxu0 0.0
    %3834 = vmatpush.msra.mxu0 0.0
    %3835 = vmatpush.msra.mxu0 0.0
    %3836 = vmatpush.msra.mxu0 0.0
    %3837 = vmatpush.msra.mxu0 0.0
    %3838 = vmatpush.msra.mxu0 %v3818
    %3839 = vmatmul.f32.gmra.mxu0 %v3821
    %v3840 = vpop.f32.mrf.mxu0
    %v3841 = vadd.f32 0.0, %v3840
    %3842 = vdwg.mxu0
    %3843 = vrot.lane.b32.xlu0 %v193, 100
    %v3844 = vpop.permute.xlu0 %3843
    %3845 = vrot.lane.b32.xlu0 %v170, 68
    %v3846 = vpop.permute.xlu0 %3845
    %v3847 = vsel %vm204, %v3844, 0
    %v3849 = vsel %vm204, %v3846, 0
    %3851 = vmatpush.xpose.msra.mxu0 0.0
    %3852 = vmatpush.xpose.msra.mxu0 0.0
    %3853 = vmatpush.xpose.msra.mxu0 0.0
    %3854 = vmatpush.xpose.msra.mxu0 0.0
    %3855 = vmatpush.xpose.msra.mxu0 0.0
    %3856 = vmatpush.xpose.msra.mxu0 0.0
    %3857 = vmatpush.xpose.msra.mxu0 0.0
    %3858 = vmatpush.xpose.msra.mxu0 0.0
    %3859 = vmatpush.xpose.msra.mxu0 0.0
    %3860 = vmatpush.xpose.msra.mxu0 0.0
    %3861 = vmatpush.xpose.msra.mxu0 0.0
    %3862 = vmatpush.xpose.msra.mxu0 0.0
    %3863 = vmatpush.xpose.msra.mxu0 0.0
    %3864 = vmatpush.xpose.msra.mxu0 0.0
    %3865 = vmatpush.xpose.msra.mxu0 0.0
    %3866 = vmatpush.xpose.msra.mxu0 %v3849
    %3867 = vmatmul.f32.gmra.mxu0 %v3847
    %v3868 = vpop.f32.mrf.mxu0
    %v3869 = vadd.f32 0.0, %v3868
    %3870 = vdwg.mxu0
    %3871 = vrot.lane.b32.xlu0 %v194, 100
    %v3872 = vpop.permute.xlu0 %3871
    %3873 = vrot.lane.b32.xlu0 %v173, 68
    %v3874 = vpop.permute.xlu0 %3873
    %v3875 = vsel %vm204, %v3872, 0
    %v3877 = vsel %vm204, %v3874, 0
    %3879 = vmatpush.xpose.msra.mxu0 0.0
    %3880 = vmatpush.xpose.msra.mxu0 0.0
    %3881 = vmatpush.xpose.msra.mxu0 0.0
    %3882 = vmatpush.xpose.msra.mxu0 0.0
    %3883 = vmatpush.xpose.msra.mxu0 0.0
    %3884 = vmatpush.xpose.msra.mxu0 0.0
    %3885 = vmatpush.xpose.msra.mxu0 0.0
    %3886 = vmatpush.xpose.msra.mxu0 0.0
    %3887 = vmatpush.xpose.msra.mxu0 0.0
    %3888 = vmatpush.xpose.msra.mxu0 0.0
    %3889 = vmatpush.xpose.msra.mxu0 0.0
    %3890 = vmatpush.xpose.msra.mxu0 0.0
    %3891 = vmatpush.xpose.msra.mxu0 0.0
    %3892 = vmatpush.xpose.msra.mxu0 0.0
    %3893 = vmatpush.xpose.msra.mxu0 0.0
    %3894 = vmatpush.xpose.msra.mxu0 %v3877
    %3895 = vmatmul.f32.gmra.mxu0 %v3875
    %v3896 = vpop.f32.mrf.mxu0
    %v3897 = vadd.f32 0.0, %v3896
    %3898 = vdwg.mxu0
    %3899 = vrot.lane.b32.xlu0 %v195, 100
    %v3900 = vpop.permute.xlu0 %3899
    %3901 = vrot.lane.b32.xlu0 %v176, 68
    %v3902 = vpop.permute.xlu0 %3901
    %v3903 = vsel %vm204, %v3900, 0
    %v3905 = vsel %vm204, %v3902, 0
    %3907 = vmatpush.xpose.msra.mxu0 0.0
    %3908 = vmatpush.xpose.msra.mxu0 0.0
    %3909 = vmatpush.xpose.msra.mxu0 0.0
    %3910 = vmatpush.xpose.msra.mxu0 0.0
    %3911 = vmatpush.xpose.msra.mxu0 0.0
    %3912 = vmatpush.xpose.msra.mxu0 0.0
    %3913 = vmatpush.xpose.msra.mxu0 0.0
    %3914 = vmatpush.xpose.msra.mxu0 0.0
    %3915 = vmatpush.xpose.msra.mxu0 0.0
    %3916 = vmatpush.xpose.msra.mxu0 0.0
    %3917 = vmatpush.xpose.msra.mxu0 0.0
    %3918 = vmatpush.xpose.msra.mxu0 0.0
    %3919 = vmatpush.xpose.msra.mxu0 0.0
    %3920 = vmatpush.xpose.msra.mxu0 0.0
    %3921 = vmatpush.xpose.msra.mxu0 0.0
    %3922 = vmatpush.xpose.msra.mxu0 %v3905
    %3923 = vmatmul.f32.gmra.mxu0 %v3903
    %v3924 = vpop.f32.mrf.mxu0
    %v3925 = vadd.f32 0.0, %v3924
    %3926 = vdwg.mxu0
    %3927 = vrot.lane.b32.xlu0 %v196, 100
    %v3928 = vpop.permute.xlu0 %3927
    %3929 = vrot.lane.b32.xlu0 %v179, 68
    %v3930 = vpop.permute.xlu0 %3929
    %v3931 = vsel %vm204, %v3928, 0
    %v3933 = vsel %vm204, %v3930, 0
    %3935 = vmatpush.xpose.msra.mxu0 0.0
    %3936 = vmatpush.xpose.msra.mxu0 0.0
    %3937 = vmatpush.xpose.msra.mxu0 0.0
    %3938 = vmatpush.xpose.msra.mxu0 0.0
    %3939 = vmatpush.xpose.msra.mxu0 0.0
    %3940 = vmatpush.xpose.msra.mxu0 0.0
    %3941 = vmatpush.xpose.msra.mxu0 0.0
    %3942 = vmatpush.xpose.msra.mxu0 0.0
    %3943 = vmatpush.xpose.msra.mxu0 0.0
    %3944 = vmatpush.xpose.msra.mxu0 0.0
    %3945 = vmatpush.xpose.msra.mxu0 0.0
    %3946 = vmatpush.xpose.msra.mxu0 0.0
    %3947 = vmatpush.xpose.msra.mxu0 0.0
    %3948 = vmatpush.xpose.msra.mxu0 0.0
    %3949 = vmatpush.xpose.msra.mxu0 0.0
    %3950 = vmatpush.xpose.msra.mxu0 %v3933
    %3951 = vmatmul.f32.gmra.mxu0 %v3931
    %v3952 = vpop.f32.mrf.mxu0
    %v3953 = vadd.f32 0.0, %v3952
    %3954 = vdwg.mxu0
    %3955 = vrot.lane.b32.xlu0 %v197, 100
    %v3956 = vpop.permute.xlu0 %3955
    %3957 = vrot.lane.b32.xlu0 %v182, 68
    %v3958 = vpop.permute.xlu0 %3957
    %v3959 = vsel %vm204, %v3956, 0
    %v3961 = vsel %vm204, %v3958, 0
    %3963 = vmatpush.xpose.msra.mxu0 0.0
    %3964 = vmatpush.xpose.msra.mxu0 0.0
    %3965 = vmatpush.xpose.msra.mxu0 0.0
    %3966 = vmatpush.xpose.msra.mxu0 0.0
    %3967 = vmatpush.xpose.msra.mxu0 0.0
    %3968 = vmatpush.xpose.msra.mxu0 0.0
    %3969 = vmatpush.xpose.msra.mxu0 0.0
    %3970 = vmatpush.xpose.msra.mxu0 0.0
    %3971 = vmatpush.xpose.msra.mxu0 0.0
    %3972 = vmatpush.xpose.msra.mxu0 0.0
    %3973 = vmatpush.xpose.msra.mxu0 0.0
    %3974 = vmatpush.xpose.msra.mxu0 0.0
    %3975 = vmatpush.xpose.msra.mxu0 0.0
    %3976 = vmatpush.xpose.msra.mxu0 0.0
    %3977 = vmatpush.xpose.msra.mxu0 0.0
    %3978 = vmatpush.xpose.msra.mxu0 %v3961
    %3979 = vmatmul.f32.gmra.mxu0 %v3959
    %v3980 = vpop.f32.mrf.mxu0
    %v3981 = vadd.f32 0.0, %v3980
    %3982 = vdwg.mxu0
    %3983 = vrot.lane.b32.xlu0 %v198, 100
    %v3984 = vpop.permute.xlu0 %3983
    %3985 = vrot.lane.b32.xlu0 %v185, 68
    %v3986 = vpop.permute.xlu0 %3985
    %v3987 = vsel %vm204, %v3984, 0
    %v3989 = vsel %vm204, %v3986, 0
    %3991 = vmatpush.xpose.msra.mxu0 0.0
    %3992 = vmatpush.xpose.msra.mxu0 0.0
    %3993 = vmatpush.xpose.msra.mxu0 0.0
    %3994 = vmatpush.xpose.msra.mxu0 0.0
    %3995 = vmatpush.xpose.msra.mxu0 0.0
    %3996 = vmatpush.xpose.msra.mxu0 0.0
    %3997 = vmatpush.xpose.msra.mxu0 0.0
    %3998 = vmatpush.xpose.msra.mxu0 0.0
    %3999 = vmatpush.xpose.msra.mxu0 0.0
    %4000 = vmatpush.xpose.msra.mxu0 0.0
    %4001 = vmatpush.xpose.msra.mxu0 0.0
    %4002 = vmatpush.xpose.msra.mxu0 0.0
    %4003 = vmatpush.xpose.msra.mxu0 0.0
    %4004 = vmatpush.xpose.msra.mxu0 0.0
    %4005 = vmatpush.xpose.msra.mxu0 0.0
    %4006 = vmatpush.xpose.msra.mxu0 %v3989
    %4007 = vmatmul.f32.gmra.mxu0 %v3987
    %v4008 = vpop.f32.mrf.mxu0
    %v4009 = vadd.f32 0.0, %v4008
    %4010 = vdwg.mxu0
    %4011 = vrot.lane.b32.xlu0 %v199, 100
    %v4012 = vpop.permute.xlu0 %4011
    %4013 = vrot.lane.b32.xlu0 %v188, 68
    %v4014 = vpop.permute.xlu0 %4013
    %v4015 = vsel %vm204, %v4012, 0
    %v4017 = vsel %vm204, %v4014, 0
    %4019 = vmatpush.xpose.msra.mxu0 0.0
    %4020 = vmatpush.xpose.msra.mxu0 0.0
    %4021 = vmatpush.xpose.msra.mxu0 0.0
    %4022 = vmatpush.xpose.msra.mxu0 0.0
    %4023 = vmatpush.xpose.msra.mxu0 0.0
    %4024 = vmatpush.xpose.msra.mxu0 0.0
    %4025 = vmatpush.xpose.msra.mxu0 0.0
    %4026 = vmatpush.xpose.msra.mxu0 0.0
    %4027 = vmatpush.xpose.msra.mxu0 0.0
    %4028 = vmatpush.xpose.msra.mxu0 0.0
    %4029 = vmatpush.xpose.msra.mxu0 0.0
    %4030 = vmatpush.xpose.msra.mxu0 0.0
    %4031 = vmatpush.xpose.msra.mxu0 0.0
    %4032 = vmatpush.xpose.msra.mxu0 0.0
    %4033 = vmatpush.xpose.msra.mxu0 0.0
    %4034 = vmatpush.xpose.msra.mxu0 %v4017
    %4035 = vmatmul.f32.gmra.mxu0 %v4015
    %v4036 = vpop.f32.mrf.mxu0
    %v4037 = vadd.f32 0.0, %v4036
    %4038 = vdwg.mxu0
    %4039 = vrot.lane.b32.xlu0 %v200, 100
    %v4040 = vpop.permute.xlu0 %4039
    %4041 = vrot.lane.b32.xlu0 %v191, 68
    %v4042 = vpop.permute.xlu0 %4041
    %v4043 = vsel %vm204, %v4040, 0
    %v4045 = vsel %vm204, %v4042, 0
    %4047 = vmatpush.xpose.msra.mxu0 0.0
    %4048 = vmatpush.xpose.msra.mxu0 0.0
    %4049 = vmatpush.xpose.msra.mxu0 0.0
    %4050 = vmatpush.xpose.msra.mxu0 0.0
    %4051 = vmatpush.xpose.msra.mxu0 0.0
    %4052 = vmatpush.xpose.msra.mxu0 0.0
    %4053 = vmatpush.xpose.msra.mxu0 0.0
    %4054 = vmatpush.xpose.msra.mxu0 0.0
    %4055 = vmatpush.xpose.msra.mxu0 0.0
    %4056 = vmatpush.xpose.msra.mxu0 0.0
    %4057 = vmatpush.xpose.msra.mxu0 0.0
    %4058 = vmatpush.xpose.msra.mxu0 0.0
    %4059 = vmatpush.xpose.msra.mxu0 0.0
    %4060 = vmatpush.xpose.msra.mxu0 0.0
    %4061 = vmatpush.xpose.msra.mxu0 0.0
    %4062 = vmatpush.xpose.msra.mxu0 %v4045
    %4063 = vmatmul.f32.gmra.mxu0 %v4043
    %v4064 = vpop.f32.mrf.mxu0
    %v4065 = vadd.f32 0.0, %v4064
    %4066 = vdwg.mxu0
    %v4067 = vsel %vm426, %v3869, -inf
    %4068 = vmax.xlane.f32.xlu0 %v4067
    %v4069 = vpop.xlane.xlu0 %4068
    %v4070 = vsel %vm426, %v3897, -inf
    %4071 = vmax.xlane.f32.xlu0 %v4070
    %v4072 = vpop.xlane.xlu0 %4071
    %v4073 = vsel %vm426, %v3925, -inf
    %4074 = vmax.xlane.f32.xlu0 %v4073
    %v4075 = vpop.xlane.xlu0 %4074
    %v4076 = vsel %vm426, %v3953, -inf
    %4077 = vmax.xlane.f32.xlu0 %v4076
    %v4078 = vpop.xlane.xlu0 %4077
    %v4079 = vsel %vm426, %v3981, -inf
    %4080 = vmax.xlane.f32.xlu0 %v4079
    %v4081 = vpop.xlane.xlu0 %4080
    %v4082 = vsel %vm426, %v4009, -inf
    %4083 = vmax.xlane.f32.xlu0 %v4082
    %v4084 = vpop.xlane.xlu0 %4083
    %v4085 = vsel %vm426, %v4037, -inf
    %4086 = vmax.xlane.f32.xlu0 %v4085
    %v4087 = vpop.xlane.xlu0 %4086
    %v4088 = vsel %vm426, %v4065, -inf
    %4089 = vmax.xlane.f32.xlu0 %v4088
    %v4090 = vpop.xlane.xlu0 %4089
    %v4091 = vsub.f32 %v3869, %v4069
    %v4092 = vsub.f32 %v3897, %v4072
    %v4093 = vsub.f32 %v3925, %v4075
    %v4094 = vsub.f32 %v3953, %v4078
    %v4095 = vsub.f32 %v3981, %v4081
    %v4096 = vsub.f32 %v4009, %v4084
    %v4097 = vsub.f32 %v4037, %v4087
    %v4098 = vsub.f32 %v4065, %v4090
    %v4099 = vmul.f32 %v4091, 1.442695
    %v4100 = vpow.pop %v4099
    %v4101 = vmul.f32 %v4092, 1.442695
    %v4102 = vpow.pop %v4101
    %v4103 = vmul.f32 %v4093, 1.442695
    %v4104 = vpow.pop %v4103
    %v4105 = vmul.f32 %v4094, 1.442695
    %v4106 = vpow.pop %v4105
    %v4107 = vmul.f32 %v4095, 1.442695
    %v4108 = vpow.pop %v4107
    %v4109 = vmul.f32 %v4096, 1.442695
    %v4110 = vpow.pop %v4109
    %v4111 = vmul.f32 %v4097, 1.442695
    %v4112 = vpow.pop %v4111
    %v4113 = vmul.f32 %v4098, 1.442695
    %v4114 = vpow.pop %v4113
    %v4115 = vsel %vm426, %v4100, 0.0
    %4116 = vadd.xlane.f32.xlu0 %v4115
    %v4117 = vpop.xlane.xlu0 %4116
    %v4118 = vsel %vm426, %v4102, 0.0
    %4119 = vadd.xlane.f32.xlu0 %v4118
    %v4120 = vpop.xlane.xlu0 %4119
    %v4121 = vsel %vm426, %v4104, 0.0
    %4122 = vadd.xlane.f32.xlu0 %v4121
    %v4123 = vpop.xlane.xlu0 %4122
    %v4124 = vsel %vm426, %v4106, 0.0
    %4125 = vadd.xlane.f32.xlu0 %v4124
    %v4126 = vpop.xlane.xlu0 %4125
    %v4127 = vsel %vm426, %v4108, 0.0
    %4128 = vadd.xlane.f32.xlu0 %v4127
    %v4129 = vpop.xlane.xlu0 %4128
    %v4130 = vsel %vm426, %v4110, 0.0
    %4131 = vadd.xlane.f32.xlu0 %v4130
    %v4132 = vpop.xlane.xlu0 %4131
    %v4133 = vsel %vm426, %v4112, 0.0
    %4134 = vadd.xlane.f32.xlu0 %v4133
    %v4135 = vpop.xlane.xlu0 %4134
    %v4136 = vsel %vm426, %v4114, 0.0
    %4137 = vadd.xlane.f32.xlu0 %v4136
    %v4138 = vpop.xlane.xlu0 %4137
    %v4139 = vrcp.pop %v4117
    %v4140 = vrcp.pop %v4120
    %v4141 = vrcp.pop %v4123
    %v4142 = vrcp.pop %v4126
    %v4143 = vrcp.pop %v4129
    %v4144 = vrcp.pop %v4132
    %v4145 = vrcp.pop %v4135
    %v4146 = vrcp.pop %v4138
    %v4147 = vmul.f32 %v4100, %v4139
    %v4148 = vmul.f32 %v4102, %v4140
    %v4149 = vmul.f32 %v4104, %v4141
    %v4150 = vmul.f32 %v4106, %v4142
    %v4151 = vmul.f32 %v4108, %v4143
    %v4152 = vmul.f32 %v4110, %v4144
    %v4153 = vmul.f32 %v4112, %v4145
    %v4154 = vmul.f32 %v4114, %v4146
    %4155 = vrot.lane.b32.xlu0 %v170, 36
    %v4156 = vpop.permute.xlu0 %4155
    %v4159 = vsel %vm426, %v4147, 0
    %4161 = vmatpush.msra.mxu0 0.0
    %4162 = vmatpush.msra.mxu0 0.0
    %4163 = vmatpush.msra.mxu0 0.0
    %4164 = vmatpush.msra.mxu0 0.0
    %4165 = vmatpush.msra.mxu0 0.0
    %4166 = vmatpush.msra.mxu0 0.0
    %4167 = vmatpush.msra.mxu0 0.0
    %4168 = vmatpush.msra.mxu0 0.0
    %4169 = vmatpush.msra.mxu0 0.0
    %4170 = vmatpush.msra.mxu0 0.0
    %4171 = vmatpush.msra.mxu0 0.0
    %4172 = vmatpush.msra.mxu0 0.0
    %4173 = vmatpush.msra.mxu0 0.0
    %4174 = vmatpush.msra.mxu0 0.0
    %4175 = vmatpush.msra.mxu0 0.0
    %4176 = vmatpush.msra.mxu0 %v4156
    %4177 = vmatmul.f32.gmra.mxu0 %v4159
    %v4178 = vpop.f32.mrf.mxu0
    %v4179 = vadd.f32 0.0, %v4178
    %4180 = vdwg.mxu0
    %4181 = vrot.lane.b32.xlu0 %v173, 36
    %v4182 = vpop.permute.xlu0 %4181
    %v4185 = vsel %vm426, %v4148, 0
    %4187 = vmatpush.msra.mxu0 0.0
    %4188 = vmatpush.msra.mxu0 0.0
    %4189 = vmatpush.msra.mxu0 0.0
    %4190 = vmatpush.msra.mxu0 0.0
    %4191 = vmatpush.msra.mxu0 0.0
    %4192 = vmatpush.msra.mxu0 0.0
    %4193 = vmatpush.msra.mxu0 0.0
    %4194 = vmatpush.msra.mxu0 0.0
    %4195 = vmatpush.msra.mxu0 0.0
    %4196 = vmatpush.msra.mxu0 0.0
    %4197 = vmatpush.msra.mxu0 0.0
    %4198 = vmatpush.msra.mxu0 0.0
    %4199 = vmatpush.msra.mxu0 0.0
    %4200 = vmatpush.msra.mxu0 0.0
    %4201 = vmatpush.msra.mxu0 0.0
    %4202 = vmatpush.msra.mxu0 %v4182
    %4203 = vmatmul.f32.gmra.mxu0 %v4185
    %v4204 = vpop.f32.mrf.mxu0
    %v4205 = vadd.f32 0.0, %v4204
    %4206 = vdwg.mxu0
    %4207 = vrot.lane.b32.xlu0 %v176, 36
    %v4208 = vpop.permute.xlu0 %4207
    %v4211 = vsel %vm426, %v4149, 0
    %4213 = vmatpush.msra.mxu0 0.0
    %4214 = vmatpush.msra.mxu0 0.0
    %4215 = vmatpush.msra.mxu0 0.0
    %4216 = vmatpush.msra.mxu0 0.0
    %4217 = vmatpush.msra.mxu0 0.0
    %4218 = vmatpush.msra.mxu0 0.0
    %4219 = vmatpush.msra.mxu0 0.0
    %4220 = vmatpush.msra.mxu0 0.0
    %4221 = vmatpush.msra.mxu0 0.0
    %4222 = vmatpush.msra.mxu0 0.0
    %4223 = vmatpush.msra.mxu0 0.0
    %4224 = vmatpush.msra.mxu0 0.0
    %4225 = vmatpush.msra.mxu0 0.0
    %4226 = vmatpush.msra.mxu0 0.0
    %4227 = vmatpush.msra.mxu0 0.0
    %4228 = vmatpush.msra.mxu0 %v4208
    %4229 = vmatmul.f32.gmra.mxu0 %v4211
    %v4230 = vpop.f32.mrf.mxu0
    %v4231 = vadd.f32 0.0, %v4230
    %4232 = vdwg.mxu0
    %4233 = vrot.lane.b32.xlu0 %v179, 36
    %v4234 = vpop.permute.xlu0 %4233
    %v4237 = vsel %vm426, %v4150, 0
    %4239 = vmatpush.msra.mxu0 0.0
    %4240 = vmatpush.msra.mxu0 0.0
    %4241 = vmatpush.msra.mxu0 0.0
    %4242 = vmatpush.msra.mxu0 0.0
    %4243 = vmatpush.msra.mxu0 0.0
    %4244 = vmatpush.msra.mxu0 0.0
    %4245 = vmatpush.msra.mxu0 0.0
    %4246 = vmatpush.msra.mxu0 0.0
    %4247 = vmatpush.msra.mxu0 0.0
    %4248 = vmatpush.msra.mxu0 0.0
    %4249 = vmatpush.msra.mxu0 0.0
    %4250 = vmatpush.msra.mxu0 0.0
    %4251 = vmatpush.msra.mxu0 0.0
    %4252 = vmatpush.msra.mxu0 0.0
    %4253 = vmatpush.msra.mxu0 0.0
    %4254 = vmatpush.msra.mxu0 %v4234
    %4255 = vmatmul.f32.gmra.mxu0 %v4237
    %v4256 = vpop.f32.mrf.mxu0
    %v4257 = vadd.f32 0.0, %v4256
    %4258 = vdwg.mxu0
    %4259 = vrot.lane.b32.xlu0 %v182, 36
    %v4260 = vpop.permute.xlu0 %4259
    %v4263 = vsel %vm426, %v4151, 0
    %4265 = vmatpush.msra.mxu0 0.0
    %4266 = vmatpush.msra.mxu0 0.0
    %4267 = vmatpush.msra.mxu0 0.0
    %4268 = vmatpush.msra.mxu0 0.0
    %4269 = vmatpush.msra.mxu0 0.0
    %4270 = vmatpush.msra.mxu0 0.0
    %4271 = vmatpush.msra.mxu0 0.0
    %4272 = vmatpush.msra.mxu0 0.0
    %4273 = vmatpush.msra.mxu0 0.0
    %4274 = vmatpush.msra.mxu0 0.0
    %4275 = vmatpush.msra.mxu0 0.0
    %4276 = vmatpush.msra.mxu0 0.0
    %4277 = vmatpush.msra.mxu0 0.0
    %4278 = vmatpush.msra.mxu0 0.0
    %4279 = vmatpush.msra.mxu0 0.0
    %4280 = vmatpush.msra.mxu0 %v4260
    %4281 = vmatmul.f32.gmra.mxu0 %v4263
    %v4282 = vpop.f32.mrf.mxu0
    %v4283 = vadd.f32 0.0, %v4282
    %4284 = vdwg.mxu0
    %4285 = vrot.lane.b32.xlu0 %v185, 36
    %v4286 = vpop.permute.xlu0 %4285
    %v4289 = vsel %vm426, %v4152, 0
    %4291 = vmatpush.msra.mxu0 0.0
    %4292 = vmatpush.msra.mxu0 0.0
    %4293 = vmatpush.msra.mxu0 0.0
    %4294 = vmatpush.msra.mxu0 0.0
    %4295 = vmatpush.msra.mxu0 0.0
    %4296 = vmatpush.msra.mxu0 0.0
    %4297 = vmatpush.msra.mxu0 0.0
    %4298 = vmatpush.msra.mxu0 0.0
    %4299 = vmatpush.msra.mxu0 0.0
    %4300 = vmatpush.msra.mxu0 0.0
    %4301 = vmatpush.msra.mxu0 0.0
    %4302 = vmatpush.msra.mxu0 0.0
    %4303 = vmatpush.msra.mxu0 0.0
    %4304 = vmatpush.msra.mxu0 0.0
    %4305 = vmatpush.msra.mxu0 0.0
    %4306 = vmatpush.msra.mxu0 %v4286
    %4307 = vmatmul.f32.gmra.mxu0 %v4289
    %v4308 = vpop.f32.mrf.mxu0
    %v4309 = vadd.f32 0.0, %v4308
    %4310 = vdwg.mxu0
    %4311 = vrot.lane.b32.xlu0 %v188, 36
    %v4312 = vpop.permute.xlu0 %4311
    %v4315 = vsel %vm426, %v4153, 0
    %4317 = vmatpush.msra.mxu0 0.0
    %4318 = vmatpush.msra.mxu0 0.0
    %4319 = vmatpush.msra.mxu0 0.0
    %4320 = vmatpush.msra.mxu0 0.0
    %4321 = vmatpush.msra.mxu0 0.0
    %4322 = vmatpush.msra.mxu0 0.0
    %4323 = vmatpush.msra.mxu0 0.0
    %4324 = vmatpush.msra.mxu0 0.0
    %4325 = vmatpush.msra.mxu0 0.0
    %4326 = vmatpush.msra.mxu0 0.0
    %4327 = vmatpush.msra.mxu0 0.0
    %4328 = vmatpush.msra.mxu0 0.0
    %4329 = vmatpush.msra.mxu0 0.0
    %4330 = vmatpush.msra.mxu0 0.0
    %4331 = vmatpush.msra.mxu0 0.0
    %4332 = vmatpush.msra.mxu0 %v4312
    %4333 = vmatmul.f32.gmra.mxu0 %v4315
    %v4334 = vpop.f32.mrf.mxu0
    %v4335 = vadd.f32 0.0, %v4334
    %4336 = vdwg.mxu0
    %4337 = vrot.lane.b32.xlu0 %v191, 36
    %v4338 = vpop.permute.xlu0 %4337
    %v4341 = vsel %vm426, %v4154, 0
    %4343 = vmatpush.msra.mxu0 0.0
    %4344 = vmatpush.msra.mxu0 0.0
    %4345 = vmatpush.msra.mxu0 0.0
    %4346 = vmatpush.msra.mxu0 0.0
    %4347 = vmatpush.msra.mxu0 0.0
    %4348 = vmatpush.msra.mxu0 0.0
    %4349 = vmatpush.msra.mxu0 0.0
    %4350 = vmatpush.msra.mxu0 0.0
    %4351 = vmatpush.msra.mxu0 0.0
    %4352 = vmatpush.msra.mxu0 0.0
    %4353 = vmatpush.msra.mxu0 0.0
    %4354 = vmatpush.msra.mxu0 0.0
    %4355 = vmatpush.msra.mxu0 0.0
    %4356 = vmatpush.msra.mxu0 0.0
    %4357 = vmatpush.msra.mxu0 0.0
    %4358 = vmatpush.msra.mxu0 %v4338
    %4359 = vmatmul.f32.gmra.mxu0 %v4341
    %v4360 = vpop.f32.mrf.mxu0
    %v4361 = vadd.f32 0.0, %v4360
    %4362 = vdwg.mxu0
    %4371 = vrot.lane.b32.xlu0 %v1059, 4
    %v4372 = vpop.permute.xlu0 %4371
    %4373 = vrot.lane.b32.xlu0 %v1085, 4
    %v4374 = vpop.permute.xlu0 %4373
    %4375 = vrot.lane.b32.xlu0 %v1111, 4
    %v4376 = vpop.permute.xlu0 %4375
    %4377 = vrot.lane.b32.xlu0 %v1137, 4
    %v4378 = vpop.permute.xlu0 %4377
    %4379 = vrot.lane.b32.xlu0 %v1163, 4
    %v4380 = vpop.permute.xlu0 %4379
    %4381 = vrot.lane.b32.xlu0 %v1189, 4
    %v4382 = vpop.permute.xlu0 %4381
    %4383 = vrot.lane.b32.xlu0 %v1215, 4
    %v4384 = vpop.permute.xlu0 %4383
    %4385 = vrot.lane.b32.xlu0 %v1241, 4
    %v4386 = vpop.permute.xlu0 %4385
    %4403 = vrot.lane.b32.xlu0 %v1579, 8
    %v4404 = vpop.permute.xlu0 %4403
    %4405 = vrot.lane.b32.xlu0 %v1605, 8
    %v4406 = vpop.permute.xlu0 %4405
    %4407 = vrot.lane.b32.xlu0 %v1631, 8
    %v4408 = vpop.permute.xlu0 %4407
    %4409 = vrot.lane.b32.xlu0 %v1657, 8
    %v4410 = vpop.permute.xlu0 %4409
    %4411 = vrot.lane.b32.xlu0 %v1683, 8
    %v4412 = vpop.permute.xlu0 %4411
    %4413 = vrot.lane.b32.xlu0 %v1709, 8
    %v4414 = vpop.permute.xlu0 %4413
    %4415 = vrot.lane.b32.xlu0 %v1735, 8
    %v4416 = vpop.permute.xlu0 %4415
    %4417 = vrot.lane.b32.xlu0 %v1761, 8
    %v4418 = vpop.permute.xlu0 %4417
    %4435 = vrot.lane.b32.xlu0 %v2099, 12
    %v4436 = vpop.permute.xlu0 %4435
    %4437 = vrot.lane.b32.xlu0 %v2125, 12
    %v4438 = vpop.permute.xlu0 %4437
    %4439 = vrot.lane.b32.xlu0 %v2151, 12
    %v4440 = vpop.permute.xlu0 %4439
    %4441 = vrot.lane.b32.xlu0 %v2177, 12
    %v4442 = vpop.permute.xlu0 %4441
    %4443 = vrot.lane.b32.xlu0 %v2203, 12
    %v4444 = vpop.permute.xlu0 %4443
    %4445 = vrot.lane.b32.xlu0 %v2229, 12
    %v4446 = vpop.permute.xlu0 %4445
    %4447 = vrot.lane.b32.xlu0 %v2255, 12
    %v4448 = vpop.permute.xlu0 %4447
    %4449 = vrot.lane.b32.xlu0 %v2281, 12
    %v4450 = vpop.permute.xlu0 %4449
    %4467 = vrot.lane.b32.xlu0 %v2619, 16
    %v4468 = vpop.permute.xlu0 %4467
    %4469 = vrot.lane.b32.xlu0 %v2645, 16
    %v4470 = vpop.permute.xlu0 %4469
    %4471 = vrot.lane.b32.xlu0 %v2671, 16
    %v4472 = vpop.permute.xlu0 %4471
    %4473 = vrot.lane.b32.xlu0 %v2697, 16
    %v4474 = vpop.permute.xlu0 %4473
    %4475 = vrot.lane.b32.xlu0 %v2723, 16
    %v4476 = vpop.permute.xlu0 %4475
    %4477 = vrot.lane.b32.xlu0 %v2749, 16
    %v4478 = vpop.permute.xlu0 %4477
    %4479 = vrot.lane.b32.xlu0 %v2775, 16
    %v4480 = vpop.permute.xlu0 %4479
    %4481 = vrot.lane.b32.xlu0 %v2801, 16
    %v4482 = vpop.permute.xlu0 %4481
    %4499 = vrot.lane.b32.xlu0 %v3139, 20
    %v4500 = vpop.permute.xlu0 %4499
    %4501 = vrot.lane.b32.xlu0 %v3165, 20
    %v4502 = vpop.permute.xlu0 %4501
    %4503 = vrot.lane.b32.xlu0 %v3191, 20
    %v4504 = vpop.permute.xlu0 %4503
    %4505 = vrot.lane.b32.xlu0 %v3217, 20
    %v4506 = vpop.permute.xlu0 %4505
    %4507 = vrot.lane.b32.xlu0 %v3243, 20
    %v4508 = vpop.permute.xlu0 %4507
    %4509 = vrot.lane.b32.xlu0 %v3269, 20
    %v4510 = vpop.permute.xlu0 %4509
    %4511 = vrot.lane.b32.xlu0 %v3295, 20
    %v4512 = vpop.permute.xlu0 %4511
    %4513 = vrot.lane.b32.xlu0 %v3321, 20
    %v4514 = vpop.permute.xlu0 %4513
    %4531 = vrot.lane.b32.xlu0 %v3659, 24
    %v4532 = vpop.permute.xlu0 %4531
    %4533 = vrot.lane.b32.xlu0 %v3685, 24
    %v4534 = vpop.permute.xlu0 %4533
    %4535 = vrot.lane.b32.xlu0 %v3711, 24
    %v4536 = vpop.permute.xlu0 %4535
    %4537 = vrot.lane.b32.xlu0 %v3737, 24
    %v4538 = vpop.permute.xlu0 %4537
    %4539 = vrot.lane.b32.xlu0 %v3763, 24
    %v4540 = vpop.permute.xlu0 %4539
    %4541 = vrot.lane.b32.xlu0 %v3789, 24
    %v4542 = vpop.permute.xlu0 %4541
    %4543 = vrot.lane.b32.xlu0 %v3815, 24
    %v4544 = vpop.permute.xlu0 %4543
    %4545 = vrot.lane.b32.xlu0 %v3841, 24
    %v4546 = vpop.permute.xlu0 %4545
    %4563 = vrot.lane.b32.xlu0 %v4179, 28
    %v4564 = vpop.permute.xlu0 %4563
    %4565 = vrot.lane.b32.xlu0 %v4205, 28
    %v4566 = vpop.permute.xlu0 %4565
    %4567 = vrot.lane.b32.xlu0 %v4231, 28
    %v4568 = vpop.permute.xlu0 %4567
    %4569 = vrot.lane.b32.xlu0 %v4257, 28
    %v4570 = vpop.permute.xlu0 %4569
    %4571 = vrot.lane.b32.xlu0 %v4283, 28
    %v4572 = vpop.permute.xlu0 %4571
    %4573 = vrot.lane.b32.xlu0 %v4309, 28
    %v4574 = vpop.permute.xlu0 %4573
    %4575 = vrot.lane.b32.xlu0 %v4335, 28
    %v4576 = vpop.permute.xlu0 %4575
    %4577 = vrot.lane.b32.xlu0 %v4361, 28
    %v4578 = vpop.permute.xlu0 %4577
    %v4587 = vsel %vm204, %v539, %v4372
    %v4588 = vsel %vm204, %v565, %v4374
    %v4589 = vsel %vm204, %v591, %v4376
    %v4590 = vsel %vm204, %v617, %v4378
    %v4591 = vsel %vm204, %v643, %v4380
    %v4592 = vsel %vm204, %v669, %v4382
    %v4593 = vsel %vm204, %v695, %v4384
    %v4594 = vsel %vm204, %v721, %v4386
    %v4595 = vsel %vm426, %v4587, %v4404
    %v4596 = vsel %vm426, %v4588, %v4406
    %v4597 = vsel %vm426, %v4589, %v4408
    %v4598 = vsel %vm426, %v4590, %v4410
    %v4599 = vsel %vm426, %v4591, %v4412
    %v4600 = vsel %vm426, %v4592, %v4414
    %v4601 = vsel %vm426, %v4593, %v4416
    %v4602 = vsel %vm426, %v4594, %v4418
    %vm4603 = vcmask 97280
    %v4604 = vsel %vm4603, %v4595, %v4436
    %v4605 = vsel %vm4603, %v4596, %v4438
    %v4606 = vsel %vm4603, %v4597, %v4440
    %v4607 = vsel %vm4603, %v4598, %v4442
    %v4608 = vsel %vm4603, %v4599, %v4444
    %v4609 = vsel %vm4603, %v4600, %v4446
    %v4610 = vsel %vm4603, %v4601, %v4448
    %v4611 = vsel %vm4603, %v4602, %v4450
    %vm4612 = vcmask 130048
    %v4613 = vsel %vm4612, %v4604, %v4468
    %v4614 = vsel %vm4612, %v4605, %v4470
    %v4615 = vsel %vm4612, %v4606, %v4472
    %v4616 = vsel %vm4612, %v4607, %v4474
    %v4617 = vsel %vm4612, %v4608, %v4476
    %v4618 = vsel %vm4612, %v4609, %v4478
    %v4619 = vsel %vm4612, %v4610, %v4480
    %v4620 = vsel %vm4612, %v4611, %v4482
    %vm4621 = vcmask 162816
    %v4622 = vsel %vm4621, %v4613, %v4500
    %v4623 = vsel %vm4621, %v4614, %v4502
    %v4624 = vsel %vm4621, %v4615, %v4504
    %v4625 = vsel %vm4621, %v4616, %v4506
    %v4626 = vsel %vm4621, %v4617, %v4508
    %v4627 = vsel %vm4621, %v4618, %v4510
    %v4628 = vsel %vm4621, %v4619, %v4512
    %v4629 = vsel %vm4621, %v4620, %v4514
    %vm4630 = vcmask 195584
    %v4631 = vsel %vm4630, %v4622, %v4532
    %v4632 = vsel %vm4630, %v4623, %v4534
    %v4633 = vsel %vm4630, %v4624, %v4536
    %v4634 = vsel %vm4630, %v4625, %v4538
    %v4635 = vsel %vm4630, %v4626, %v4540
    %v4636 = vsel %vm4630, %v4627, %v4542
    %v4637 = vsel %vm4630, %v4628, %v4544
    %v4638 = vsel %vm4630, %v4629, %v4546
    %vm4639 = vcmask 228352
    %v4640 = vsel %vm4639, %v4631, %v4564
    %v4641 = vsel %vm4639, %v4632, %v4566
    %v4642 = vsel %vm4639, %v4633, %v4568
    %v4643 = vsel %vm4639, %v4634, %v4570
    %v4644 = vsel %vm4639, %v4635, %v4572
    %v4645 = vsel %vm4639, %v4636, %v4574
    %v4646 = vsel %vm4639, %v4637, %v4576
    %v4647 = vsel %vm4639, %v4638, %v4578
    %v4648 = vld [vmem:[#allocation7] sm:$0xff]
    %v4649 = vld [vmem:[#allocation7 + $0x8] sm:$0xff]
    %v4650 = vld [vmem:[#allocation7 + $0x10] sm:$0xff]
    %v4651 = vld [vmem:[#allocation7 + $0x18] sm:$0xff]
    %v4652 = vld [vmem:[%s4] sm:$0x1]
    %v4654 = vperm.slane %v4652, 0
    %v4657 = vsel %vm127, %v4640, 0
    %v4660 = vsel %vm127, %v4641, 0
    %v4663 = vsel %vm127, %v4642, 0
    %v4666 = vsel %vm127, %v4643, 0
    %v4669 = vsel %vm127, %v4644, 0
    %v4672 = vsel %vm127, %v4645, 0
    %v4675 = vsel %vm127, %v4646, 0
    %v4678 = vsel %vm127, %v4647, 0
    %4680 = vmatpush.msra.mxu0 0.0
    %4681 = vmatpush.msra.mxu0 0.0
    %4682 = vmatpush.msra.mxu0 0.0
    %4683 = vmatpush.msra.mxu0 0.0
    %4684 = vmatpush.msra.mxu0 0.0
    %4685 = vmatpush.msra.mxu0 0.0
    %4686 = vmatpush.msra.mxu0 0.0
    %4687 = vmatpush.msra.mxu0 0.0
    %4688 = vmatpush.msra.mxu0 0.0
    %4689 = vmatpush.msra.mxu0 0.0
    %4690 = vmatpush.msra.mxu0 0.0
    %4691 = vmatpush.msra.mxu0 0.0
    %4692 = vmatpush.msra.mxu0 %v4651
    %4693 = vmatpush.msra.mxu0 %v4650
    %4694 = vmatpush.msra.mxu0 %v4649
    %4695 = vmatpush.msra.mxu0 %v4648
    %4696 = vmatmul.f32.gmra.mxu0 %v4657
    %v4697 = vpop.f32.mrf.mxu0
    %v4698 = vadd.f32 %v4654, %v4697
    %4699 = vmatmul.f32.gmra.mxu0 %v4660
    %v4700 = vpop.f32.mrf.mxu0
    %v4701 = vadd.f32 %v4654, %v4700
    %4702 = vmatmul.f32.gmra.mxu0 %v4663
    %v4703 = vpop.f32.mrf.mxu0
    %v4704 = vadd.f32 %v4654, %v4703
    %4705 = vmatmul.f32.gmra.mxu0 %v4666
    %v4706 = vpop.f32.mrf.mxu0
    %v4707 = vadd.f32 %v4654, %v4706
    %4708 = vmatmul.f32.gmra.mxu0 %v4669
    %v4709 = vpop.f32.mrf.mxu0
    %v4710 = vadd.f32 %v4654, %v4709
    %4711 = vmatmul.f32.gmra.mxu0 %v4672
    %v4712 = vpop.f32.mrf.mxu0
    %v4713 = vadd.f32 %v4654, %v4712
    %4714 = vmatmul.f32.gmra.mxu0 %v4675
    %v4715 = vpop.f32.mrf.mxu0
    %v4716 = vadd.f32 %v4654, %v4715
    %4717 = vmatmul.f32.gmra.mxu0 %v4678
    %v4718 = vpop.f32.mrf.mxu0
    %v4719 = vadd.f32 %v4654, %v4718
    %4720 = vdwg.mxu0
    %v4729 = vrot.slane %v4701, 7
    %vm4730 = vcmask 1041409
    %v4731 = vsel %vm4730, %v4729, %v4698
    %v4732 = vrot.slane %v4704, 6
    %vm4733 = vcmask 1042434
    %v4734 = vsel %vm4733, %v4732, %v4731
    %v4735 = vrot.slane %v4707, 5
    %vm4736 = vcmask 1043459
    %v4737 = vsel %vm4736, %v4735, %v4734
    %v4738 = vrot.slane %v4710, 4
    %vm4739 = vcmask 1044484
    %v4740 = vsel %vm4739, %v4738, %v4737
    %v4741 = vrot.slane %v4713, 3
    %vm4742 = vcmask 1045509
    %v4743 = vsel %vm4742, %v4741, %v4740
    %v4744 = vrot.slane %v4716, 2
    %vm4745 = vcmask 1046534
    %v4746 = vsel %vm4745, %v4744, %v4743
    %v4747 = vrot.slane %v4719, 1
    %vm4748 = vcmask 1047559
    %v4749 = vsel %vm4748, %v4747, %v4746
    %v4751 = vrot.slane %v4698, 1
    %v4752 = vsel %vm4730, %v4701, %v4751
    %v4753 = vrot.slane %v4704, 7
    %v4754 = vsel %vm4733, %v4753, %v4752
    %v4755 = vrot.slane %v4707, 6
    %v4756 = vsel %vm4736, %v4755, %v4754
    %v4757 = vrot.slane %v4710, 5
    %v4758 = vsel %vm4739, %v4757, %v4756
    %v4759 = vrot.slane %v4713, 4
    %v4760 = vsel %vm4742, %v4759, %v4758
    %v4761 = vrot.slane %v4716, 3
    %v4762 = vsel %vm4745, %v4761, %v4760
    %v4763 = vrot.slane %v4719, 2
    %v4764 = vsel %vm4748, %v4763, %v4762
    %4765 = vrot.lane.b32.xlu0 %v4764, 32
    %v4766 = vpop.permute.xlu0 %4765
    %v4768 = vrot.slane %v4698, 2
    %v4769 = vrot.slane %v4701, 1
    %v4770 = vsel %vm4730, %v4769, %v4768
    %v4771 = vsel %vm4733, %v4704, %v4770
    %v4772 = vrot.slane %v4707, 7
    %v4773 = vsel %vm4736, %v4772, %v4771
    %v4774 = vrot.slane %v4710, 6
    %v4775 = vsel %vm4739, %v4774, %v4773
    %v4776 = vrot.slane %v4713, 5
    %v4777 = vsel %vm4742, %v4776, %v4775
    %v4778 = vrot.slane %v4716, 4
    %v4779 = vsel %vm4745, %v4778, %v4777
    %v4780 = vrot.slane %v4719, 3
    %v4781 = vsel %vm4748, %v4780, %v4779
    %4782 = vrot.lane.b32.xlu0 %v4781, 64
    %v4783 = vpop.permute.xlu0 %4782
    %v4785 = vrot.slane %v4698, 3
    %v4786 = vrot.slane %v4701, 2
    %v4787 = vsel %vm4730, %v4786, %v4785
    %v4788 = vrot.slane %v4704, 1
    %v4789 = vsel %vm4733, %v4788, %v4787
    %v4790 = vsel %vm4736, %v4707, %v4789
    %v4791 = vrot.slane %v4710, 7
    %v4792 = vsel %vm4739, %v4791, %v4790
    %v4793 = vrot.slane %v4713, 6
    %v4794 = vsel %vm4742, %v4793, %v4792
    %v4795 = vrot.slane %v4716, 5
    %v4796 = vsel %vm4745, %v4795, %v4794
    %v4797 = vrot.slane %v4719, 4
    %v4798 = vsel %vm4748, %v4797, %v4796
    %4799 = vrot.lane.b32.xlu0 %v4798, 96
    %v4800 = vpop.permute.xlu0 %4799
    %v4802 = vrot.slane %v4698, 4
    %v4803 = vrot.slane %v4701, 3
    %v4804 = vsel %vm4730, %v4803, %v4802
    %v4805 = vrot.slane %v4704, 2
    %v4806 = vsel %vm4733, %v4805, %v4804
    %v4807 = vrot.slane %v4707, 1
    %v4808 = vsel %vm4736, %v4807, %v4806
    %v4809 = vsel %vm4739, %v4710, %v4808
    %v4810 = vrot.slane %v4713, 7
    %v4811 = vsel %vm4742, %v4810, %v4809
    %v4812 = vrot.slane %v4716, 6
    %v4813 = vsel %vm4745, %v4812, %v4811
    %v4814 = vrot.slane %v4719, 5
    %v4815 = vsel %vm4748, %v4814, %v4813
    %v4817 = vrot.slane %v4698, 5
    %v4818 = vrot.slane %v4701, 4
    %v4819 = vsel %vm4730, %v4818, %v4817
    %v4820 = vrot.slane %v4704, 3
    %v4821 = vsel %vm4733, %v4820, %v4819
    %v4822 = vrot.slane %v4707, 2
    %v4823 = vsel %vm4736, %v4822, %v4821
    %v4824 = vrot.slane %v4710, 1
    %v4825 = vsel %vm4739, %v4824, %v4823
    %v4826 = vsel %vm4742, %v4713, %v4825
    %v4827 = vrot.slane %v4716, 7
    %v4828 = vsel %vm4745, %v4827, %v4826
    %v4829 = vrot.slane %v4719, 6
    %v4830 = vsel %vm4748, %v4829, %v4828
    %4831 = vrot.lane.b32.xlu0 %v4830, 32
    %v4832 = vpop.permute.xlu0 %4831
    %v4834 = vrot.slane %v4698, 6
    %v4835 = vrot.slane %v4701, 5
    %v4836 = vsel %vm4730, %v4835, %v4834
    %v4837 = vrot.slane %v4704, 4
    %v4838 = vsel %vm4733, %v4837, %v4836
    %v4839 = vrot.slane %v4707, 3
    %v4840 = vsel %vm4736, %v4839, %v4838
    %v4841 = vrot.slane %v4710, 2
    %v4842 = vsel %vm4739, %v4841, %v4840
    %v4843 = vrot.slane %v4713, 1
    %v4844 = vsel %vm4742, %v4843, %v4842
    %v4845 = vsel %vm4745, %v4716, %v4844
    %v4846 = vrot.slane %v4719, 7
    %v4847 = vsel %vm4748, %v4846, %v4845
    %4848 = vrot.lane.b32.xlu0 %v4847, 64
    %v4849 = vpop.permute.xlu0 %4848
    %v4851 = vrot.slane %v4698, 7
    %v4852 = vrot.slane %v4701, 6
    %v4853 = vsel %vm4730, %v4852, %v4851
    %v4854 = vrot.slane %v4704, 5
    %v4855 = vsel %vm4733, %v4854, %v4853
    %v4856 = vrot.slane %v4707, 4
    %v4857 = vsel %vm4736, %v4856, %v4855
    %v4858 = vrot.slane %v4710, 3
    %v4859 = vsel %vm4739, %v4858, %v4857
    %v4860 = vrot.slane %v4713, 2
    %v4861 = vsel %vm4742, %v4860, %v4859
    %v4862 = vrot.slane %v4716, 1
    %v4863 = vsel %vm4745, %v4862, %v4861
    %v4864 = vsel %vm4748, %v4719, %v4863
    %4865 = vrot.lane.b32.xlu0 %v4864, 96
    %v4866 = vpop.permute.xlu0 %4865
    %v4868 = vsel %vm127, %v4749, %v4766
    %vm4869 = vcmask 523264
    %v4870 = vsel %vm4869, %v4868, %v4783
    %vm4871 = vcmask 785408
    %v4872 = vsel %vm4871, %v4870, %v4800
    %v4873 = vsel %vm127, %v4815, %v4832
    %v4874 = vsel %vm4869, %v4873, %v4849
    %v4875 = vsel %vm4871, %v4874, %v4866
    %v4876 = vld [vmem:[#allocation8] sm:$0xff]
    %v4877 = vld [vmem:[#allocation8 + $0x8] sm:$0xff]
    %v4878 = vld [vmem:[#allocation8 + $0x10] sm:$0xff]
    %v4879 = vld [vmem:[#allocation8 + $0x18] sm:$0xff]
    %v4880 = vld [vmem:[#allocation8 + $0x20] sm:$0xff]
    %v4881 = vld [vmem:[#allocation8 + $0x28] sm:$0xff]
    %v4882 = vld [vmem:[#allocation8 + $0x30] sm:$0xff]
    %v4883 = vld [vmem:[#allocation8 + $0x38] sm:$0xff]
    %v4884 = vld [vmem:[#allocation8 + $0x40] sm:$0xff]
    %v4885 = vld [vmem:[#allocation8 + $0x48] sm:$0xff]
    %v4886 = vld [vmem:[#allocation8 + $0x50] sm:$0xff]
    %v4887 = vld [vmem:[#allocation8 + $0x58] sm:$0xff]
    %v4888 = vld [vmem:[#allocation8 + $0x60] sm:$0xff]
    %v4889 = vld [vmem:[#allocation8 + $0x68] sm:$0xff]
    %v4890 = vld [vmem:[#allocation8 + $0x70] sm:$0xff]
    %v4891 = vld [vmem:[#allocation8 + $0x78] sm:$0xff]
    %v4892 = vld [vmem:[#allocation8 + $0x80] sm:$0xff]
    %v4893 = vld [vmem:[#allocation8 + $0x88] sm:$0xff]
    %v4894 = vld [vmem:[#allocation8 + $0x90] sm:$0xff]
    %v4895 = vld [vmem:[#allocation8 + $0x98] sm:$0xff]
    %v4896 = vld [vmem:[#allocation8 + $0xa0] sm:$0xff]
    %v4897 = vld [vmem:[#allocation8 + $0xa8] sm:$0xff]
    %v4898 = vld [vmem:[#allocation8 + $0xb0] sm:$0xff]
    %v4899 = vld [vmem:[#allocation8 + $0xb8] sm:$0xff]
    %v4900 = vld [vmem:[#allocation8 + $0xc0] sm:$0xff]
    %v4901 = vld [vmem:[#allocation8 + $0xc8] sm:$0xff]
    %v4902 = vld [vmem:[#allocation8 + $0xd0] sm:$0xff]
    %v4903 = vld [vmem:[#allocation8 + $0xd8] sm:$0xff]
    %v4904 = vld [vmem:[#allocation8 + $0xe0] sm:$0xff]
    %v4905 = vld [vmem:[#allocation8 + $0xe8] sm:$0xff]
    %v4906 = vld [vmem:[#allocation8 + $0xf0] sm:$0xff]
    %v4907 = vld [vmem:[#allocation8 + $0xf8] sm:$0xff]
    %v4908 = vld [vmem:[%s6] sm:$0x1]
    %v4910 = vperm.slane %v4908, 0
    %4912 = vmatpush.msra.mxu0 %v4891
    %4913 = vmatpush.msra.mxu0 %v4890
    %4914 = vmatpush.msra.mxu0 %v4889
    %4915 = vmatpush.msra.mxu0 %v4888
    %4916 = vmatpush.msra.mxu0 %v4887
    %4917 = vmatpush.msra.mxu0 %v4886
    %4918 = vmatpush.msra.mxu0 %v4885
    %4919 = vmatpush.msra.mxu0 %v4884
    %4920 = vmatpush.msra.mxu0 %v4883
    %4921 = vmatpush.msra.mxu0 %v4882
    %4922 = vmatpush.msra.mxu0 %v4881
    %4923 = vmatpush.msra.mxu0 %v4880
    %4924 = vmatpush.msra.mxu0 %v4879
    %4925 = vmatpush.msra.mxu0 %v4878
    %4926 = vmatpush.msra.mxu0 %v4877
    %4927 = vmatpush.msra.mxu0 %v4876
    %4928 = vmatmul.f32.gmra.mxu0 %v4872
    %v4929 = vpop.f32.mrf.mxu0
    %v4930 = vadd.f32 %v4910, %v4929
    %4931 = vdwg.mxu0
    %4932 = vmatpush.msra.mxu0 %v4907
    %4933 = vmatpush.msra.mxu0 %v4906
    %4934 = vmatpush.msra.mxu0 %v4905
    %4935 = vmatpush.msra.mxu0 %v4904
    %4936 = vmatpush.msra.mxu0 %v4903
    %4937 = vmatpush.msra.mxu0 %v4902
    %4938 = vmatpush.msra.mxu0 %v4901
    %4939 = vmatpush.msra.mxu0 %v4900
    %4940 = vmatpush.msra.mxu0 %v4899
    %4941 = vmatpush.msra.mxu0 %v4898
    %4942 = vmatpush.msra.mxu0 %v4897
    %4943 = vmatpush.msra.mxu0 %v4896
    %4944 = vmatpush.msra.mxu0 %v4895
    %4945 = vmatpush.msra.mxu0 %v4894
    %4946 = vmatpush.msra.mxu0 %v4893
    %4947 = vmatpush.msra.mxu0 %v4892
    %4948 = vmatmul.f32.gmra.mxu0 %v4875
    %v4949 = vpop.f32.mrf.mxu0
    %v4950 = vadd.f32 %v4930, %v4949
    %4951 = vdwg.mxu0
    %v4952 = vtanh.pop %v4950
    %v4953 = vld [vmem:[#allocation10] sm:$0xff]
    %v4954 = vld [vmem:[#allocation10 + $0x8] sm:$0xff]
    %v4955 = vld [vmem:[#allocation10 + $0x10] sm:$0xff]
    %v4956 = vld [vmem:[#allocation10 + $0x18] sm:$0xff]
    %v4957 = vld [vmem:[#allocation10 + $0x20] sm:$0xff]
    %v4958 = vld [vmem:[#allocation10 + $0x28] sm:$0xff]
    %v4959 = vld [vmem:[#allocation10 + $0x30] sm:$0xff]
    %v4960 = vld [vmem:[#allocation10 + $0x38] sm:$0xff]
    %v4961 = vld [vmem:[#allocation10 + $0x40] sm:$0xff]
    %v4962 = vld [vmem:[#allocation10 + $0x48] sm:$0xff]
    %v4963 = vld [vmem:[#allocation10 + $0x50] sm:$0xff]
    %v4964 = vld [vmem:[#allocation10 + $0x58] sm:$0xff]
    %v4965 = vld [vmem:[#allocation10 + $0x60] sm:$0xff]
    %v4966 = vld [vmem:[#allocation10 + $0x68] sm:$0xff]
    %v4967 = vld [vmem:[#allocation10 + $0x70] sm:$0xff]
    %v4968 = vld [vmem:[#allocation10 + $0x78] sm:$0xff]
    %v4969 = vld [vmem:[%s8] sm:$0x1]
    %v4971 = vperm.slane %v4969, 0
    %4973 = vmatpush.msra.mxu0 %v4968
    %4974 = vmatpush.msra.mxu0 %v4967
    %4975 = vmatpush.msra.mxu0 %v4966
    %4976 = vmatpush.msra.mxu0 %v4965
    %4977 = vmatpush.msra.mxu0 %v4964
    %4978 = vmatpush.msra.mxu0 %v4963
    %4979 = vmatpush.msra.mxu0 %v4962
    %4980 = vmatpush.msra.mxu0 %v4961
    %4981 = vmatpush.msra.mxu0 %v4960
    %4982 = vmatpush.msra.mxu0 %v4959
    %4983 = vmatpush.msra.mxu0 %v4958
    %4984 = vmatpush.msra.mxu0 %v4957
    %4985 = vmatpush.msra.mxu0 %v4956
    %4986 = vmatpush.msra.mxu0 %v4955
    %4987 = vmatpush.msra.mxu0 %v4954
    %4988 = vmatpush.msra.mxu0 %v4953
    %4989 = vmatmul.f32.gmra.mxu0 %v4952
    %v4990 = vpop.f32.mrf.mxu0
    %v4991 = vadd.f32 %v4971, %v4990
    %4992 = vdwg.mxu0
    %4993 = vst [vmem:[#allocation11] sm:$0xff] %v4991
    // Predicated region
    $region58: #{tpu_custom_call.1} parent=1 // pred_check
      _
    $region59: #{tpu_custom_call.1} parent=1 // pred_check_branch
      %4995 = sbr.rel (0) target = $region61
    $region60: #{tpu_custom_call.1} parent=1 // pred_region
      %4997 = vsyncadd [#allocation4], 0
      %s4999 = sshll.u32 [#allocation11], 4
      %s5000 = int_to_ptr.vmem [resolvable:$true] %s4999
      %s5001 = sshll.u32 %s9, 4
      %s5002 = int_to_ptr.hbm [resolvable:$true] %s5001
      %5004 = dma.vmem_to_hbm [thread:$0]  %s5000, 128, %s5002, [#allocation4]
    $region61: #{tpu_custom_call.1} parent=1 // pred_fallthru
      _
    // Predicated region
    $region62: #{tpu_custom_call.1} parent=1 // pred_check
      _
    $region63: #{tpu_custom_call.1} parent=1 // pred_check_branch
      %5006 = sbr.rel (0) target = $region65
    $region64: #{tpu_custom_call.1} parent=1 // pred_region
      %5008 = dma.done [#allocation4], 128
    $region65: #{tpu_custom_call.1} parent=1 // pred_fallthru
      _
    %5009 = vsyncpa [#allocation3], 1
    %5010 = vsyncpa [#allocation6], 1
    %5011 = vsyncpa [#allocation9], 1
    %5012 = vsyncpa [#allocation4], 1

</llo_original>
